<compile_context>
chip_gen: v6e
topology: v6e:2x2x1
jax: 0.10.0
libtpu: 0.0.40
codegen_flags: <defaults>
</compile_context>

<pallas_src>
import functools
import math

import jax
import jax.numpy as jnp
from jax.experimental import pallas as pl
from jax.experimental.pallas import tpu as pltpu

F32 = jnp.float32
BF16 = jnp.bfloat16
_LANE = 128


def _round_up(x, m):
    return ((x + m - 1) // m) * m


def _pick_tile(total, target, unit):
    """Largest multiple of `unit` dividing `total` and <= target, else full dim."""
    if total % unit != 0:
        return total
    best = unit
    t = unit
    top = min(total, target)
    while t <= top:
        if total % t == 0:
            best = t
        t += unit
    return best


def _vmem_limit_bytes():
    # ~75% of physical VMEM, capped at 100 MiB: ~96 MiB on v5e/v6e (128 MiB phys),
    # ~48 MiB on v7x (64 MiB phys).  Fallback is the conservative v7x setting.
    phys = 64 * 1024 * 1024
    try:
        phys = int(pltpu.get_tpu_info().vmem_capacity_bytes)
    except Exception:
        pass
    return min(int(phys * 3 // 4), 100 * 1024 * 1024)


# ---------------------------------------------------------------------------
# Fused projection kernel: one GEMM for all per-head [q | k | v | lr | wd] columns.
# ---------------------------------------------------------------------------

def _proj_kernel(x_ref, w_ref, b_ref, o_ref, acc_ref):
    @pl.when(pl.program_id(2) == 0)
    def _():
        acc_ref[...] = jnp.zeros_like(acc_ref)

    acc_ref[...] += jnp.dot(x_ref[...], w_ref[...], preferred_element_type=F32)

    @pl.when(pl.program_id(2) == pl.num_programs(2) - 1)
    def _():
        o_ref[...] = acc_ref[...] + b_ref[...]


def fused_projection(x2d, w_cat, b_cat, *, vmem_limit,
                     row_tile=512, col_tile=1024, k_tile=512):
    R, D = x2d.shape
    P = w_cat.shape[1]
    # Non-multiple-of-8 row counts fall back to a full-array row block.
    tm = _pick_tile(R, row_tile, 8)
    tn = _pick_tile(P, col_tile, _LANE)
    tk = _pick_tile(D, k_tile, _LANE)
    grid = (R // tm, P // tn, D // tk)
    return pl.pallas_call(
        _proj_kernel,
        out_shape=jax.ShapeDtypeStruct((R, P), F32),
        grid_spec=pltpu.PrefetchScalarGridSpec(
            num_scalar_prefetch=0,
            grid=grid,
            in_specs=[
                pl.BlockSpec((tm, tk), lambda i, j, k: (i, k)),
                pl.BlockSpec((tk, tn), lambda i, j, k: (k, j)),
                pl.BlockSpec((1, tn), lambda i, j, k: (0, j)),
            ],
            out_specs=pl.BlockSpec((tm, tn), lambda i, j, k: (i, j)),
            scratch_shapes=[pltpu.VMEM((tm, tn), F32)],
        ),
        compiler_params=pltpu.CompilerParams(
            dimension_semantics=("parallel", "parallel", "arbitrary"),
            vmem_limit_bytes=vmem_limit),
    )(x2d, w_cat, b_cat)


# ---------------------------------------------------------------------------
# TTT kernel: grid=(B, N), fc_out fused via head-axis accumulation.
# ---------------------------------------------------------------------------

def _sigmoid(z):
    return 1.0 / (1.0 + jnp.exp(-z))


def _silu(z):
    return z * _sigmoid(z)


def _silu_backward(z):  # matches reference silu_backward exactly
    s = _silu(z)
    return s + _sigmoid(z) * (1.0 - s)


def _prefix_sum_rows(x):
    """Inclusive prefix sum along axis 0 of an (L, C) array (Hillis-Steele scan)."""
    L = x.shape[0]
    s = 1
    while s < L:
        shifted = jnp.concatenate(
            [jnp.zeros((s, x.shape[1]), x.dtype), x[:L - s]], axis=0)
        x = x + shifted
        s *= 2
    return x


def _ttt_head_kernel(proj_ref, w1_ref, w2_ref, wo_ref, bo_ref,
                     y_ref, w1n_ref, w2n_ref, *, head_dim, hp):
    hd = head_dim
    L = proj_ref.shape[0]
    n = pl.program_id(1)

    # 128-aligned per-head fields of the fused projection slab.
    q = proj_ref[:, 0:hd]                              # (L, hd)
    k = proj_ref[:, hp:hp + hd]
    v = proj_ref[:, 2 * hp:2 * hp + hd]
    base = 3 * hp
    lr_lin = proj_ref[:, base + 0:base + 1]            # (L, 1)
    wd_lin = proj_ref[:, base + 1:base + 2]
    lblr = proj_ref[:, base + 2:base + 3]              # constant column = log(base_lr)
    lbwd = proj_ref[:, base + 3:base + 4]              # constant column = log(base_wd)

    lr = jnp.exp(lblr) * _sigmoid(lr_lin)              # (L, 1)
    p = jnp.exp(lbwd) * _sigmoid(wd_lin)
    p = jnp.minimum(p, 1.0 - 1e-6)                     # guard log(0) for base_wd -> 1
    lwd = jnp.log(1.0 - p)                             # (L, 1), <= 0

    # --- decay terms from cumulative sums (no O(L^3) mask construction) -----
    cs = _prefix_sum_rows(lwd)                         # (L, 1): cs[m]
    wd_cc = jnp.exp(cs)                                # cross-chunk decay, (L, 1)
    cs_last = cs[L - 1:L, :]                           # (1, 1)
    wd_cc_last = wd_cc[L - 1:L, :]                     # (1, 1)
    wlast = jnp.exp(cs_last - cs)                      # (L, 1): decay from step l to last

    row = jax.lax.broadcasted_iota(jnp.int32, (L, L), 0)   # m (query index)
    col = jax.lax.broadcasted_iota(jnp.int32, (L, L), 1)   # l (key index)
    # Lane-oriented copy of cs via one (1,L)x(L,L) matvec on the MXU (avoids relying
    # on a sublane->lane vector relayout); cost is L^2 MACs, negligible vs the scores.
    cs_row = jnp.dot(jnp.ones((1, L), F32),
                     jnp.where(row <= col, jnp.broadcast_to(lwd, (L, L)), 0.0),
                     preferred_element_type=F32)       # (1, L): cs[l]
    # A[m, l] = exp(cs[m] - cs[l]) for l <= m (diag inclusive, == 1), else 0.
    A = jnp.exp(jnp.where(col <= row, cs - cs_row, -1e30))   # (L, L), values in [0, 1]

    W1 = w1_ref[...]                                   # (hdh, hd)
    W2 = w2_ref[...]                                   # (hd, hdh)

    # --- "training" forward on keys (f32: feeds the fast-weight update) -----
    Z1 = jnp.einsum('ld,hd->lh', k, W1, preferred_element_type=F32)
    X2 = _silu(Z1)
    Z2 = jnp.einsum('lh,dh->ld', X2, W2, preferred_element_type=F32)
    gZ2 = Z2 - v
    gX2 = jnp.einsum('ld,dh->lh', gZ2, W2, preferred_element_type=F32)
    gZ1 = _silu_backward(Z1) * gX2

    G1 = gZ1 * lr                                      # (L, hdh)
    G2 = gZ2 * lr                                      # (L, hd)

    # --- fast-weight update (kept in f32; numerically sensitive) ------------
    gZ1w = gZ1 * (lr * wlast)
    gZ2w = gZ2 * (lr * wlast)
    # TODO(synk): optionally store these lane-dense (N, hdh*hd) for unmasked stores.
    w1n_ref[...] = (W1 * wd_cc_last
                    - jnp.einsum('lh,ld->hd', gZ1w, k, preferred_element_type=F32))
    w2n_ref[...] = (W2 * wd_cc_last
                    - jnp.einsum('ld,lh->dh', gZ2w, X2, preferred_element_type=F32))

    # --- query-side output path (bf16 MXU operands, f32 accumulation) -------
    qb = q.astype(BF16)
    kb = k.astype(BF16)
    w1b = W1.astype(BF16)
    w2b = W2.astype(BF16)

    scores1 = jnp.einsum('md,ld->ml', qb, kb, preferred_element_type=F32)    # (L, L)
    Z1n = (jnp.einsum('md,hd->mh', qb, w1b, preferred_element_type=F32) * wd_cc
           - jnp.einsum('ml,lh->mh', (scores1 * A).astype(BF16), G1.astype(BF16),
                        preferred_element_type=F32))
    X2n = _silu(Z1n)
    x2nb = X2n.astype(BF16)
    scores2 = jnp.einsum('mh,lh->ml', x2nb, X2.astype(BF16),
                         preferred_element_type=F32)                          # (L, L)
    Z2n = (jnp.einsum('mh,dh->md', x2nb, w2b, preferred_element_type=F32) * wd_cc
           - jnp.einsum('ml,ld->md', (scores2 * A).astype(BF16), G2.astype(BF16),
                        preferred_element_type=F32))

    # --- fused fc_out: accumulate this head's contribution into resident y --
    contrib = jnp.dot(Z2n.astype(BF16), wo_ref[...].astype(BF16),
                      preferred_element_type=F32)                             # (L, D)

    @pl.when(n == 0)
    def _():
        y_ref[...] = contrib + bo_ref[...]

    @pl.when(n != 0)
    def _():
        y_ref[...] = y_ref[...] + contrib


def ttt_forward(proj, w1_prev, w2_prev, wo_heads, bo, *, num_head, head_dim,
                head_dim_hidden, hp, vmem_limit):
    B, L, _ = proj.shape
    N, hd, hdh = num_head, head_dim, head_dim_hidden
    D = N * hd
    pblk = 3 * hp + _LANE

    kern = functools.partial(_ttt_head_kernel, head_dim=hd, hp=hp)

    out_shape = (jax.ShapeDtypeStruct((B, L, D), F32),
                 jax.ShapeDtypeStruct((B, N, hdh, hd), F32),
                 jax.ShapeDtypeStruct((B, N, hd, hdh), F32))

    # NOTE: heads are 'arbitrary' because y is accumulated across them; on v7x with
    # B == 1 this leaves one TensorCore idle (trade-off for the fused fc_out).
    return pl.pallas_call(
        kern,
        out_shape=out_shape,
        grid_spec=pltpu.PrefetchScalarGridSpec(
            num_scalar_prefetch=0,
            grid=(B, N),
            in_specs=[
                pl.BlockSpec((None, L, pblk), lambda b, n: (b, 0, n)),          # proj slab
                pl.BlockSpec((None, None, hdh, hd), lambda b, n: (b, n, 0, 0)),  # W1_prev
                pl.BlockSpec((None, None, hd, hdh), lambda b, n: (b, n, 0, 0)),  # W2_prev
                pl.BlockSpec((None, hd, D), lambda b, n: (n, 0, 0)),             # Wo rows
                pl.BlockSpec((1, D), lambda b, n: (0, 0)),                       # bo
            ],
            out_specs=(
                pl.BlockSpec((None, L, D), lambda b, n: (b, 0, 0)),              # y (resident)
                pl.BlockSpec((None, None, hdh, hd), lambda b, n: (b, n, 0, 0)),  # W1_next
                pl.BlockSpec((None, None, hd, hdh), lambda b, n: (b, n, 0, 0)),  # W2_next
            ),
        ),
        compiler_params=pltpu.CompilerParams(
            dimension_semantics=("parallel", "arbitrary"),
            vmem_limit_bytes=vmem_limit),
    )(proj, w1_prev, w2_prev, wo_heads, bo)


# ---------------------------------------------------------------------------
# Layer forward (glue only; all heavy compute lives in the two Pallas kernels)
# ---------------------------------------------------------------------------

def multi_head_mlp_ttt_forward(x, hidden, params, *, num_head):
    B, L, D = x.shape
    N = num_head
    assert D % N == 0, 'dim must be divisible by num_head'
    hd = D // N
    hdh = hidden['W1'].shape[-2]
    hp = _round_up(hd, _LANE)           # 128-aligned per-head field width
    vmem_limit = _vmem_limit_bytes()

    # Head-major, 128-lane-aligned fused projection weights.  Per-head block:
    #   [ q (hp) | k (hp) | v (hp) | lr, wd, log_base_lr, log_base_wd, 0... (128) ]
    # The log_base_* columns have zero weights and the log value as bias, so the GEMM
    # broadcasts them down the sequence for free (no SMEM / scalar-prefetch needed).
    wq, wk, wv = params['Wq'], params['Wk'], params['Wv']
    bq, bk, bv = params['bq'], params['bk'], params['bv']
    wlr, wwd = params['Wlr'], params['Wwd']
    blr, bwd = params['blr'], params['bwd']
    lblr, lbwd = params['log_base_lr'], params['log_base_wd']

    pad_w = jnp.zeros((D, hp - hd), F32)
    pad_b = jnp.zeros((1, hp - hd), F32)
    w_blocks, b_blocks = [], []
    for n in range(N):
        sl = slice(n * hd, (n + 1) * hd)
        for W, b in ((wq, bq), (wk, bk), (wv, bv)):
            w_blocks.append(W[:, sl])
            b_blocks.append(b[:, sl])
            if hp > hd:
                w_blocks.append(pad_w)
                b_blocks.append(pad_b)
        w_blocks.append(jnp.concatenate(
            [wlr[:, n:n + 1], wwd[:, n:n + 1], jnp.zeros((D, _LANE - 2), F32)], axis=1))
        b_blocks.append(jnp.concatenate(
            [blr[:, n:n + 1], bwd[:, n:n + 1],
             lblr[n].reshape(1, 1), lbwd[n].reshape(1, 1),
             jnp.zeros((1, _LANE - 4), F32)], axis=1))
    w_cat = jnp.concatenate(w_blocks, axis=1)
    b_cat = jnp.concatenate(b_blocks, axis=1)
    P = w_cat.shape[1]                  # == N * (3 * hp + 128), multiple of 128

    proj2d = fused_projection(x.reshape(B * L, D), w_cat, b_cat,
                              vmem_limit=vmem_limit)
    proj = proj2d.reshape(B, L, P)      # leading-dim reshape: free

    wo_heads = params['Wo'].reshape(N, hd, D)     # fc_out rows grouped per head

    y, w1_next, w2_next = ttt_forward(
        proj, hidden['W1'], hidden['W2'], wo_heads, params['bo'],
        num_head=N, head_dim=hd, head_dim_hidden=hdh, hp=hp,
        vmem_limit=vmem_limit)
    return y, {'W1': w1_next, 'W2': w2_next}


# ---------------------------------------------------------------------------
# Deterministic parameter / hidden init (shapes follow the module __init__;
# linear weights stored as (in, out), biases as (1, out)).
# ---------------------------------------------------------------------------

def init_params(key, dim, dim_hidden, num_head, base_lr, base_weight_decay):
    del dim_hidden  # only affects the hidden fast-weight shapes
    ks = jax.random.split(key, 6)

    def lin(k, din, dout):
        kw, kb = jax.random.split(k)
        bound = 1.0 / math.sqrt(din)
        w = jax.random.uniform(kw, (din, dout), F32, -bound, bound)
        b = jax.random.uniform(kb, (1, dout), F32, -bound, bound)
        return w, b

    p = {}
    p['Wq'], p['bq'] = lin(ks[0], dim, dim)
    p['Wk'], p['bk'] = lin(ks[1], dim, dim)
    p['Wv'], p['bv'] = lin(ks[2], dim, dim)
    p['Wlr'], p['blr'] = lin(ks[3], dim, num_head)
    p['Wwd'], p['bwd'] = lin(ks[4], dim, num_head)
    p['Wo'], p['bo'] = lin(ks[5], dim, dim)
    p['log_base_lr'] = jnp.full((num_head,), math.log(base_lr), F32)
    p['log_base_wd'] = jnp.full((num_head,), math.log(base_weight_decay), F32)
    return p


def init_hidden(key, batch, dim, dim_hidden, num_head):
    hd = dim // num_head
    hdh = dim_hidden // num_head
    k1, k2 = jax.random.split(key)
    W1 = jax.random.normal(k1, (batch, num_head, hdh, hd), F32) * (hd ** -0.5)
    W2 = jax.random.normal(k2, (batch, num_head, hd, hdh), F32) * (hdh ** -0.5)
    return {'W1': W1, 'W2': W2}


if __name__ == "__main__":
    B, L, D = 2, 16, 32      # batch, seq length, model dim
    DH = 64                  # dim_hidden -> head_dim_hidden = 32
    NH = 2                   # num_head   -> head_dim = 16
    BASE_LR = 0.1
    BASE_WD = 0.05

    key = jax.random.PRNGKey(0)
    kx, kp, kh = jax.random.split(key, 3)
    x = jax.random.normal(kx, (B, L, D), F32)
    params = init_params(kp, D, DH, NH, BASE_LR, BASE_WD)
    hidden = init_hidden(kh, B, D, DH, NH)

    fwd = jax.jit(functools.partial(multi_head_mlp_ttt_forward, num_head=NH))
    y, hidden_next = fwd(x, hidden, params)
    y = jax.block_until_ready(y)
    hidden_next = jax.block_until_ready(hidden_next)

    assert y.shape == (B, L, D)
    assert hidden_next['W1'].shape == (B, NH, DH // NH, D // NH)
    assert hidden_next['W2'].shape == (B, NH, D // NH, DH // NH)
    assert bool(jnp.all(jnp.isfinite(y)))
    assert bool(jnp.all(jnp.isfinite(hidden_next['W1'])))
    assert bool(jnp.all(jnp.isfinite(hidden_next['W2'])))
    print("KERNEL_OK")
</pallas_src>

<mosaic_0001>
module attributes {stable_mosaic.version = 11 : i64} {
  func.func @_proj_kernel(%arg0: i32, %arg1: i32, %arg2: i32, %arg3: memref<32x32xf32, #tpu.memory_space<vmem>>, %arg4: memref<32x1024xf32, #tpu.memory_space<vmem>>, %arg5: memref<1x1024xf32, #tpu.memory_space<vmem>>, %arg6: memref<32x1024xf32, #tpu.memory_space<vmem>>, %arg7: memref<32x1024xf32, #tpu.memory_space<vmem>>) attributes {dimension_semantics = [#tpu.dimension_semantics<parallel>, #tpu.dimension_semantics<parallel>, #tpu.dimension_semantics<arbitrary>], iteration_bounds = array<i64: 1, 1, 1>, scalar_prefetch = 0 : i64, scratch_operands = 1 : i64, tpu.core_type = #tpu.core_type<tc>, window_params = [{transform_indices = @transform_0, window_bounds = array<i64: 32, 32>}, {transform_indices = @transform_1, window_bounds = array<i64: 32, 1024>}, {transform_indices = @transform_2, window_bounds = array<i64: 1, 1024>}, {transform_indices = @transform_3, window_bounds = array<i64: 32, 1024>}]} {
    %c0_i32 = arith.constant 0 : i32
    %0 = arith.cmpi eq, %arg2, %c0_i32 : i32
    %1 = arith.extui %0 : i1 to i32
    %c0_i32_0 = arith.constant 0 : i32
    %2 = arith.cmpi ne, %1, %c0_i32_0 : i32
    scf.if %2 {
      %cst_10 = arith.constant 0.000000e+00 : f32
      %12 = vector.broadcast %cst_10 : f32 to vector<32x1024xf32>
      %c0_11 = arith.constant 0 : index
      %c0_12 = arith.constant 0 : index
      %13 = vector.load %arg7[%c0_11, %c0_12] : memref<32x1024xf32, #tpu.memory_space<vmem>>, vector<32x1024xf32>
      tpu.vector_store %arg7[%c0_11, %c0_12], %12 {strides = array<i32>} : memref<32x1024xf32, #tpu.memory_space<vmem>>, vector<32x1024xf32>,
    } else {
    }
    %c0 = arith.constant 0 : index
    %c0_1 = arith.constant 0 : index
    %3 = vector.load %arg7[%c0, %c0_1] : memref<32x1024xf32, #tpu.memory_space<vmem>>, vector<32x1024xf32>
    %c0_2 = arith.constant 0 : index
    %c0_3 = arith.constant 0 : index
    %4 = vector.load %arg3[%c0_2, %c0_3] : memref<32x32xf32, #tpu.memory_space<vmem>>, vector<32x32xf32>
    %c0_4 = arith.constant 0 : index
    %c0_5 = arith.constant 0 : index
    %5 = vector.load %arg4[%c0_4, %c0_5] : memref<32x1024xf32, #tpu.memory_space<vmem>>, vector<32x1024xf32>
    %cst = arith.constant dense<0.000000e+00> : vector<32x1024xf32>
    %6 = tpu.matmul %4, %5, %cst {dimension_numbers = #tpu.dot_dimension_numbers<[1], [0], [0], [1], [0, 0, 1, 1], [], []>} : vector<32x32xf32>, vector<32x1024xf32>, vector<32x1024xf32> -> vector<32x1024xf32>
    %7 = arith.addf %3, %6 : vector<32x1024xf32>
    %c0_6 = arith.constant 0 : index
    %c0_7 = arith.constant 0 : index
    %8 = vector.load %arg7[%c0_6, %c0_7] : memref<32x1024xf32, #tpu.memory_space<vmem>>, vector<32x1024xf32>
    tpu.vector_store %arg7[%c0_6, %c0_7], %7 {strides = array<i32>} : memref<32x1024xf32, #tpu.memory_space<vmem>>, vector<32x1024xf32>,
    %c0_i32_8 = arith.constant 0 : i32
    %9 = arith.cmpi eq, %arg2, %c0_i32_8 : i32
    %10 = arith.extui %9 : i1 to i32
    %c0_i32_9 = arith.constant 0 : i32
    %11 = arith.cmpi ne, %10, %c0_i32_9 : i32
    scf.if %11 {
      %c0_10 = arith.constant 0 : index
      %c0_11 = arith.constant 0 : index
      %12 = vector.load %arg7[%c0_10, %c0_11] : memref<32x1024xf32, #tpu.memory_space<vmem>>, vector<32x1024xf32>
      %c0_12 = arith.constant 0 : index
      %c0_13 = arith.constant 0 : index
      %13 = vector.load %arg5[%c0_12, %c0_13] : memref<1x1024xf32, #tpu.memory_space<vmem>>, vector<1x1024xf32>
      %14 = vector.broadcast %13 : vector<1x1024xf32> to vector<32x1024xf32>
      %15 = arith.addf %12, %14 : vector<32x1024xf32>
      %c0_14 = arith.constant 0 : index
      %c0_15 = arith.constant 0 : index
      %16 = vector.load %arg6[%c0_14, %c0_15] : memref<32x1024xf32, #tpu.memory_space<vmem>>, vector<32x1024xf32>
      tpu.vector_store %arg6[%c0_14, %c0_15], %15 {strides = array<i32>} : memref<32x1024xf32, #tpu.memory_space<vmem>>, vector<32x1024xf32>,
    } else {
    }
    return
  }
  func.func @transform_0(%arg0: i32, %arg1: i32, %arg2: i32) -> (i32, i32) {
    %c0_i32 = arith.constant 0 : i32
    return %arg0, %arg2 : i32, i32
  }
  func.func @transform_1(%arg0: i32, %arg1: i32, %arg2: i32) -> (i32, i32) {
    %c0_i32 = arith.constant 0 : i32
    return %arg2, %arg1 : i32, i32
  }
  func.func @transform_2(%arg0: i32, %arg1: i32, %arg2: i32) -> (i32, i32) {
    %c0_i32 = arith.constant 0 : i32
    %c0_i32_0 = arith.constant 0 : i32
    return %c0_i32, %arg1 : i32, i32
  }
  func.func @transform_3(%arg0: i32, %arg1: i32, %arg2: i32) -> (i32, i32) {
    %c0_i32 = arith.constant 0 : i32
    return %arg0, %arg1 : i32, i32
  }
}

module attributes {stable_mosaic.version = 11 : i64} {
  func.func @_ttt_head_kernel(%arg0: i32, %arg1: i32, %arg2: memref<1x16x512xf32, #tpu.memory_space<vmem>>, %arg3: memref<1x1x32x16xf32, #tpu.memory_space<vmem>>, %arg4: memref<1x1x16x32xf32, #tpu.memory_space<vmem>>, %arg5: memref<1x16x32xf32, #tpu.memory_space<vmem>>, %arg6: memref<1x32xf32, #tpu.memory_space<vmem>>, %arg7: memref<1x16x32xf32, #tpu.memory_space<vmem>>, %arg8: memref<1x1x32x16xf32, #tpu.memory_space<vmem>>, %arg9: memref<1x1x16x32xf32, #tpu.memory_space<vmem>>) attributes {dimension_semantics = [#tpu.dimension_semantics<parallel>, #tpu.dimension_semantics<arbitrary>], iteration_bounds = array<i64: 2, 2>, scalar_prefetch = 0 : i64, scratch_operands = 0 : i64, tpu.core_type = #tpu.core_type<tc>, window_params = [{transform_indices = @transform_0, window_bounds = array<i64: 1, 16, 512>}, {transform_indices = @transform_1, window_bounds = array<i64: 1, 1, 32, 16>}, {transform_indices = @transform_2, window_bounds = array<i64: 1, 1, 16, 32>}, {transform_indices = @transform_3, window_bounds = array<i64: 1, 16, 32>}, {pipeline_mode = #tpu.pipeline_mode<synchronous>, transform_indices = @transform_4, window_bounds = array<i64: 1, 32>}, {transform_indices = @transform_5, window_bounds = array<i64: 1, 16, 32>}, {transform_indices = @transform_6, window_bounds = array<i64: 1, 1, 32, 16>}, {transform_indices = @transform_7, window_bounds = array<i64: 1, 1, 16, 32>}]} {
    %c0 = arith.constant 0 : index
    %c0_0 = arith.constant 0 : index
    %c0_1 = arith.constant 0 : index
    %0 = vector.load %arg2[%c0, %c0_0, %c0_1] : memref<1x16x512xf32, #tpu.memory_space<vmem>>, vector<1x16x16xf32>
    %1 = vector.shape_cast %0 : vector<1x16x16xf32> to vector<16x16xf32>
    %c0_2 = arith.constant 0 : index
    %c0_3 = arith.constant 0 : index
    %c128 = arith.constant 128 : index
    %2 = vector.load %arg2[%c0_2, %c0_3, %c128] : memref<1x16x512xf32, #tpu.memory_space<vmem>>, vector<1x16x16xf32>
    %3 = vector.shape_cast %2 : vector<1x16x16xf32> to vector<16x16xf32>
    %c0_4 = arith.constant 0 : index
    %c0_5 = arith.constant 0 : index
    %c256 = arith.constant 256 : index
    %4 = vector.load %arg2[%c0_4, %c0_5, %c256] : memref<1x16x512xf32, #tpu.memory_space<vmem>>, vector<1x16x16xf32>
    %5 = vector.shape_cast %4 : vector<1x16x16xf32> to vector<16x16xf32>
    %c0_6 = arith.constant 0 : index
    %c0_7 = arith.constant 0 : index
    %c384 = arith.constant 384 : index
    %6 = vector.load %arg2[%c0_6, %c0_7, %c384] : memref<1x16x512xf32, #tpu.memory_space<vmem>>, vector<1x16x1xf32>
    %7 = vector.shape_cast %6 : vector<1x16x1xf32> to vector<16x1xf32>
    %c0_8 = arith.constant 0 : index
    %c0_9 = arith.constant 0 : index
    %c385 = arith.constant 385 : index
    %8 = vector.load %arg2[%c0_8, %c0_9, %c385] : memref<1x16x512xf32, #tpu.memory_space<vmem>>, vector<1x16x1xf32>
    %9 = vector.shape_cast %8 : vector<1x16x1xf32> to vector<16x1xf32>
    %c0_10 = arith.constant 0 : index
    %c0_11 = arith.constant 0 : index
    %c386 = arith.constant 386 : index
    %10 = vector.load %arg2[%c0_10, %c0_11, %c386] : memref<1x16x512xf32, #tpu.memory_space<vmem>>, vector<1x16x1xf32>
    %11 = vector.shape_cast %10 : vector<1x16x1xf32> to vector<16x1xf32>
    %c0_12 = arith.constant 0 : index
    %c0_13 = arith.constant 0 : index
    %c387 = arith.constant 387 : index
    %12 = vector.load %arg2[%c0_12, %c0_13, %c387] : memref<1x16x512xf32, #tpu.memory_space<vmem>>, vector<1x16x1xf32>
    %13 = vector.shape_cast %12 : vector<1x16x1xf32> to vector<16x1xf32>
    %14 = math.exp %11 : vector<16x1xf32>
    %cst = arith.constant 0.000000e+00 : f32
    %15 = vector.broadcast %cst : f32 to vector<16x1xf32>
    %16 = arith.subf %15, %7 : vector<16x1xf32>
    %17 = math.exp %16 : vector<16x1xf32>
    %cst_14 = arith.constant 1.000000e+00 : f32
    %18 = vector.broadcast %cst_14 : f32 to vector<16x1xf32>
    %19 = arith.addf %18, %17 : vector<16x1xf32>
    %cst_15 = arith.constant 1.000000e+00 : f32
    %20 = vector.broadcast %cst_15 : f32 to vector<16x1xf32>
    %21 = arith.divf %20, %19 : vector<16x1xf32>
    %22 = arith.mulf %14, %21 : vector<16x1xf32>
    %23 = math.exp %13 : vector<16x1xf32>
    %cst_16 = arith.constant 0.000000e+00 : f32
    %24 = vector.broadcast %cst_16 : f32 to vector<16x1xf32>
    %25 = arith.subf %24, %9 : vector<16x1xf32>
    %26 = math.exp %25 : vector<16x1xf32>
    %cst_17 = arith.constant 1.000000e+00 : f32
    %27 = vector.broadcast %cst_17 : f32 to vector<16x1xf32>
    %28 = arith.addf %27, %26 : vector<16x1xf32>
    %cst_18 = arith.constant 1.000000e+00 : f32
    %29 = vector.broadcast %cst_18 : f32 to vector<16x1xf32>
    %30 = arith.divf %29, %28 : vector<16x1xf32>
    %31 = arith.mulf %23, %30 : vector<16x1xf32>
    %cst_19 = arith.constant 0.999998986 : f32
    %32 = vector.broadcast %cst_19 : f32 to vector<16x1xf32>
    %33 = arith.minimumf %31, %32 : vector<16x1xf32>
    %cst_20 = arith.constant 1.000000e+00 : f32
    %34 = vector.broadcast %cst_20 : f32 to vector<16x1xf32>
    %35 = arith.subf %34, %33 : vector<16x1xf32>
    %36 = math.log %35 : vector<16x1xf32>
    %cst_21 = arith.constant 0.000000e+00 : f32
    %37 = vector.broadcast %cst_21 : f32 to vector<1x1xf32>
    %38 = vector.extract_strided_slice %36 {offsets = [0, 0], sizes = [15, 1], strides = [1, 1]} : vector<16x1xf32> to vector<15x1xf32>
    %39 = tpu.concatenate %37, %38 in 0 : vector<1x1xf32>, vector<15x1xf32> -> vector<16x1xf32>
    %40 = arith.addf %36, %39 : vector<16x1xf32>
    %cst_22 = arith.constant 0.000000e+00 : f32
    %41 = vector.broadcast %cst_22 : f32 to vector<2x1xf32>
    %42 = vector.extract_strided_slice %40 {offsets = [0, 0], sizes = [14, 1], strides = [1, 1]} : vector<16x1xf32> to vector<14x1xf32>
    %43 = tpu.concatenate %41, %42 in 0 : vector<2x1xf32>, vector<14x1xf32> -> vector<16x1xf32>
    %44 = arith.addf %40, %43 : vector<16x1xf32>
    %cst_23 = arith.constant 0.000000e+00 : f32
    %45 = vector.broadcast %cst_23 : f32 to vector<4x1xf32>
    %46 = vector.extract_strided_slice %44 {offsets = [0, 0], sizes = [12, 1], strides = [1, 1]} : vector<16x1xf32> to vector<12x1xf32>
    %47 = tpu.concatenate %45, %46 in 0 : vector<4x1xf32>, vector<12x1xf32> -> vector<16x1xf32>
    %48 = arith.addf %44, %47 : vector<16x1xf32>
    %cst_24 = arith.constant 0.000000e+00 : f32
    %49 = vector.broadcast %cst_24 : f32 to vector<8x1xf32>
    %50 = vector.extract_strided_slice %48 {offsets = [0, 0], sizes = [8, 1], strides = [1, 1]} : vector<16x1xf32> to vector<8x1xf32>
    %51 = tpu.concatenate %49, %50 in 0 : vector<8x1xf32>, vector<8x1xf32> -> vector<16x1xf32>
    %52 = arith.addf %48, %51 : vector<16x1xf32>
    %53 = math.exp %52 : vector<16x1xf32>
    %54 = vector.extract_strided_slice %52 {offsets = [15, 0], sizes = [1, 1], strides = [1, 1]} : vector<16x1xf32> to vector<1x1xf32>
    %55 = vector.extract_strided_slice %53 {offsets = [15, 0], sizes = [1, 1], strides = [1, 1]} : vector<16x1xf32> to vector<1x1xf32>
    %56 = vector.broadcast %54 : vector<1x1xf32> to vector<16x1xf32>
    %57 = arith.subf %56, %52 : vector<16x1xf32>
    %58 = math.exp %57 : vector<16x1xf32>
    %59 = tpu.iota {dimensions = array<i32: 0>} : vector<16x16xi32>
    %60 = tpu.iota {dimensions = array<i32: 1>} : vector<16x16xi32>
    %cst_25 = arith.constant 1.000000e+00 : f32
    %61 = vector.broadcast %cst_25 : f32 to vector<1x16xf32>
    %62 = arith.cmpi sle, %59, %60 : vector<16x16xi32>
    %63 = vector.shape_cast %36 : vector<16x1xf32> to vector<16x1xf32>
    %64 = vector.broadcast %63 : vector<16x1xf32> to vector<16x16xf32>
    %cst_26 = arith.constant 0.000000e+00 : f32
    %65 = vector.broadcast %cst_26 : f32 to vector<16x16xf32>
    %66 = arith.select %62, %64, %65 : vector<16x16xi1>, vector<16x16xf32>
    %cst_27 = arith.constant dense<0.000000e+00> : vector<1x16xf32>
    %67 = tpu.matmul %61, %66, %cst_27 {dimension_numbers = #tpu.dot_dimension_numbers<[1], [0], [0], [1], [0, 0, 1, 1], [], []>} : vector<1x16xf32>, vector<16x16xf32>, vector<1x16xf32> -> vector<1x16xf32>
    %68 = arith.cmpi sle, %60, %59 : vector<16x16xi32>
    %69 = vector.broadcast %52 : vector<16x1xf32> to vector<16x16xf32>
    %70 = vector.broadcast %67 : vector<1x16xf32> to vector<16x16xf32>
    %71 = arith.subf %69, %70 : vector<16x16xf32>
    %cst_28 = arith.constant -1.000000e+30 : f32
    %72 = vector.broadcast %cst_28 : f32 to vector<16x16xf32>
    %73 = arith.select %68, %71, %72 : vector<16x16xi1>, vector<16x16xf32>
    %74 = math.exp %73 : vector<16x16xf32>
    %c0_29 = arith.constant 0 : index
    %c0_30 = arith.constant 0 : index
    %c0_31 = arith.constant 0 : index
    %c0_32 = arith.constant 0 : index
    %75 = vector.load %arg3[%c0_29, %c0_30, %c0_31, %c0_32] : memref<1x1x32x16xf32, #tpu.memory_space<vmem>>, vector<1x1x32x16xf32>
    %76 = vector.shape_cast %75 : vector<1x1x32x16xf32> to vector<32x16xf32>
    %c0_33 = arith.constant 0 : index
    %c0_34 = arith.constant 0 : index
    %c0_35 = arith.constant 0 : index
    %c0_36 = arith.constant 0 : index
    %77 = vector.load %arg4[%c0_33, %c0_34, %c0_35, %c0_36] : memref<1x1x16x32xf32, #tpu.memory_space<vmem>>, vector<1x1x16x32xf32>
    %78 = vector.shape_cast %77 : vector<1x1x16x32xf32> to vector<16x32xf32>
    "tpu.trace_start"() <{level = 10 : i32, message = "ld,hd->lh"}> : () -> ()
    %cst_37 = arith.constant dense<0.000000e+00> : vector<16x32xf32>
    %79 = tpu.matmul %3, %76, %cst_37 {dimension_numbers = #tpu.dot_dimension_numbers<[1], [1], [0], [0], [0, 0, 1, 0], [], []>} : vector<16x16xf32>, vector<32x16xf32>, vector<16x32xf32> -> vector<16x32xf32>
    "tpu.trace_stop"() : () -> ()
    %cst_38 = arith.constant 0.000000e+00 : f32
    %80 = vector.broadcast %cst_38 : f32 to vector<16x32xf32>
    %81 = arith.subf %80, %79 : vector<16x32xf32>
    %82 = math.exp %81 : vector<16x32xf32>
    %cst_39 = arith.constant 1.000000e+00 : f32
    %83 = vector.broadcast %cst_39 : f32 to vector<16x32xf32>
    %84 = arith.addf %83, %82 : vector<16x32xf32>
    %cst_40 = arith.constant 1.000000e+00 : f32
    %85 = vector.broadcast %cst_40 : f32 to vector<16x32xf32>
    %86 = arith.divf %85, %84 : vector<16x32xf32>
    %87 = arith.mulf %79, %86 : vector<16x32xf32>
    "tpu.trace_start"() <{level = 10 : i32, message = "lh,dh->ld"}> : () -> ()
    %cst_41 = arith.constant dense<0.000000e+00> : vector<16x16xf32>
    %88 = tpu.matmul %87, %78, %cst_41 {dimension_numbers = #tpu.dot_dimension_numbers<[1], [1], [0], [0], [0, 0, 1, 0], [], []>} : vector<16x32xf32>, vector<16x32xf32>, vector<16x16xf32> -> vector<16x16xf32>
    "tpu.trace_stop"() : () -> ()
    %89 = arith.subf %88, %5 : vector<16x16xf32>
    "tpu.trace_start"() <{level = 10 : i32, message = "ld,dh->lh"}> : () -> ()
    %cst_42 = arith.constant dense<0.000000e+00> : vector<16x32xf32>
    %90 = tpu.matmul %89, %78, %cst_42 {dimension_numbers = #tpu.dot_dimension_numbers<[1], [0], [0], [1], [0, 0, 1, 1], [], []>} : vector<16x16xf32>, vector<16x32xf32>, vector<16x32xf32> -> vector<16x32xf32>
    "tpu.trace_stop"() : () -> ()
    %cst_43 = arith.constant 0.000000e+00 : f32
    %91 = vector.broadcast %cst_43 : f32 to vector<16x32xf32>
    %92 = arith.subf %91, %79 : vector<16x32xf32>
    %93 = math.exp %92 : vector<16x32xf32>
    %cst_44 = arith.constant 1.000000e+00 : f32
    %94 = vector.broadcast %cst_44 : f32 to vector<16x32xf32>
    %95 = arith.addf %94, %93 : vector<16x32xf32>
    %cst_45 = arith.constant 1.000000e+00 : f32
    %96 = vector.broadcast %cst_45 : f32 to vector<16x32xf32>
    %97 = arith.divf %96, %95 : vector<16x32xf32>
    %98 = arith.mulf %79, %97 : vector<16x32xf32>
    %cst_46 = arith.constant 0.000000e+00 : f32
    %99 = vector.broadcast %cst_46 : f32 to vector<16x32xf32>
    %100 = arith.subf %99, %79 : vector<16x32xf32>
    %101 = math.exp %100 : vector<16x32xf32>
    %cst_47 = arith.constant 1.000000e+00 : f32
    %102 = vector.broadcast %cst_47 : f32 to vector<16x32xf32>
    %103 = arith.addf %102, %101 : vector<16x32xf32>
    %cst_48 = arith.constant 1.000000e+00 : f32
    %104 = vector.broadcast %cst_48 : f32 to vector<16x32xf32>
    %105 = arith.divf %104, %103 : vector<16x32xf32>
    %cst_49 = arith.constant 1.000000e+00 : f32
    %106 = vector.broadcast %cst_49 : f32 to vector<16x32xf32>
    %107 = arith.subf %106, %98 : vector<16x32xf32>
    %108 = arith.mulf %105, %107 : vector<16x32xf32>
    %109 = arith.addf %98, %108 : vector<16x32xf32>
    %110 = arith.mulf %109, %90 : vector<16x32xf32>
    %111 = vector.broadcast %22 : vector<16x1xf32> to vector<16x32xf32>
    %112 = arith.mulf %110, %111 : vector<16x32xf32>
    %113 = vector.broadcast %22 : vector<16x1xf32> to vector<16x16xf32>
    %114 = arith.mulf %89, %113 : vector<16x16xf32>
    %115 = arith.mulf %22, %58 : vector<16x1xf32>
    %116 = vector.broadcast %115 : vector<16x1xf32> to vector<16x32xf32>
    %117 = arith.mulf %110, %116 : vector<16x32xf32>
    %118 = arith.mulf %22, %58 : vector<16x1xf32>
    %119 = vector.broadcast %118 : vector<16x1xf32> to vector<16x16xf32>
    %120 = arith.mulf %89, %119 : vector<16x16xf32>
    %121 = vector.broadcast %55 : vector<1x1xf32> to vector<32x16xf32>
    %122 = arith.mulf %76, %121 : vector<32x16xf32>
    "tpu.trace_start"() <{level = 10 : i32, message = "lh,ld->hd"}> : () -> ()
    %cst_50 = arith.constant dense<0.000000e+00> : vector<32x16xf32>
    %123 = tpu.matmul %117, %3, %cst_50 {dimension_numbers = #tpu.dot_dimension_numbers<[0], [0], [1], [1], [0, 1, 1, 1], [], []>} : vector<16x32xf32>, vector<16x16xf32>, vector<32x16xf32> -> vector<32x16xf32>
    "tpu.trace_stop"() : () -> ()
    %124 = arith.subf %122, %123 : vector<32x16xf32>
    %c0_51 = arith.constant 0 : index
    %c0_52 = arith.constant 0 : index
    %c0_53 = arith.constant 0 : index
    %c0_54 = arith.constant 0 : index
    %125 = vector.load %arg8[%c0_51, %c0_52, %c0_53, %c0_54] : memref<1x1x32x16xf32, #tpu.memory_space<vmem>>, vector<1x1x32x16xf32>
    %126 = vector.shape_cast %125 : vector<1x1x32x16xf32> to vector<32x16xf32>
    %127 = vector.shape_cast %124 : vector<32x16xf32> to vector<1x1x32x16xf32>
    tpu.vector_store %arg8[%c0_51, %c0_52, %c0_53, %c0_54], %127 {strides = array<i32>} : memref<1x1x32x16xf32, #tpu.memory_space<vmem>>, vector<1x1x32x16xf32>,
    %128 = vector.broadcast %55 : vector<1x1xf32> to vector<16x32xf32>
    %129 = arith.mulf %78, %128 : vector<16x32xf32>
    "tpu.trace_start"() <{level = 10 : i32, message = "ld,lh->dh"}> : () -> ()
    %cst_55 = arith.constant dense<0.000000e+00> : vector<16x32xf32>
    %130 = tpu.matmul %120, %87, %cst_55 {dimension_numbers = #tpu.dot_dimension_numbers<[0], [0], [1], [1], [0, 1, 1, 1], [], []>} : vector<16x16xf32>, vector<16x32xf32>, vector<16x32xf32> -> vector<16x32xf32>
    "tpu.trace_stop"() : () -> ()
    %131 = arith.subf %129, %130 : vector<16x32xf32>
    %c0_56 = arith.constant 0 : index
    %c0_57 = arith.constant 0 : index
    %c0_58 = arith.constant 0 : index
    %c0_59 = arith.constant 0 : index
    %132 = vector.load %arg9[%c0_56, %c0_57, %c0_58, %c0_59] : memref<1x1x16x32xf32, #tpu.memory_space<vmem>>, vector<1x1x16x32xf32>
    %133 = vector.shape_cast %132 : vector<1x1x16x32xf32> to vector<16x32xf32>
    %134 = vector.shape_cast %131 : vector<16x32xf32> to vector<1x1x16x32xf32>
    tpu.vector_store %arg9[%c0_56, %c0_57, %c0_58, %c0_59], %134 {strides = array<i32>} : memref<1x1x16x32xf32, #tpu.memory_space<vmem>>, vector<1x1x16x32xf32>,
    %135 = arith.truncf %1 : vector<16x16xf32> to vector<16x16xbf16>
    %136 = arith.truncf %3 : vector<16x16xf32> to vector<16x16xbf16>
    %137 = arith.truncf %76 : vector<32x16xf32> to vector<32x16xbf16>
    %138 = arith.truncf %78 : vector<16x32xf32> to vector<16x32xbf16>
    "tpu.trace_start"() <{level = 10 : i32, message = "md,ld->ml"}> : () -> ()
    %cst_60 = arith.constant dense<0.000000e+00> : vector<16x16xf32>
    %139 = tpu.matmul %135, %136, %cst_60 {dimension_numbers = #tpu.dot_dimension_numbers<[1], [1], [0], [0], [0, 0, 1, 0], [], []>} : vector<16x16xbf16>, vector<16x16xbf16>, vector<16x16xf32> -> vector<16x16xf32>
    "tpu.trace_stop"() : () -> ()
    "tpu.trace_start"() <{level = 10 : i32, message = "md,hd->mh"}> : () -> ()
    %cst_61 = arith.constant dense<0.000000e+00> : vector<16x32xf32>
    %140 = tpu.matmul %135, %137, %cst_61 {dimension_numbers = #tpu.dot_dimension_numbers<[1], [1], [0], [0], [0, 0, 1, 0], [], []>} : vector<16x16xbf16>, vector<32x16xbf16>, vector<16x32xf32> -> vector<16x32xf32>
    "tpu.trace_stop"() : () -> ()
    %141 = vector.broadcast %53 : vector<16x1xf32> to vector<16x32xf32>
    %142 = arith.mulf %140, %141 : vector<16x32xf32>
    %143 = arith.mulf %139, %74 : vector<16x16xf32>
    %144 = arith.truncf %143 : vector<16x16xf32> to vector<16x16xbf16>
    %145 = arith.truncf %112 : vector<16x32xf32> to vector<16x32xbf16>
    "tpu.trace_start"() <{level = 10 : i32, message = "ml,lh->mh"}> : () -> ()
    %cst_62 = arith.constant dense<0.000000e+00> : vector<16x32xf32>
    %146 = tpu.matmul %144, %145, %cst_62 {dimension_numbers = #tpu.dot_dimension_numbers<[1], [0], [0], [1], [0, 0, 1, 1], [], []>} : vector<16x16xbf16>, vector<16x32xbf16>, vector<16x32xf32> -> vector<16x32xf32>
    "tpu.trace_stop"() : () -> ()
    %147 = arith.subf %142, %146 : vector<16x32xf32>
    %cst_63 = arith.constant 0.000000e+00 : f32
    %148 = vector.broadcast %cst_63 : f32 to vector<16x32xf32>
    %149 = arith.subf %148, %147 : vector<16x32xf32>
    %150 = math.exp %149 : vector<16x32xf32>
    %cst_64 = arith.constant 1.000000e+00 : f32
    %151 = vector.broadcast %cst_64 : f32 to vector<16x32xf32>
    %152 = arith.addf %151, %150 : vector<16x32xf32>
    %cst_65 = arith.constant 1.000000e+00 : f32
    %153 = vector.broadcast %cst_65 : f32 to vector<16x32xf32>
    %154 = arith.divf %153, %152 : vector<16x32xf32>
    %155 = arith.mulf %147, %154 : vector<16x32xf32>
    %156 = arith.truncf %155 : vector<16x32xf32> to vector<16x32xbf16>
    %157 = arith.truncf %87 : vector<16x32xf32> to vector<16x32xbf16>
    "tpu.trace_start"() <{level = 10 : i32, message = "mh,lh->ml"}> : () -> ()
    %cst_66 = arith.constant dense<0.000000e+00> : vector<16x16xf32>
    %158 = tpu.matmul %156, %157, %cst_66 {dimension_numbers = #tpu.dot_dimension_numbers<[1], [1], [0], [0], [0, 0, 1, 0], [], []>} : vector<16x32xbf16>, vector<16x32xbf16>, vector<16x16xf32> -> vector<16x16xf32>
    "tpu.trace_stop"() : () -> ()
    "tpu.trace_start"() <{level = 10 : i32, message = "mh,dh->md"}> : () -> ()
    %cst_67 = arith.constant dense<0.000000e+00> : vector<16x16xf32>
    %159 = tpu.matmul %156, %138, %cst_67 {dimension_numbers = #tpu.dot_dimension_numbers<[1], [1], [0], [0], [0, 0, 1, 0], [], []>} : vector<16x32xbf16>, vector<16x32xbf16>, vector<16x16xf32> -> vector<16x16xf32>
    "tpu.trace_stop"() : () -> ()
    %160 = vector.broadcast %53 : vector<16x1xf32> to vector<16x16xf32>
    %161 = arith.mulf %159, %160 : vector<16x16xf32>
    %162 = arith.mulf %158, %74 : vector<16x16xf32>
    %163 = arith.truncf %162 : vector<16x16xf32> to vector<16x16xbf16>
    %164 = arith.truncf %114 : vector<16x16xf32> to vector<16x16xbf16>
    "tpu.trace_start"() <{level = 10 : i32, message = "ml,ld->md"}> : () -> ()
    %cst_68 = arith.constant dense<0.000000e+00> : vector<16x16xf32>
    %165 = tpu.matmul %163, %164, %cst_68 {dimension_numbers = #tpu.dot_dimension_numbers<[1], [0], [0], [1], [0, 0, 1, 1], [], []>} : vector<16x16xbf16>, vector<16x16xbf16>, vector<16x16xf32> -> vector<16x16xf32>
    "tpu.trace_stop"() : () -> ()
    %166 = arith.subf %161, %165 : vector<16x16xf32>
    %167 = arith.truncf %166 : vector<16x16xf32> to vector<16x16xbf16>
    %c0_69 = arith.constant 0 : index
    %c0_70 = arith.constant 0 : index
    %c0_71 = arith.constant 0 : index
    %168 = vector.load %arg5[%c0_69, %c0_70, %c0_71] : memref<1x16x32xf32, #tpu.memory_space<vmem>>, vector<1x16x32xf32>
    %169 = vector.shape_cast %168 : vector<1x16x32xf32> to vector<16x32xf32>
    %170 = arith.truncf %169 : vector<16x32xf32> to vector<16x32xbf16>
    %cst_72 = arith.constant dense<0.000000e+00> : vector<16x32xf32>
    %171 = tpu.matmul %167, %170, %cst_72 {dimension_numbers = #tpu.dot_dimension_numbers<[1], [0], [0], [1], [0, 0, 1, 1], [], []>} : vector<16x16xbf16>, vector<16x32xbf16>, vector<16x32xf32> -> vector<16x32xf32>
    %c0_i32 = arith.constant 0 : i32
    %172 = arith.cmpi eq, %arg1, %c0_i32 : i32
    %173 = arith.extui %172 : i1 to i32
    %c0_i32_73 = arith.constant 0 : i32
    %174 = arith.cmpi ne, %173, %c0_i32_73 : i32
    scf.if %174 {
      %c0_76 = arith.constant 0 : index
      %c0_77 = arith.constant 0 : index
      %178 = vector.load %arg6[%c0_76, %c0_77] : memref<1x32xf32, #tpu.memory_space<vmem>>, vector<1x32xf32>
      %179 = vector.broadcast %178 : vector<1x32xf32> to vector<16x32xf32>
      %180 = arith.addf %171, %179 : vector<16x32xf32>
      %c0_78 = arith.constant 0 : index
      %c0_79 = arith.constant 0 : index
      %c0_80 = arith.constant 0 : index
      %181 = vector.load %arg7[%c0_78, %c0_79, %c0_80] : memref<1x16x32xf32, #tpu.memory_space<vmem>>, vector<1x16x32xf32>
      %182 = vector.shape_cast %181 : vector<1x16x32xf32> to vector<16x32xf32>
      %183 = vector.shape_cast %180 : vector<16x32xf32> to vector<1x16x32xf32>
      tpu.vector_store %arg7[%c0_78, %c0_79, %c0_80], %183 {strides = array<i32>} : memref<1x16x32xf32, #tpu.memory_space<vmem>>, vector<1x16x32xf32>,
    } else {
    }
    %c0_i32_74 = arith.constant 0 : i32
    %175 = arith.cmpi ne, %arg1, %c0_i32_74 : i32
    %176 = arith.extui %175 : i1 to i32
    %c0_i32_75 = arith.constant 0 : i32
    %177 = arith.cmpi ne, %176, %c0_i32_75 : i32
    scf.if %177 {
      %c0_76 = arith.constant 0 : index
      %c0_77 = arith.constant 0 : index
      %c0_78 = arith.constant 0 : index
      %178 = vector.load %arg7[%c0_76, %c0_77, %c0_78] : memref<1x16x32xf32, #tpu.memory_space<vmem>>, vector<1x16x32xf32>
      %179 = vector.shape_cast %178 : vector<1x16x32xf32> to vector<16x32xf32>
      %180 = arith.addf %179, %171 : vector<16x32xf32>
      %c0_79 = arith.constant 0 : index
      %c0_80 = arith.constant 0 : index
      %c0_81 = arith.constant 0 : index
      %181 = vector.load %arg7[%c0_79, %c0_80, %c0_81] : memref<1x16x32xf32, #tpu.memory_space<vmem>>, vector<1x16x32xf32>
      %182 = vector.shape_cast %181 : vector<1x16x32xf32> to vector<16x32xf32>
      %183 = vector.shape_cast %180 : vector<16x32xf32> to vector<1x16x32xf32>
      tpu.vector_store %arg7[%c0_79, %c0_80, %c0_81], %183 {strides = array<i32>} : memref<1x16x32xf32, #tpu.memory_space<vmem>>, vector<1x16x32xf32>,
    } else {
    }
    return
  }
  func.func @transform_0(%arg0: i32, %arg1: i32) -> (i32, i32, i32) {
    %c0_i32 = arith.constant 0 : i32
    %c0_i32_0 = arith.constant 0 : i32
    return %arg0, %c0_i32, %arg1 : i32, i32, i32
  }
  func.func @transform_1(%arg0: i32, %arg1: i32) -> (i32, i32, i32, i32) {
    %c0_i32 = arith.constant 0 : i32
    %c0_i32_0 = arith.constant 0 : i32
    %c0_i32_1 = arith.constant 0 : i32
    return %arg0, %arg1, %c0_i32, %c0_i32_0 : i32, i32, i32, i32
  }
  func.func @transform_2(%arg0: i32, %arg1: i32) -> (i32, i32, i32, i32) {
    %c0_i32 = arith.constant 0 : i32
    %c0_i32_0 = arith.constant 0 : i32
    %c0_i32_1 = arith.constant 0 : i32
    return %arg0, %arg1, %c0_i32, %c0_i32_0 : i32, i32, i32, i32
  }
  func.func @transform_3(%arg0: i32, %arg1: i32) -> (i32, i32, i32) {
    %c0_i32 = arith.constant 0 : i32
    %c0_i32_0 = arith.constant 0 : i32
    %c0_i32_1 = arith.constant 0 : i32
    return %arg1, %c0_i32, %c0_i32_0 : i32, i32, i32
  }
  func.func @transform_4(%arg0: i32, %arg1: i32) -> (i32, i32) {
    %c0_i32 = arith.constant 0 : i32
    %c0_i32_0 = arith.constant 0 : i32
    %c0_i32_1 = arith.constant 0 : i32
    return %c0_i32, %c0_i32_0 : i32, i32
  }
  func.func @transform_5(%arg0: i32, %arg1: i32) -> (i32, i32, i32) {
    %c0_i32 = arith.constant 0 : i32
    %c0_i32_0 = arith.constant 0 : i32
    %c0_i32_1 = arith.constant 0 : i32
    return %arg0, %c0_i32, %c0_i32_0 : i32, i32, i32
  }
  func.func @transform_6(%arg0: i32, %arg1: i32) -> (i32, i32, i32, i32) {
    %c0_i32 = arith.constant 0 : i32
    %c0_i32_0 = arith.constant 0 : i32
    %c0_i32_1 = arith.constant 0 : i32
    return %arg0, %arg1, %c0_i32, %c0_i32_0 : i32, i32, i32, i32
  }
  func.func @transform_7(%arg0: i32, %arg1: i32) -> (i32, i32, i32, i32) {
    %c0_i32 = arith.constant 0 : i32
    %c0_i32_0 = arith.constant 0 : i32
    %c0_i32_1 = arith.constant 0 : i32
    return %arg0, %arg1, %c0_i32, %c0_i32_0 : i32, i32, i32, i32
  }
}

</mosaic_0001>

<llo_original>
// kernel: multi_head_mlp_ttt_forward.2
$region0: #{multi_head_mlp_ttt_forward.2}
  #allocation0 [shape = 'u32[]', space=smem, size = 0x4, offset = 0x4, fixed_abs, tag = 'smem constant byte address 0x4 - core index']
  #allocation1 [shape = 'u32[144,128]{1,0:T(1,128)}', space=vmem, size = 0x12000, scoped, tag = 'internal scratch']
  #allocation2 [shape = 'f32[32,1024]{1,0:T(8,128)}', space=vmem, size = 0x20000, scoped, tag = 'scratch operand']
  %s0 = inlined_call_operand.vmem [shape: f32[32,32], index: 0, kind: input, shape index: {}]
  %s1 = inlined_call_operand.vmem [shape: f32[32,1024], index: 1, kind: input, shape index: {}]
  %s2 = inlined_call_operand.vmem [shape: f32[1,1024], index: 2, kind: input, shape index: {}]
  %s3 = inlined_call_operand.vmem [shape: f32[32,1024], index: 3, kind: output, shape index: {}]
  %s4 = sld [smem:[#allocation0]]
  $region30: #{multi_head_mlp_ttt_forward.2} parent=0
    _
  %s6 = ssub.s32 1, %s4
  %s7 = scalar_select 0, %s6, %s4
  // Predicated region
  $region2: #{multi_head_mlp_ttt_forward.2} parent=0 // pred_check
    _
  $region3: #{multi_head_mlp_ttt_forward.2} parent=0 // pred_check_branch
    %9 = sbr.rel (0) target = $region5
  $region4: #{multi_head_mlp_ttt_forward.2} parent=0 // pred_region
    _
  $region5: #{multi_head_mlp_ttt_forward.2} parent=0 // pred_fallthru
    _
  // Predicated region
  $region6: #{multi_head_mlp_ttt_forward.2} parent=0 // pred_check
    _
  $region7: #{multi_head_mlp_ttt_forward.2} parent=0 // pred_check_branch
    %11 = sbr.rel (0) target = $region9
  $region8: #{multi_head_mlp_ttt_forward.2} parent=0 // pred_region
    _
  $region9: #{multi_head_mlp_ttt_forward.2} parent=0 // pred_fallthru
    _
  // Predicated region
  $region10: #{multi_head_mlp_ttt_forward.2} parent=0 // pred_check
    _
  $region11: #{multi_head_mlp_ttt_forward.2} parent=0 // pred_check_branch
    %13 = sbr.rel (0) target = $region13
  $region12: #{multi_head_mlp_ttt_forward.2} parent=0 // pred_region
    _
  $region13: #{multi_head_mlp_ttt_forward.2} parent=0 // pred_fallthru
    _
  %p14 = scmp.eq.s32.totalorder 0, 0
  // Predicated region
  $region14: #{multi_head_mlp_ttt_forward.2} parent=0 // pred_check
    %p15 = pneg %p14
  $region15: #{multi_head_mlp_ttt_forward.2} parent=0 // pred_check_branch
    %17 = sbr.rel (%p15) target = $region17
  $region16: #{multi_head_mlp_ttt_forward.2} parent=0 // pred_region
    %18 = vst [vmem:[#allocation2] sm:$0xff] 0.0
    %19 = vst [vmem:[#allocation2 + $0x8] sm:$0xff] 0.0
    %20 = vst [vmem:[#allocation2 + $0x10] sm:$0xff] 0.0
    %21 = vst [vmem:[#allocation2 + $0x18] sm:$0xff] 0.0
    %22 = vst [vmem:[#allocation2 + $0x20] sm:$0xff] 0.0
    %23 = vst [vmem:[#allocation2 + $0x28] sm:$0xff] 0.0
    %24 = vst [vmem:[#allocation2 + $0x30] sm:$0xff] 0.0
    %25 = vst [vmem:[#allocation2 + $0x38] sm:$0xff] 0.0
    %26 = vst [vmem:[#allocation2 + $0x40] sm:$0xff] 0.0
    %27 = vst [vmem:[#allocation2 + $0x48] sm:$0xff] 0.0
    %28 = vst [vmem:[#allocation2 + $0x50] sm:$0xff] 0.0
    %29 = vst [vmem:[#allocation2 + $0x58] sm:$0xff] 0.0
    %30 = vst [vmem:[#allocation2 + $0x60] sm:$0xff] 0.0
    %31 = vst [vmem:[#allocation2 + $0x68] sm:$0xff] 0.0
    %32 = vst [vmem:[#allocation2 + $0x70] sm:$0xff] 0.0
    %33 = vst [vmem:[#allocation2 + $0x78] sm:$0xff] 0.0
    %34 = vst [vmem:[#allocation2 + $0x80] sm:$0xff] 0.0
    %35 = vst [vmem:[#allocation2 + $0x88] sm:$0xff] 0.0
    %36 = vst [vmem:[#allocation2 + $0x90] sm:$0xff] 0.0
    %37 = vst [vmem:[#allocation2 + $0x98] sm:$0xff] 0.0
    %38 = vst [vmem:[#allocation2 + $0xa0] sm:$0xff] 0.0
    %39 = vst [vmem:[#allocation2 + $0xa8] sm:$0xff] 0.0
    %40 = vst [vmem:[#allocation2 + $0xb0] sm:$0xff] 0.0
    %41 = vst [vmem:[#allocation2 + $0xb8] sm:$0xff] 0.0
    %42 = vst [vmem:[#allocation2 + $0xc0] sm:$0xff] 0.0
    %43 = vst [vmem:[#allocation2 + $0xc8] sm:$0xff] 0.0
    %44 = vst [vmem:[#allocation2 + $0xd0] sm:$0xff] 0.0
    %45 = vst [vmem:[#allocation2 + $0xd8] sm:$0xff] 0.0
    %46 = vst [vmem:[#allocation2 + $0xe0] sm:$0xff] 0.0
    %47 = vst [vmem:[#allocation2 + $0xe8] sm:$0xff] 0.0
    %48 = vst [vmem:[#allocation2 + $0xf0] sm:$0xff] 0.0
    %49 = vst [vmem:[#allocation2 + $0xf8] sm:$0xff] 0.0
  $region17: #{multi_head_mlp_ttt_forward.2} parent=0 // pred_fallthru
    _
  %v50 = vld [vmem:[#allocation2] sm:$0xff]
  %v51 = vld [vmem:[#allocation2 + $0x8] sm:$0xff]
  %v52 = vld [vmem:[#allocation2 + $0x10] sm:$0xff]
  %v53 = vld [vmem:[#allocation2 + $0x18] sm:$0xff]
  %v54 = vld [vmem:[#allocation2 + $0x20] sm:$0xff]
  %v55 = vld [vmem:[#allocation2 + $0x28] sm:$0xff]
  %v56 = vld [vmem:[#allocation2 + $0x30] sm:$0xff]
  %v57 = vld [vmem:[#allocation2 + $0x38] sm:$0xff]
  %v58 = vld [vmem:[#allocation2 + $0x40] sm:$0xff]
  %v59 = vld [vmem:[#allocation2 + $0x48] sm:$0xff]
  %v60 = vld [vmem:[#allocation2 + $0x50] sm:$0xff]
  %v61 = vld [vmem:[#allocation2 + $0x58] sm:$0xff]
  %v62 = vld [vmem:[#allocation2 + $0x60] sm:$0xff]
  %v63 = vld [vmem:[#allocation2 + $0x68] sm:$0xff]
  %v64 = vld [vmem:[#allocation2 + $0x70] sm:$0xff]
  %v65 = vld [vmem:[#allocation2 + $0x78] sm:$0xff]
  %v66 = vld [vmem:[#allocation2 + $0x80] sm:$0xff]
  %v67 = vld [vmem:[#allocation2 + $0x88] sm:$0xff]
  %v68 = vld [vmem:[#allocation2 + $0x90] sm:$0xff]
  %v69 = vld [vmem:[#allocation2 + $0x98] sm:$0xff]
  %v70 = vld [vmem:[#allocation2 + $0xa0] sm:$0xff]
  %v71 = vld [vmem:[#allocation2 + $0xa8] sm:$0xff]
  %v72 = vld [vmem:[#allocation2 + $0xb0] sm:$0xff]
  %v73 = vld [vmem:[#allocation2 + $0xb8] sm:$0xff]
  %v74 = vld [vmem:[#allocation2 + $0xc0] sm:$0xff]
  %v75 = vld [vmem:[#allocation2 + $0xc8] sm:$0xff]
  %v76 = vld [vmem:[#allocation2 + $0xd0] sm:$0xff]
  %v77 = vld [vmem:[#allocation2 + $0xd8] sm:$0xff]
  %v78 = vld [vmem:[#allocation2 + $0xe0] sm:$0xff]
  %v79 = vld [vmem:[#allocation2 + $0xe8] sm:$0xff]
  %v80 = vld [vmem:[#allocation2 + $0xf0] sm:$0xff]
  %v81 = vld [vmem:[#allocation2 + $0xf8] sm:$0xff]
  %v82 = vld [vmem:[%s0] sm:$0xff]
  %v83 = vld [vmem:[%s0 + $0x8] sm:$0xff]
  %v84 = vld [vmem:[%s0 + $0x10] sm:$0xff]
  %v85 = vld [vmem:[%s0 + $0x18] sm:$0xff]
  %v86 = vld [vmem:[%s1] sm:$0xff]
  %v87 = vld [vmem:[%s1 + $0x8] sm:$0xff]
  %v88 = vld [vmem:[%s1 + $0x10] sm:$0xff]
  %v89 = vld [vmem:[%s1 + $0x18] sm:$0xff]
  %v90 = vld [vmem:[%s1 + $0x20] sm:$0xff]
  %v91 = vld [vmem:[%s1 + $0x28] sm:$0xff]
  %v92 = vld [vmem:[%s1 + $0x30] sm:$0xff]
  %v93 = vld [vmem:[%s1 + $0x38] sm:$0xff]
  %v94 = vld [vmem:[%s1 + $0x40] sm:$0xff]
  %v95 = vld [vmem:[%s1 + $0x48] sm:$0xff]
  %v96 = vld [vmem:[%s1 + $0x50] sm:$0xff]
  %v97 = vld [vmem:[%s1 + $0x58] sm:$0xff]
  %v98 = vld [vmem:[%s1 + $0x60] sm:$0xff]
  %v99 = vld [vmem:[%s1 + $0x68] sm:$0xff]
  %v100 = vld [vmem:[%s1 + $0x70] sm:$0xff]
  %v101 = vld [vmem:[%s1 + $0x78] sm:$0xff]
  %v102 = vld [vmem:[%s1 + $0x80] sm:$0xff]
  %v103 = vld [vmem:[%s1 + $0x88] sm:$0xff]
  %v104 = vld [vmem:[%s1 + $0x90] sm:$0xff]
  %v105 = vld [vmem:[%s1 + $0x98] sm:$0xff]
  %v106 = vld [vmem:[%s1 + $0xa0] sm:$0xff]
  %v107 = vld [vmem:[%s1 + $0xa8] sm:$0xff]
  %v108 = vld [vmem:[%s1 + $0xb0] sm:$0xff]
  %v109 = vld [vmem:[%s1 + $0xb8] sm:$0xff]
  %v110 = vld [vmem:[%s1 + $0xc0] sm:$0xff]
  %v111 = vld [vmem:[%s1 + $0xc8] sm:$0xff]
  %v112 = vld [vmem:[%s1 + $0xd0] sm:$0xff]
  %v113 = vld [vmem:[%s1 + $0xd8] sm:$0xff]
  %v114 = vld [vmem:[%s1 + $0xe0] sm:$0xff]
  %v115 = vld [vmem:[%s1 + $0xe8] sm:$0xff]
  %v116 = vld [vmem:[%s1 + $0xf0] sm:$0xff]
  %v117 = vld [vmem:[%s1 + $0xf8] sm:$0xff]
  %vm118 = vcmask 261120
  %v120 = vsel %vm118, %v82, 0
  %v123 = vsel %vm118, %v83, 0
  %v126 = vsel %vm118, %v84, 0
  %v129 = vsel %vm118, %v85, 0
  %131 = vmatprep.subr.mxu0 0.0
  %132 = vmatpush1.msra.mxu0 0.0
  %133 = vmatprep.subr.mxu0 0.0
  %134 = vmatpush1.msra.mxu0 0.0
  %135 = vmatprep.subr.mxu0 0.0
  %136 = vmatpush1.msra.mxu0 0.0
  %137 = vmatprep.subr.mxu0 0.0
  %138 = vmatpush1.msra.mxu0 0.0
  %139 = vmatprep.subr.mxu0 0.0
  %140 = vmatpush1.msra.mxu0 0.0
  %141 = vmatprep.subr.mxu0 0.0
  %142 = vmatpush1.msra.mxu0 0.0
  %143 = vmatprep.subr.mxu0 0.0
  %144 = vmatpush1.msra.mxu0 0.0
  %145 = vmatprep.subr.mxu0 0.0
  %146 = vmatpush1.msra.mxu0 0.0
  %147 = vmatprep.subr.mxu0 0.0
  %148 = vmatpush1.msra.mxu0 0.0
  %149 = vmatprep.subr.mxu0 0.0
  %150 = vmatpush1.msra.mxu0 0.0
  %151 = vmatprep.subr.mxu0 0.0
  %152 = vmatpush1.msra.mxu0 0.0
  %153 = vmatprep.subr.mxu0 0.0
  %154 = vmatpush1.msra.mxu0 0.0
  %155 = vmatprep.subr.mxu0 %v111
  %156 = vmatpush1.msra.mxu0 %v110
  %157 = vmatprep.subr.mxu0 %v103
  %158 = vmatpush1.msra.mxu0 %v102
  %159 = vmatprep.subr.mxu0 %v95
  %160 = vmatpush1.msra.mxu0 %v94
  %161 = vmatprep.subr.mxu0 %v87
  %162 = vmatpush1.msra.mxu0 %v86
  %163 = vmatprep.subr.mxu0 0.0
  %164 = vmatpush2.msra.mxu0 0.0
  %165 = vmatprep.subr.mxu0 0.0
  %166 = vmatpush2.msra.mxu0 0.0
  %167 = vmatprep.subr.mxu0 0.0
  %168 = vmatpush2.msra.mxu0 0.0
  %169 = vmatprep.subr.mxu0 0.0
  %170 = vmatpush2.msra.mxu0 0.0
  %171 = vmatprep.subr.mxu0 0.0
  %172 = vmatpush2.msra.mxu0 0.0
  %173 = vmatprep.subr.mxu0 0.0
  %174 = vmatpush2.msra.mxu0 0.0
  %175 = vmatprep.subr.mxu0 0.0
  %176 = vmatpush2.msra.mxu0 0.0
  %177 = vmatprep.subr.mxu0 0.0
  %178 = vmatpush2.msra.mxu0 0.0
  %179 = vmatprep.subr.mxu0 0.0
  %180 = vmatpush2.msra.mxu0 0.0
  %181 = vmatprep.subr.mxu0 0.0
  %182 = vmatpush2.msra.mxu0 0.0
  %183 = vmatprep.subr.mxu0 0.0
  %184 = vmatpush2.msra.mxu0 0.0
  %185 = vmatprep.subr.mxu0 0.0
  %186 = vmatpush2.msra.mxu0 0.0
  %187 = vmatprep.subr.mxu0 0.0
  %188 = vmatpush2.msra.mxu0 0.0
  %189 = vmatprep.subr.mxu0 0.0
  %190 = vmatpush2.msra.mxu0 0.0
  %191 = vmatprep.subr.mxu0 0.0
  %192 = vmatpush2.msra.mxu0 0.0
  %193 = vmatprep.subr.mxu0 0.0
  %194 = vmatpush2.msra.mxu0 0.0
  %195 = vmatprep.mubr.f32.mxu0 0.0
  %196 = vmatmul.mubr.f32.gmra.mxu0 %v120
  %v197 = vpop.f32.mrf.mxu0
  %v198 = vadd.f32 0.0, %v197
  %v199 = vpop.f32.mrf.mxu0
  %v200 = vadd.f32 0.0, %v199
  %201 = vmatprep.mubr.f32.mxu0 0.0
  %202 = vmatmul.mubr.f32.gmra.mxu0 %v123
  %v203 = vpop.f32.mrf.mxu0
  %v204 = vadd.f32 0.0, %v203
  %v205 = vpop.f32.mrf.mxu0
  %v206 = vadd.f32 0.0, %v205
  %207 = vmatprep.mubr.f32.mxu0 0.0
  %208 = vmatmul.mubr.f32.gmra.mxu0 %v126
  %v209 = vpop.f32.mrf.mxu0
  %v210 = vadd.f32 0.0, %v209
  %v211 = vpop.f32.mrf.mxu0
  %v212 = vadd.f32 0.0, %v211
  %213 = vmatprep.mubr.f32.mxu0 0.0
  %214 = vmatmul.mubr.f32.gmra.mxu0 %v129
  %v215 = vpop.f32.mrf.mxu0
  %v216 = vadd.f32 0.0, %v215
  %v217 = vpop.f32.mrf.mxu0
  %v218 = vadd.f32 0.0, %v217
  %219 = vdwg.mxu0
  %220 = vmatprep.subr.mxu0 0.0
  %221 = vmatpush1.msra.mxu0 0.0
  %222 = vmatprep.subr.mxu0 0.0
  %223 = vmatpush1.msra.mxu0 0.0
  %224 = vmatprep.subr.mxu0 0.0
  %225 = vmatpush1.msra.mxu0 0.0
  %226 = vmatprep.subr.mxu0 0.0
  %227 = vmatpush1.msra.mxu0 0.0
  %228 = vmatprep.subr.mxu0 0.0
  %229 = vmatpush1.msra.mxu0 0.0
  %230 = vmatprep.subr.mxu0 0.0
  %231 = vmatpush1.msra.mxu0 0.0
  %232 = vmatprep.subr.mxu0 0.0
  %233 = vmatpush1.msra.mxu0 0.0
  %234 = vmatprep.subr.mxu0 0.0
  %235 = vmatpush1.msra.mxu0 0.0
  %236 = vmatprep.subr.mxu0 0.0
  %237 = vmatpush1.msra.mxu0 0.0
  %238 = vmatprep.subr.mxu0 0.0
  %239 = vmatpush1.msra.mxu0 0.0
  %240 = vmatprep.subr.mxu0 0.0
  %241 = vmatpush1.msra.mxu0 0.0
  %242 = vmatprep.subr.mxu0 0.0
  %243 = vmatpush1.msra.mxu0 0.0
  %244 = vmatprep.subr.mxu0 %v113
  %245 = vmatpush1.msra.mxu0 %v112
  %246 = vmatprep.subr.mxu0 %v105
  %247 = vmatpush1.msra.mxu0 %v104
  %248 = vmatprep.subr.mxu0 %v97
  %249 = vmatpush1.msra.mxu0 %v96
  %250 = vmatprep.subr.mxu0 %v89
  %251 = vmatpush1.msra.mxu0 %v88
  %252 = vmatprep.subr.mxu0 0.0
  %253 = vmatpush2.msra.mxu0 0.0
  %254 = vmatprep.subr.mxu0 0.0
  %255 = vmatpush2.msra.mxu0 0.0
  %256 = vmatprep.subr.mxu0 0.0
  %257 = vmatpush2.msra.mxu0 0.0
  %258 = vmatprep.subr.mxu0 0.0
  %259 = vmatpush2.msra.mxu0 0.0
  %260 = vmatprep.subr.mxu0 0.0
  %261 = vmatpush2.msra.mxu0 0.0
  %262 = vmatprep.subr.mxu0 0.0
  %263 = vmatpush2.msra.mxu0 0.0
  %264 = vmatprep.subr.mxu0 0.0
  %265 = vmatpush2.msra.mxu0 0.0
  %266 = vmatprep.subr.mxu0 0.0
  %267 = vmatpush2.msra.mxu0 0.0
  %268 = vmatprep.subr.mxu0 0.0
  %269 = vmatpush2.msra.mxu0 0.0
  %270 = vmatprep.subr.mxu0 0.0
  %271 = vmatpush2.msra.mxu0 0.0
  %272 = vmatprep.subr.mxu0 0.0
  %273 = vmatpush2.msra.mxu0 0.0
  %274 = vmatprep.subr.mxu0 0.0
  %275 = vmatpush2.msra.mxu0 0.0
  %276 = vmatprep.subr.mxu0 0.0
  %277 = vmatpush2.msra.mxu0 0.0
  %278 = vmatprep.subr.mxu0 0.0
  %279 = vmatpush2.msra.mxu0 0.0
  %280 = vmatprep.subr.mxu0 0.0
  %281 = vmatpush2.msra.mxu0 0.0
  %282 = vmatprep.subr.mxu0 0.0
  %283 = vmatpush2.msra.mxu0 0.0
  %284 = vmatprep.mubr.f32.mxu0 0.0
  %285 = vmatmul.mubr.f32.gmra.mxu0 %v120
  %v286 = vpop.f32.mrf.mxu0
  %v287 = vadd.f32 0.0, %v286
  %v288 = vpop.f32.mrf.mxu0
  %v289 = vadd.f32 0.0, %v288
  %290 = vmatprep.mubr.f32.mxu0 0.0
  %291 = vmatmul.mubr.f32.gmra.mxu0 %v123
  %v292 = vpop.f32.mrf.mxu0
  %v293 = vadd.f32 0.0, %v292
  %v294 = vpop.f32.mrf.mxu0
  %v295 = vadd.f32 0.0, %v294
  %296 = vmatprep.mubr.f32.mxu0 0.0
  %297 = vmatmul.mubr.f32.gmra.mxu0 %v126
  %v298 = vpop.f32.mrf.mxu0
  %v299 = vadd.f32 0.0, %v298
  %v300 = vpop.f32.mrf.mxu0
  %v301 = vadd.f32 0.0, %v300
  %302 = vmatprep.mubr.f32.mxu0 0.0
  %303 = vmatmul.mubr.f32.gmra.mxu0 %v129
  %v304 = vpop.f32.mrf.mxu0
  %v305 = vadd.f32 0.0, %v304
  %v306 = vpop.f32.mrf.mxu0
  %v307 = vadd.f32 0.0, %v306
  %308 = vdwg.mxu0
  %309 = vmatprep.subr.mxu0 0.0
  %310 = vmatpush1.msra.mxu0 0.0
  %311 = vmatprep.subr.mxu0 0.0
  %312 = vmatpush1.msra.mxu0 0.0
  %313 = vmatprep.subr.mxu0 0.0
  %314 = vmatpush1.msra.mxu0 0.0
  %315 = vmatprep.subr.mxu0 0.0
  %316 = vmatpush1.msra.mxu0 0.0
  %317 = vmatprep.subr.mxu0 0.0
  %318 = vmatpush1.msra.mxu0 0.0
  %319 = vmatprep.subr.mxu0 0.0
  %320 = vmatpush1.msra.mxu0 0.0
  %321 = vmatprep.subr.mxu0 0.0
  %322 = vmatpush1.msra.mxu0 0.0
  %323 = vmatprep.subr.mxu0 0.0
  %324 = vmatpush1.msra.mxu0 0.0
  %325 = vmatprep.subr.mxu0 0.0
  %326 = vmatpush1.msra.mxu0 0.0
  %327 = vmatprep.subr.mxu0 0.0
  %328 = vmatpush1.msra.mxu0 0.0
  %329 = vmatprep.subr.mxu0 0.0
  %330 = vmatpush1.msra.mxu0 0.0
  %331 = vmatprep.subr.mxu0 0.0
  %332 = vmatpush1.msra.mxu0 0.0
  %333 = vmatprep.subr.mxu0 %v115
  %334 = vmatpush1.msra.mxu0 %v114
  %335 = vmatprep.subr.mxu0 %v107
  %336 = vmatpush1.msra.mxu0 %v106
  %337 = vmatprep.subr.mxu0 %v99
  %338 = vmatpush1.msra.mxu0 %v98
  %339 = vmatprep.subr.mxu0 %v91
  %340 = vmatpush1.msra.mxu0 %v90
  %341 = vmatprep.subr.mxu0 0.0
  %342 = vmatpush2.msra.mxu0 0.0
  %343 = vmatprep.subr.mxu0 0.0
  %344 = vmatpush2.msra.mxu0 0.0
  %345 = vmatprep.subr.mxu0 0.0
  %346 = vmatpush2.msra.mxu0 0.0
  %347 = vmatprep.subr.mxu0 0.0
  %348 = vmatpush2.msra.mxu0 0.0
  %349 = vmatprep.subr.mxu0 0.0
  %350 = vmatpush2.msra.mxu0 0.0
  %351 = vmatprep.subr.mxu0 0.0
  %352 = vmatpush2.msra.mxu0 0.0
  %353 = vmatprep.subr.mxu0 0.0
  %354 = vmatpush2.msra.mxu0 0.0
  %355 = vmatprep.subr.mxu0 0.0
  %356 = vmatpush2.msra.mxu0 0.0
  %357 = vmatprep.subr.mxu0 0.0
  %358 = vmatpush2.msra.mxu0 0.0
  %359 = vmatprep.subr.mxu0 0.0
  %360 = vmatpush2.msra.mxu0 0.0
  %361 = vmatprep.subr.mxu0 0.0
  %362 = vmatpush2.msra.mxu0 0.0
  %363 = vmatprep.subr.mxu0 0.0
  %364 = vmatpush2.msra.mxu0 0.0
  %365 = vmatprep.subr.mxu0 0.0
  %366 = vmatpush2.msra.mxu0 0.0
  %367 = vmatprep.subr.mxu0 0.0
  %368 = vmatpush2.msra.mxu0 0.0
  %369 = vmatprep.subr.mxu0 0.0
  %370 = vmatpush2.msra.mxu0 0.0
  %371 = vmatprep.subr.mxu0 0.0
  %372 = vmatpush2.msra.mxu0 0.0
  %373 = vmatprep.mubr.f32.mxu0 0.0
  %374 = vmatmul.mubr.f32.gmra.mxu0 %v120
  %v375 = vpop.f32.mrf.mxu0
  %v376 = vadd.f32 0.0, %v375
  %v377 = vpop.f32.mrf.mxu0
  %v378 = vadd.f32 0.0, %v377
  %379 = vmatprep.mubr.f32.mxu0 0.0
  %380 = vmatmul.mubr.f32.gmra.mxu0 %v123
  %v381 = vpop.f32.mrf.mxu0
  %v382 = vadd.f32 0.0, %v381
  %v383 = vpop.f32.mrf.mxu0
  %v384 = vadd.f32 0.0, %v383
  %385 = vmatprep.mubr.f32.mxu0 0.0
  %386 = vmatmul.mubr.f32.gmra.mxu0 %v126
  %v387 = vpop.f32.mrf.mxu0
  %v388 = vadd.f32 0.0, %v387
  %v389 = vpop.f32.mrf.mxu0
  %v390 = vadd.f32 0.0, %v389
  %391 = vmatprep.mubr.f32.mxu0 0.0
  %392 = vmatmul.mubr.f32.gmra.mxu0 %v129
  %v393 = vpop.f32.mrf.mxu0
  %v394 = vadd.f32 0.0, %v393
  %v395 = vpop.f32.mrf.mxu0
  %v396 = vadd.f32 0.0, %v395
  %397 = vdwg.mxu0
  %398 = vmatprep.subr.mxu0 0.0
  %399 = vmatpush1.msra.mxu0 0.0
  %400 = vmatprep.subr.mxu0 0.0
  %401 = vmatpush1.msra.mxu0 0.0
  %402 = vmatprep.subr.mxu0 0.0
  %403 = vmatpush1.msra.mxu0 0.0
  %404 = vmatprep.subr.mxu0 0.0
  %405 = vmatpush1.msra.mxu0 0.0
  %406 = vmatprep.subr.mxu0 0.0
  %407 = vmatpush1.msra.mxu0 0.0
  %408 = vmatprep.subr.mxu0 0.0
  %409 = vmatpush1.msra.mxu0 0.0
  %410 = vmatprep.subr.mxu0 0.0
  %411 = vmatpush1.msra.mxu0 0.0
  %412 = vmatprep.subr.mxu0 0.0
  %413 = vmatpush1.msra.mxu0 0.0
  %414 = vmatprep.subr.mxu0 0.0
  %415 = vmatpush1.msra.mxu0 0.0
  %416 = vmatprep.subr.mxu0 0.0
  %417 = vmatpush1.msra.mxu0 0.0
  %418 = vmatprep.subr.mxu0 0.0
  %419 = vmatpush1.msra.mxu0 0.0
  %420 = vmatprep.subr.mxu0 0.0
  %421 = vmatpush1.msra.mxu0 0.0
  %422 = vmatprep.subr.mxu0 %v117
  %423 = vmatpush1.msra.mxu0 %v116
  %424 = vmatprep.subr.mxu0 %v109
  %425 = vmatpush1.msra.mxu0 %v108
  %426 = vmatprep.subr.mxu0 %v101
  %427 = vmatpush1.msra.mxu0 %v100
  %428 = vmatprep.subr.mxu0 %v93
  %429 = vmatpush1.msra.mxu0 %v92
  %430 = vmatprep.subr.mxu0 0.0
  %431 = vmatpush2.msra.mxu0 0.0
  %432 = vmatprep.subr.mxu0 0.0
  %433 = vmatpush2.msra.mxu0 0.0
  %434 = vmatprep.subr.mxu0 0.0
  %435 = vmatpush2.msra.mxu0 0.0
  %436 = vmatprep.subr.mxu0 0.0
  %437 = vmatpush2.msra.mxu0 0.0
  %438 = vmatprep.subr.mxu0 0.0
  %439 = vmatpush2.msra.mxu0 0.0
  %440 = vmatprep.subr.mxu0 0.0
  %441 = vmatpush2.msra.mxu0 0.0
  %442 = vmatprep.subr.mxu0 0.0
  %443 = vmatpush2.msra.mxu0 0.0
  %444 = vmatprep.subr.mxu0 0.0
  %445 = vmatpush2.msra.mxu0 0.0
  %446 = vmatprep.subr.mxu0 0.0
  %447 = vmatpush2.msra.mxu0 0.0
  %448 = vmatprep.subr.mxu0 0.0
  %449 = vmatpush2.msra.mxu0 0.0
  %450 = vmatprep.subr.mxu0 0.0
  %451 = vmatpush2.msra.mxu0 0.0
  %452 = vmatprep.subr.mxu0 0.0
  %453 = vmatpush2.msra.mxu0 0.0
  %454 = vmatprep.subr.mxu0 0.0
  %455 = vmatpush2.msra.mxu0 0.0
  %456 = vmatprep.subr.mxu0 0.0
  %457 = vmatpush2.msra.mxu0 0.0
  %458 = vmatprep.subr.mxu0 0.0
  %459 = vmatpush2.msra.mxu0 0.0
  %460 = vmatprep.subr.mxu0 0.0
  %461 = vmatpush2.msra.mxu0 0.0
  %462 = vmatprep.mubr.f32.mxu0 0.0
  %463 = vmatmul.mubr.f32.gmra.mxu0 %v120
  %v464 = vpop.f32.mrf.mxu0
  %v465 = vadd.f32 0.0, %v464
  %v466 = vpop.f32.mrf.mxu0
  %v467 = vadd.f32 0.0, %v466
  %468 = vmatprep.mubr.f32.mxu0 0.0
  %469 = vmatmul.mubr.f32.gmra.mxu0 %v123
  %v470 = vpop.f32.mrf.mxu0
  %v471 = vadd.f32 0.0, %v470
  %v472 = vpop.f32.mrf.mxu0
  %v473 = vadd.f32 0.0, %v472
  %474 = vmatprep.mubr.f32.mxu0 0.0
  %475 = vmatmul.mubr.f32.gmra.mxu0 %v126
  %v476 = vpop.f32.mrf.mxu0
  %v477 = vadd.f32 0.0, %v476
  %v478 = vpop.f32.mrf.mxu0
  %v479 = vadd.f32 0.0, %v478
  %480 = vmatprep.mubr.f32.mxu0 0.0
  %481 = vmatmul.mubr.f32.gmra.mxu0 %v129
  %v482 = vpop.f32.mrf.mxu0
  %v483 = vadd.f32 0.0, %v482
  %v484 = vpop.f32.mrf.mxu0
  %v485 = vadd.f32 0.0, %v484
  %486 = vdwg.mxu0
  %v487 = vadd.f32 %v50, %v198
  %v488 = vadd.f32 %v51, %v200
  %v489 = vadd.f32 %v52, %v287
  %v490 = vadd.f32 %v53, %v289
  %v491 = vadd.f32 %v54, %v376
  %v492 = vadd.f32 %v55, %v378
  %v493 = vadd.f32 %v56, %v465
  %v494 = vadd.f32 %v57, %v467
  %v495 = vadd.f32 %v58, %v204
  %v496 = vadd.f32 %v59, %v206
  %v497 = vadd.f32 %v60, %v293
  %v498 = vadd.f32 %v61, %v295
  %v499 = vadd.f32 %v62, %v382
  %v500 = vadd.f32 %v63, %v384
  %v501 = vadd.f32 %v64, %v471
  %v502 = vadd.f32 %v65, %v473
  %v503 = vadd.f32 %v66, %v210
  %v504 = vadd.f32 %v67, %v212
  %v505 = vadd.f32 %v68, %v299
  %v506 = vadd.f32 %v69, %v301
  %v507 = vadd.f32 %v70, %v388
  %v508 = vadd.f32 %v71, %v390
  %v509 = vadd.f32 %v72, %v477
  %v510 = vadd.f32 %v73, %v479
  %v511 = vadd.f32 %v74, %v216
  %v512 = vadd.f32 %v75, %v218
  %v513 = vadd.f32 %v76, %v305
  %v514 = vadd.f32 %v77, %v307
  %v515 = vadd.f32 %v78, %v394
  %v516 = vadd.f32 %v79, %v396
  %v517 = vadd.f32 %v80, %v483
  %v518 = vadd.f32 %v81, %v485
  %519 = vst [vmem:[#allocation2] sm:$0xff] %v487
  %520 = vst [vmem:[#allocation2 + $0x8] sm:$0xff] %v488
  %521 = vst [vmem:[#allocation2 + $0x10] sm:$0xff] %v489
  %522 = vst [vmem:[#allocation2 + $0x18] sm:$0xff] %v490
  %523 = vst [vmem:[#allocation2 + $0x20] sm:$0xff] %v491
  %524 = vst [vmem:[#allocation2 + $0x28] sm:$0xff] %v492
  %525 = vst [vmem:[#allocation2 + $0x30] sm:$0xff] %v493
  %526 = vst [vmem:[#allocation2 + $0x38] sm:$0xff] %v494
  %527 = vst [vmem:[#allocation2 + $0x40] sm:$0xff] %v495
  %528 = vst [vmem:[#allocation2 + $0x48] sm:$0xff] %v496
  %529 = vst [vmem:[#allocation2 + $0x50] sm:$0xff] %v497
  %530 = vst [vmem:[#allocation2 + $0x58] sm:$0xff] %v498
  %531 = vst [vmem:[#allocation2 + $0x60] sm:$0xff] %v499
  %532 = vst [vmem:[#allocation2 + $0x68] sm:$0xff] %v500
  %533 = vst [vmem:[#allocation2 + $0x70] sm:$0xff] %v501
  %534 = vst [vmem:[#allocation2 + $0x78] sm:$0xff] %v502
  %535 = vst [vmem:[#allocation2 + $0x80] sm:$0xff] %v503
  %536 = vst [vmem:[#allocation2 + $0x88] sm:$0xff] %v504
  %537 = vst [vmem:[#allocation2 + $0x90] sm:$0xff] %v505
  %538 = vst [vmem:[#allocation2 + $0x98] sm:$0xff] %v506
  %539 = vst [vmem:[#allocation2 + $0xa0] sm:$0xff] %v507
  %540 = vst [vmem:[#allocation2 + $0xa8] sm:$0xff] %v508
  %541 = vst [vmem:[#allocation2 + $0xb0] sm:$0xff] %v509
  %542 = vst [vmem:[#allocation2 + $0xb8] sm:$0xff] %v510
  %543 = vst [vmem:[#allocation2 + $0xc0] sm:$0xff] %v511
  %544 = vst [vmem:[#allocation2 + $0xc8] sm:$0xff] %v512
  %545 = vst [vmem:[#allocation2 + $0xd0] sm:$0xff] %v513
  %546 = vst [vmem:[#allocation2 + $0xd8] sm:$0xff] %v514
  %547 = vst [vmem:[#allocation2 + $0xe0] sm:$0xff] %v515
  %548 = vst [vmem:[#allocation2 + $0xe8] sm:$0xff] %v516
  %549 = vst [vmem:[#allocation2 + $0xf0] sm:$0xff] %v517
  %550 = vst [vmem:[#allocation2 + $0xf8] sm:$0xff] %v518
  // Predicated region
  $region18: #{multi_head_mlp_ttt_forward.2} parent=0 // pred_check
    %p551 = pneg %p14
  $region19: #{multi_head_mlp_ttt_forward.2} parent=0 // pred_check_branch
    %553 = sbr.rel (%p551) target = $region21
  $region20: #{multi_head_mlp_ttt_forward.2} parent=0 // pred_region
    %v554 = vld [vmem:[#allocation2] sm:$0xff]
    %v555 = vld [vmem:[#allocation2 + $0x8] sm:$0xff]
    %v556 = vld [vmem:[#allocation2 + $0x10] sm:$0xff]
    %v557 = vld [vmem:[#allocation2 + $0x18] sm:$0xff]
    %v558 = vld [vmem:[#allocation2 + $0x20] sm:$0xff]
    %v559 = vld [vmem:[#allocation2 + $0x28] sm:$0xff]
    %v560 = vld [vmem:[#allocation2 + $0x30] sm:$0xff]
    %v561 = vld [vmem:[#allocation2 + $0x38] sm:$0xff]
    %v562 = vld [vmem:[#allocation2 + $0x40] sm:$0xff]
    %v563 = vld [vmem:[#allocation2 + $0x48] sm:$0xff]
    %v564 = vld [vmem:[#allocation2 + $0x50] sm:$0xff]
    %v565 = vld [vmem:[#allocation2 + $0x58] sm:$0xff]
    %v566 = vld [vmem:[#allocation2 + $0x60] sm:$0xff]
    %v567 = vld [vmem:[#allocation2 + $0x68] sm:$0xff]
    %v568 = vld [vmem:[#allocation2 + $0x70] sm:$0xff]
    %v569 = vld [vmem:[#allocation2 + $0x78] sm:$0xff]
    %v570 = vld [vmem:[#allocation2 + $0x80] sm:$0xff]
    %v571 = vld [vmem:[#allocation2 + $0x88] sm:$0xff]
    %v572 = vld [vmem:[#allocation2 + $0x90] sm:$0xff]
    %v573 = vld [vmem:[#allocation2 + $0x98] sm:$0xff]
    %v574 = vld [vmem:[#allocation2 + $0xa0] sm:$0xff]
    %v575 = vld [vmem:[#allocation2 + $0xa8] sm:$0xff]
    %v576 = vld [vmem:[#allocation2 + $0xb0] sm:$0xff]
    %v577 = vld [vmem:[#allocation2 + $0xb8] sm:$0xff]
    %v578 = vld [vmem:[#allocation2 + $0xc0] sm:$0xff]
    %v579 = vld [vmem:[#allocation2 + $0xc8] sm:$0xff]
    %v580 = vld [vmem:[#allocation2 + $0xd0] sm:$0xff]
    %v581 = vld [vmem:[#allocation2 + $0xd8] sm:$0xff]
    %v582 = vld [vmem:[#allocation2 + $0xe0] sm:$0xff]
    %v583 = vld [vmem:[#allocation2 + $0xe8] sm:$0xff]
    %v584 = vld [vmem:[#allocation2 + $0xf0] sm:$0xff]
    %v585 = vld [vmem:[#allocation2 + $0xf8] sm:$0xff]
    %v586 = vld [vmem:[%s2] sm:$0xff]
    %v588 = vlaneseq
    %v589 = vshrl.u32 %v588, 7
    %v590 = vsub.s32 0, %v589
    %v591 = vrot.slane %v586, %v590
    %v592 = vlaneseq
    %v593 = vshrl.u32 %v592, 7
    %v594 = vsub.s32 1, %v593
    %v595 = vrot.slane %v586, %v594
    %v596 = vlaneseq
    %v597 = vshrl.u32 %v596, 7
    %v598 = vsub.s32 2, %v597
    %v599 = vrot.slane %v586, %v598
    %v600 = vlaneseq
    %v601 = vshrl.u32 %v600, 7
    %v602 = vsub.s32 3, %v601
    %v603 = vrot.slane %v586, %v602
    %v604 = vlaneseq
    %v605 = vshrl.u32 %v604, 7
    %v606 = vsub.s32 4, %v605
    %v607 = vrot.slane %v586, %v606
    %v608 = vlaneseq
    %v609 = vshrl.u32 %v608, 7
    %v610 = vsub.s32 5, %v609
    %v611 = vrot.slane %v586, %v610
    %v612 = vlaneseq
    %v613 = vshrl.u32 %v612, 7
    %v614 = vsub.s32 6, %v613
    %v615 = vrot.slane %v586, %v614
    %v616 = vlaneseq
    %v617 = vshrl.u32 %v616, 7
    %v618 = vsub.s32 7, %v617
    %v619 = vrot.slane %v586, %v618
    %v628 = vadd.f32 %v554, %v591
    %v629 = vadd.f32 %v555, %v595
    %v630 = vadd.f32 %v556, %v599
    %v631 = vadd.f32 %v557, %v603
    %v632 = vadd.f32 %v558, %v607
    %v633 = vadd.f32 %v559, %v611
    %v634 = vadd.f32 %v560, %v615
    %v635 = vadd.f32 %v561, %v619
    %v636 = vadd.f32 %v562, %v591
    %v637 = vadd.f32 %v563, %v595
    %v638 = vadd.f32 %v564, %v599
    %v639 = vadd.f32 %v565, %v603
    %v640 = vadd.f32 %v566, %v607
    %v641 = vadd.f32 %v567, %v611
    %v642 = vadd.f32 %v568, %v615
    %v643 = vadd.f32 %v569, %v619
    %v644 = vadd.f32 %v570, %v591
    %v645 = vadd.f32 %v571, %v595
    %v646 = vadd.f32 %v572, %v599
    %v647 = vadd.f32 %v573, %v603
    %v648 = vadd.f32 %v574, %v607
    %v649 = vadd.f32 %v575, %v611
    %v650 = vadd.f32 %v576, %v615
    %v651 = vadd.f32 %v577, %v619
    %v652 = vadd.f32 %v578, %v591
    %v653 = vadd.f32 %v579, %v595
    %v654 = vadd.f32 %v580, %v599
    %v655 = vadd.f32 %v581, %v603
    %v656 = vadd.f32 %v582, %v607
    %v657 = vadd.f32 %v583, %v611
    %v658 = vadd.f32 %v584, %v615
    %v659 = vadd.f32 %v585, %v619
    %660 = vst [vmem:[%s3] sm:$0xff] %v628
    %661 = vst [vmem:[%s3 + $0x8] sm:$0xff] %v629
    %662 = vst [vmem:[%s3 + $0x10] sm:$0xff] %v630
    %663 = vst [vmem:[%s3 + $0x18] sm:$0xff] %v631
    %664 = vst [vmem:[%s3 + $0x20] sm:$0xff] %v632
    %665 = vst [vmem:[%s3 + $0x28] sm:$0xff] %v633
    %666 = vst [vmem:[%s3 + $0x30] sm:$0xff] %v634
    %667 = vst [vmem:[%s3 + $0x38] sm:$0xff] %v635
    %668 = vst [vmem:[%s3 + $0x40] sm:$0xff] %v636
    %669 = vst [vmem:[%s3 + $0x48] sm:$0xff] %v637
    %670 = vst [vmem:[%s3 + $0x50] sm:$0xff] %v638
    %671 = vst [vmem:[%s3 + $0x58] sm:$0xff] %v639
    %672 = vst [vmem:[%s3 + $0x60] sm:$0xff] %v640
    %673 = vst [vmem:[%s3 + $0x68] sm:$0xff] %v641
    %674 = vst [vmem:[%s3 + $0x70] sm:$0xff] %v642
    %675 = vst [vmem:[%s3 + $0x78] sm:$0xff] %v643
    %676 = vst [vmem:[%s3 + $0x80] sm:$0xff] %v644
    %677 = vst [vmem:[%s3 + $0x88] sm:$0xff] %v645
    %678 = vst [vmem:[%s3 + $0x90] sm:$0xff] %v646
    %679 = vst [vmem:[%s3 + $0x98] sm:$0xff] %v647
    %680 = vst [vmem:[%s3 + $0xa0] sm:$0xff] %v648
    %681 = vst [vmem:[%s3 + $0xa8] sm:$0xff] %v649
    %682 = vst [vmem:[%s3 + $0xb0] sm:$0xff] %v650
    %683 = vst [vmem:[%s3 + $0xb8] sm:$0xff] %v651
    %684 = vst [vmem:[%s3 + $0xc0] sm:$0xff] %v652
    %685 = vst [vmem:[%s3 + $0xc8] sm:$0xff] %v653
    %686 = vst [vmem:[%s3 + $0xd0] sm:$0xff] %v654
    %687 = vst [vmem:[%s3 + $0xd8] sm:$0xff] %v655
    %688 = vst [vmem:[%s3 + $0xe0] sm:$0xff] %v656
    %689 = vst [vmem:[%s3 + $0xe8] sm:$0xff] %v657
    %690 = vst [vmem:[%s3 + $0xf0] sm:$0xff] %v658
    %691 = vst [vmem:[%s3 + $0xf8] sm:$0xff] %v659
  $region21: #{multi_head_mlp_ttt_forward.2} parent=0 // pred_fallthru
    _
  // Predicated region
  $region22: #{multi_head_mlp_ttt_forward.2} parent=0 // pred_check
    _
  $region23: #{multi_head_mlp_ttt_forward.2} parent=0 // pred_check_branch
    %693 = sbr.rel (0) target = $region25
  $region24: #{multi_head_mlp_ttt_forward.2} parent=0 // pred_region
    _
  $region25: #{multi_head_mlp_ttt_forward.2} parent=0 // pred_fallthru
    _
  // Predicated region
  $region26: #{multi_head_mlp_ttt_forward.2} parent=0 // pred_check
    _
  $region27: #{multi_head_mlp_ttt_forward.2} parent=0 // pred_check_branch
    %695 = sbr.rel (0) target = $region29
  $region28: #{multi_head_mlp_ttt_forward.2} parent=0 // pred_region
    _
  $region29: #{multi_head_mlp_ttt_forward.2} parent=0 // pred_fallthru
    _

// kernel: multi_head_mlp_ttt_forward.3
$region0: #{multi_head_mlp_ttt_forward.3}
  #allocation0 [shape = 'u32[]', space=smem, size = 0x4, offset = 0x4, fixed_abs, tag = 'smem constant byte address 0x4 - core index']
  #allocation1 [shape = 'u32[144,128]{1,0:T(1,128)}', space=vmem, size = 0x12000, scoped, tag = 'internal scratch']
  %s0 = inlined_call_operand.vmem [shape: f32[2,16,1024], index: 0, kind: input, shape index: {}]
  %s1 = inlined_call_operand.vmem [shape: f32[2,2,32,16], index: 1, kind: input, shape index: {}]
  %s2 = inlined_call_operand.vmem [shape: f32[2,2,16,32], index: 2, kind: input, shape index: {}]
  %s3 = inlined_call_operand.vmem [shape: f32[2,16,32], index: 3, kind: input, shape index: {}]
  %s4 = inlined_call_operand.vmem [shape: f32[1,32], index: 4, kind: input, shape index: {}]
  %s5 = inlined_call_operand.hbm [shape: f32[2,16,32], index: 5, kind: output, shape index: {0}]
  %s6 = inlined_call_operand.vmem [shape: f32[2,2,32,16], index: 6, kind: output, shape index: {1}]
  %s7 = inlined_call_operand.hbm [shape: f32[2,2,16,32], index: 7, kind: output, shape index: {2}]
  %8 = xla_tuple %s5, %s6, %s7
  %s9 = sld [smem:[#allocation0]]
  $region100: #{multi_head_mlp_ttt_forward.3} parent=0
    _
  %s11 = ssub.s32 1, %s9
  %s12 = scalar_select 0, %s11, %s9
  $region1: #{multi_head_mlp_ttt_forward.3} parent=0
    #allocation2 [shape = 'u8[65536]{0}', space=vmem, size = 0x10000, scoped, tag = 'input window, operand 0']
    #allocation3 [shape = 'u8[16384]{0}', space=vmem, size = 0x4000, scoped, tag = 'output window, operand 0']
    #allocation4 [shape = 's32[2]{0}', space=sflag, size = 0x8, scoped, tag = 'scoped memory for multi_head_mlp_ttt_forward.3']
    #allocation5 [shape = 'u8[16384]{0}', space=vmem, size = 0x4000, scoped, tag = 'output window, operand 2']
    #allocation6 [shape = 's32[2]{0}', space=sflag, size = 0x8, scoped, tag = 'scoped memory for multi_head_mlp_ttt_forward.3']
    %13 = vsyncpa [#allocation4], 0
    %s14 = scalar_lea.sflag [#allocation4], 1
    %15 = vsyncpa %s14, 0
    %16 = vsyncpa [#allocation6], 0
    %s17 = scalar_lea.sflag [#allocation6], 1
    %18 = vsyncpa %s17, 0
    loop: start=0, step=1, limit=6
    $region2: #{multi_head_mlp_ttt_forward.3} parent=1 // loop_pre_header
      _
    $region3: #{multi_head_mlp_ttt_forward.3} parent=1 // loop_header
      %s20 = sphi 0, %s24
      %p21 = scmp.ge.s32.totalorder %s20, 6
      %s27 = sphi 0, %s39
      %s28 = sphi 0, %s35
      %s29 = sphi 0, %s27
      %s30 = sphi 0, %s28
      %s31 = sphi 0, %s29
      %s32 = sphi 0, %s30
      %s44 = sphi 0, %s46
      %s47 = sphi 0, %s44
      %s48 = sphi 0, %s47
      %s64 = sphi 0, %s48
      %s72 = sphi 0, %s74
      %s75 = sphi 0, %s72
      %s76 = sphi 0, %s75
      %s92 = sphi 0, %s76
      %s100 = sphi 0, %s102
      %s103 = sphi 0, %s100
      %s104 = sphi 0, %s103
      %s120 = sphi 0, %s104
      %s126 = sphi 0, %s128
      %s129 = sphi 0, %s126
      %s130 = sphi 0, %s129
      %s146 = sphi 0, %s130
      %s150 = sphi 0, %s150
      %s152 = sphi 0, %s150
      %s153 = sphi 0, %s152
      %s167 = sphi 0, %s153
      %s173 = sphi 0, %s175
      %s176 = sphi 0, %s173
      %s177 = sphi 0, %s176
      %s193 = sphi 0, %s177
      %s201 = sphi 0, %s203
      %s204 = sphi 0, %s201
      %s205 = sphi 0, %s204
      %s221 = sphi 0, %s205
      %s229 = sphi 0, %s231
      %s232 = sphi 0, %s229
      %s233 = sphi 0, %s232
      %s249 = sphi 0, %s233
    $region4: #{multi_head_mlp_ttt_forward.3} parent=1 // loop_header_branch
      %23 = sbr.rel (%p21) target = $region8
    $region5: #{multi_head_mlp_ttt_forward.3} parent=1 // loop_body
      %s25 = ssub.s32 %s20, 1
      %s26 = ssub.s32 %s20, 2
      %s33 = sadd.s32 1, %s28
      %p34 = scmp.ge.s32.totalorder %s33, 2
      %s35 = scalar_select %p34, 0, %s33
      %s36 = sadd.s32 1, %s27
      %s37 = scalar_select %p34, %s36, %s27
      %p38 = scmp.ge.s32.totalorder %s37, 2
      %s39 = scalar_select %p38, 0, %s37
      %s40 = ssub.s32 %s27, %s39
      %s41 = ssub.s32 %s28, %s35
      %s42 = sor.u32 %s40, %s41
      %p43 = scmp.eq.s32.totalorder %s42, 0
      %s45 = sadd.s32 %s44, 1
      %s46 = scalar_select %p43, %s44, %s45
      %p49 = pneg %p43
      %p50 = scmp.eq.s32.totalorder %s20, 3
      %p51 = por %p49, %p50
      %p52 = scmp.ne.s32.totalorder %s44, %s47
      %p53 = scmp.eq.s32.totalorder %s20, 0
      %p54 = por %p52, %p53
      %p55 = scmp.ne.s32.totalorder %s44, %s47
      %p56 = scmp.eq.s32.totalorder %s25, 3
      %p57 = por %p55, %p56
      %p58 = scmp.ne.s32.totalorder %s47, %s48
      %p59 = scmp.eq.s32.totalorder %s25, 0
      %p60 = por %p58, %p59
      %p61 = scmp.ne.s32.totalorder %s47, %s48
      %p62 = scmp.eq.s32.totalorder %s26, 3
      %p63 = por %p61, %p62
      %p65 = scmp.ne.s32.totalorder %s48, %s64
      %p66 = scmp.eq.s32.totalorder %s26, 0
      %p67 = por %p65, %p66
      %s68 = ssub.s32 %s27, %s39
      %s69 = ssub.s32 %s28, %s35
      %s70 = sor.u32 %s68, %s69
      %p71 = scmp.eq.s32.totalorder %s70, 0
      %s73 = sadd.s32 %s72, 1
      %s74 = scalar_select %p71, %s72, %s73
      %p77 = pneg %p71
      %p78 = scmp.eq.s32.totalorder %s20, 3
      %p79 = por %p77, %p78
      %p80 = scmp.ne.s32.totalorder %s72, %s75
      %p81 = scmp.eq.s32.totalorder %s20, 0
      %p82 = por %p80, %p81
      %p83 = scmp.ne.s32.totalorder %s72, %s75
      %p84 = scmp.eq.s32.totalorder %s25, 3
      %p85 = por %p83, %p84
      %p86 = scmp.ne.s32.totalorder %s75, %s76
      %p87 = scmp.eq.s32.totalorder %s25, 0
      %p88 = por %p86, %p87
      %p89 = scmp.ne.s32.totalorder %s75, %s76
      %p90 = scmp.eq.s32.totalorder %s26, 3
      %p91 = por %p89, %p90
      %p93 = scmp.ne.s32.totalorder %s76, %s92
      %p94 = scmp.eq.s32.totalorder %s26, 0
      %p95 = por %p93, %p94
      %s96 = ssub.s32 %s27, %s39
      %s97 = ssub.s32 %s28, %s35
      %s98 = sor.u32 %s96, %s97
      %p99 = scmp.eq.s32.totalorder %s98, 0
      %s101 = sadd.s32 %s100, 1
      %s102 = scalar_select %p99, %s100, %s101
      %p105 = pneg %p99
      %p106 = scmp.eq.s32.totalorder %s20, 3
      %p107 = por %p105, %p106
      %p108 = scmp.ne.s32.totalorder %s100, %s103
      %p109 = scmp.eq.s32.totalorder %s20, 0
      %p110 = por %p108, %p109
      %p111 = scmp.ne.s32.totalorder %s100, %s103
      %p112 = scmp.eq.s32.totalorder %s25, 3
      %p113 = por %p111, %p112
      %p114 = scmp.ne.s32.totalorder %s103, %s104
      %p115 = scmp.eq.s32.totalorder %s25, 0
      %p116 = por %p114, %p115
      %p117 = scmp.ne.s32.totalorder %s103, %s104
      %p118 = scmp.eq.s32.totalorder %s26, 3
      %p119 = por %p117, %p118
      %p121 = scmp.ne.s32.totalorder %s104, %s120
      %p122 = scmp.eq.s32.totalorder %s26, 0
      %p123 = por %p121, %p122
      %s124 = ssub.s32 %s28, %s35
      %p125 = scmp.eq.s32.totalorder %s124, 0
      %s127 = sadd.s32 %s126, 1
      %s128 = scalar_select %p125, %s126, %s127
      %p131 = pneg %p125
      %p132 = scmp.eq.s32.totalorder %s20, 3
      %p133 = por %p131, %p132
      %p134 = scmp.ne.s32.totalorder %s126, %s129
      %p135 = scmp.eq.s32.totalorder %s20, 0
      %p136 = por %p134, %p135
      %p137 = scmp.ne.s32.totalorder %s126, %s129
      %p138 = scmp.eq.s32.totalorder %s25, 3
      %p139 = por %p137, %p138
      %p140 = scmp.ne.s32.totalorder %s129, %s130
      %p141 = scmp.eq.s32.totalorder %s25, 0
      %p142 = por %p140, %p141
      %p143 = scmp.ne.s32.totalorder %s129, %s130
      %p144 = scmp.eq.s32.totalorder %s26, 3
      %p145 = por %p143, %p144
      %p147 = scmp.ne.s32.totalorder %s130, %s146
      %p148 = scmp.eq.s32.totalorder %s26, 0
      %p149 = por %p147, %p148
      %s151 = sadd.s32 %s150, 1
      %p154 = scmp.eq.s32.totalorder %s20, 3
      %p155 = scmp.ne.s32.totalorder %s150, %s152
      %p156 = scmp.eq.s32.totalorder %s20, 0
      %p157 = por %p155, %p156
      %p158 = scmp.ne.s32.totalorder %s150, %s152
      %p159 = scmp.eq.s32.totalorder %s25, 3
      %p160 = por %p158, %p159
      %p161 = scmp.ne.s32.totalorder %s152, %s153
      %p162 = scmp.eq.s32.totalorder %s25, 0
      %p163 = por %p161, %p162
      %p164 = scmp.ne.s32.totalorder %s152, %s153
      %p165 = scmp.eq.s32.totalorder %s26, 3
      %p166 = por %p164, %p165
      %p168 = scmp.ne.s32.totalorder %s153, %s167
      %p169 = scmp.eq.s32.totalorder %s26, 0
      %p170 = por %p168, %p169
      %s171 = ssub.s32 %s27, %s39
      %p172 = scmp.eq.s32.totalorder %s171, 0
      %s174 = sadd.s32 %s173, 1
      %s175 = scalar_select %p172, %s173, %s174
      %p178 = pneg %p172
      %p179 = scmp.eq.s32.totalorder %s20, 3
      %p180 = por %p178, %p179
      %p181 = scmp.ne.s32.totalorder %s173, %s176
      %p182 = scmp.eq.s32.totalorder %s20, 0
      %p183 = por %p181, %p182
      %p184 = scmp.ne.s32.totalorder %s173, %s176
      %p185 = scmp.eq.s32.totalorder %s25, 3
      %p186 = por %p184, %p185
      %p187 = scmp.ne.s32.totalorder %s176, %s177
      %p188 = scmp.eq.s32.totalorder %s25, 0
      %p189 = por %p187, %p188
      %p190 = scmp.ne.s32.totalorder %s176, %s177
      %p191 = scmp.eq.s32.totalorder %s26, 3
      %p192 = por %p190, %p191
      %p194 = scmp.ne.s32.totalorder %s177, %s193
      %p195 = scmp.eq.s32.totalorder %s26, 0
      %p196 = por %p194, %p195
      %s197 = ssub.s32 %s27, %s39
      %s198 = ssub.s32 %s28, %s35
      %s199 = sor.u32 %s197, %s198
      %p200 = scmp.eq.s32.totalorder %s199, 0
      %s202 = sadd.s32 %s201, 1
      %s203 = scalar_select %p200, %s201, %s202
      %p206 = pneg %p200
      %p207 = scmp.eq.s32.totalorder %s20, 3
      %p208 = por %p206, %p207
      %p209 = scmp.ne.s32.totalorder %s201, %s204
      %p210 = scmp.eq.s32.totalorder %s20, 0
      %p211 = por %p209, %p210
      %p212 = scmp.ne.s32.totalorder %s201, %s204
      %p213 = scmp.eq.s32.totalorder %s25, 3
      %p214 = por %p212, %p213
      %p215 = scmp.ne.s32.totalorder %s204, %s205
      %p216 = scmp.eq.s32.totalorder %s25, 0
      %p217 = por %p215, %p216
      %p218 = scmp.ne.s32.totalorder %s204, %s205
      %p219 = scmp.eq.s32.totalorder %s26, 3
      %p220 = por %p218, %p219
      %p222 = scmp.ne.s32.totalorder %s205, %s221
      %p223 = scmp.eq.s32.totalorder %s26, 0
      %p224 = por %p222, %p223
      %s225 = ssub.s32 %s27, %s39
      %s226 = ssub.s32 %s28, %s35
      %s227 = sor.u32 %s225, %s226
      %p228 = scmp.eq.s32.totalorder %s227, 0
      %s230 = sadd.s32 %s229, 1
      %s231 = scalar_select %p228, %s229, %s230
      %p234 = pneg %p228
      %p235 = scmp.eq.s32.totalorder %s20, 3
      %p236 = por %p234, %p235
      %p237 = scmp.ne.s32.totalorder %s229, %s232
      %p238 = scmp.eq.s32.totalorder %s20, 0
      %p239 = por %p237, %p238
      %p240 = scmp.ne.s32.totalorder %s229, %s232
      %p241 = scmp.eq.s32.totalorder %s25, 3
      %p242 = por %p240, %p241
      %p243 = scmp.ne.s32.totalorder %s232, %s233
      %p244 = scmp.eq.s32.totalorder %s25, 0
      %p245 = por %p243, %p244
      %p246 = scmp.ne.s32.totalorder %s232, %s233
      %p247 = scmp.eq.s32.totalorder %s26, 3
      %p248 = por %p246, %p247
      %p250 = scmp.ne.s32.totalorder %s233, %s249
      %p251 = scmp.eq.s32.totalorder %s26, 0
      %p252 = por %p250, %p251
      %p253 = scmp.le.s32.totalorder 1, %s20
      %p254 = scmp.lt.s32.totalorder %s20, 5
      %p255 = pnand %p253, %p254
      %p256 = pneg %p255
      // Predicated region
      $region9: #{multi_head_mlp_ttt_forward.3} parent=5 // pred_check
        _
      $region10: #{multi_head_mlp_ttt_forward.3} parent=5 // pred_check_branch
        %258 = sbr.rel (%p255) target = $region12
      $region11: #{multi_head_mlp_ttt_forward.3} parent=5 // pred_region
        %s259 = ssub.s32 %s20, 1
        // Predicated region
        $region13: #{multi_head_mlp_ttt_forward.3} parent=11 // pred_check
          %p260 = pneg %p163
        $region14: #{multi_head_mlp_ttt_forward.3} parent=11 // pred_check_branch
          %262 = sbr.rel (%p260) target = $region16
        $region15: #{multi_head_mlp_ttt_forward.3} parent=11 // pred_region
          _
        $region16: #{multi_head_mlp_ttt_forward.3} parent=11 // pred_fallthru
          _
      $region12: #{multi_head_mlp_ttt_forward.3} parent=5 // pred_fallthru
        _
      %p263 = scmp.lt.s32.totalorder %s20, 4
      // Predicated region
      $region17: #{multi_head_mlp_ttt_forward.3} parent=5 // pred_check
        %p264 = pneg %p263
      $region18: #{multi_head_mlp_ttt_forward.3} parent=5 // pred_check_branch
        %266 = sbr.rel (%p264) target = $region20
      $region19: #{multi_head_mlp_ttt_forward.3} parent=5 // pred_region
        // Predicated region
        $region21: #{multi_head_mlp_ttt_forward.3} parent=19 // pred_check
          %p267 = pneg %p54
        $region22: #{multi_head_mlp_ttt_forward.3} parent=19 // pred_check_branch
          %269 = sbr.rel (%p267) target = $region24
        $region23: #{multi_head_mlp_ttt_forward.3} parent=19 // pred_region
          %s270 = sand.u32 %s44, 1
          %s271 = sand.u32 %s44, 1
          %s272 = smul.addr %s271, 64
          %s273 = scalar_lea.vmem [#allocation2], %s272
          %s274 = smul.u32 4, %s28
          %s275 = smul.addr %s27, 16
          %s276 = sadd.s32 %s274, %s275
          %s277 = smul.addr %s276, 8
          %s278 = scalar_lea.vmem %s0, %s277
          // Predicated region
          $region25: #{multi_head_mlp_ttt_forward.3} parent=23 // pred_check
            _
          $region26: #{multi_head_mlp_ttt_forward.3} parent=23 // pred_check_branch
            %280 = sbr.rel (0) target = $region28
          $region27: #{multi_head_mlp_ttt_forward.3} parent=23 // pred_region
            // Predicated region
            $region29: #{multi_head_mlp_ttt_forward.3} parent=27 // pred_check
              _
            $region30: #{multi_head_mlp_ttt_forward.3} parent=27 // pred_check_branch
              %282 = sbr.rel (0) target = $region32
            $region31: #{multi_head_mlp_ttt_forward.3} parent=27 // pred_region
              loop: start=0, step=1, limit=1
              $region33: #{multi_head_mlp_ttt_forward.3} parent=31 // loop_pre_header
                _
              $region34: #{multi_head_mlp_ttt_forward.3} parent=31 // loop_header
                %s284 = sphi 0, %s288
                %p285 = scmp.ge.s32.totalorder %s284, 1
                %s289 = sphi %s278, %s278
                %s290 = sphi %s273, %s273
              $region35: #{multi_head_mlp_ttt_forward.3} parent=31 // loop_header_branch
                %287 = sbr.rel (%p285) target = $region39
              $region36: #{multi_head_mlp_ttt_forward.3} parent=31 // loop_body
                %v291 = vld [vmem:[%s289] sm:$0xff]
                %292 = vst [vmem:[%s290] sm:$0xff] %v291
                %v293 = vld [vmem:[%s289 + $0x8] sm:$0xff]
                %294 = vst [vmem:[%s290 + $0x8] sm:$0xff] %v293
                %v295 = vld [vmem:[%s289 + $0x10] sm:$0xff]
                %296 = vst [vmem:[%s290 + $0x10] sm:$0xff] %v295
                %v297 = vld [vmem:[%s289 + $0x18] sm:$0xff]
                %298 = vst [vmem:[%s290 + $0x18] sm:$0xff] %v297
                %v299 = vld [vmem:[%s289 + $0x40] sm:$0xff]
                %300 = vst [vmem:[%s290 + $0x20] sm:$0xff] %v299
                %v301 = vld [vmem:[%s289 + $0x48] sm:$0xff]
                %302 = vst [vmem:[%s290 + $0x28] sm:$0xff] %v301
                %v303 = vld [vmem:[%s289 + $0x50] sm:$0xff]
                %304 = vst [vmem:[%s290 + $0x30] sm:$0xff] %v303
                %v305 = vld [vmem:[%s289 + $0x58] sm:$0xff]
                %306 = vst [vmem:[%s290 + $0x38] sm:$0xff] %v305
              $region37: #{multi_head_mlp_ttt_forward.3} parent=31 // loop_footer
                %s288 = sadd.s32 1, %s284
              $region38: #{multi_head_mlp_ttt_forward.3} parent=31 // loop_footer_branch
                %283 = sbr.rel target = $region34
              $region39: #{multi_head_mlp_ttt_forward.3} parent=31 // loop_exit
                _
            $region32: #{multi_head_mlp_ttt_forward.3} parent=27 // pred_fallthru
              _
            // Predicated region
            $region40: #{multi_head_mlp_ttt_forward.3} parent=27 // pred_check
              _
            $region41: #{multi_head_mlp_ttt_forward.3} parent=27 // pred_check_branch
              %308 = sbr.rel target = $region43
            $region42: #{multi_head_mlp_ttt_forward.3} parent=27 // pred_region
              _
            $region43: #{multi_head_mlp_ttt_forward.3} parent=27 // pred_fallthru
              _
          $region28: #{multi_head_mlp_ttt_forward.3} parent=23 // pred_fallthru
            _
          %309 = vnop
        $region24: #{multi_head_mlp_ttt_forward.3} parent=19 // pred_fallthru
          _
        // Predicated region
        $region44: #{multi_head_mlp_ttt_forward.3} parent=19 // pred_check
          %p310 = pneg %p82
        $region45: #{multi_head_mlp_ttt_forward.3} parent=19 // pred_check_branch
          %312 = sbr.rel (%p310) target = $region47
        $region46: #{multi_head_mlp_ttt_forward.3} parent=19 // pred_region
          %p313 = scmp.lt.s32.totalorder %s27, 1
          %s314 = scalar_select %p313, %s27, 1
          %p315 = scmp.lt.s32.totalorder %s28, 1
          %s316 = scalar_select %p315, %s28, 1
          %s317 = smul.addr %s316, 4
          %s318 = smul.addr %s314, 8
          %s319 = sadd.s32 %s317, %s318
          %s320 = smul.addr %s319, 8
          %s321 = scalar_lea.vmem %s1, %s320
        $region47: #{multi_head_mlp_ttt_forward.3} parent=19 // pred_fallthru
          _
        // Predicated region
        $region48: #{multi_head_mlp_ttt_forward.3} parent=19 // pred_check
          %p322 = pneg %p110
        $region49: #{multi_head_mlp_ttt_forward.3} parent=19 // pred_check_branch
          %324 = sbr.rel (%p322) target = $region51
        $region50: #{multi_head_mlp_ttt_forward.3} parent=19 // pred_region
          %p325 = scmp.lt.s32.totalorder %s27, 1
          %s326 = scalar_select %p325, %s27, 1
          %p327 = scmp.lt.s32.totalorder %s28, 1
          %s328 = scalar_select %p327, %s28, 1
          %s329 = smul.addr %s328, 2
          %s330 = smul.addr %s326, 4
          %s331 = sadd.s32 %s329, %s330
          %s332 = smul.addr %s331, 8
          %s333 = scalar_lea.vmem %s2, %s332
        $region51: #{multi_head_mlp_ttt_forward.3} parent=19 // pred_fallthru
          _
        // Predicated region
        $region52: #{multi_head_mlp_ttt_forward.3} parent=19 // pred_check
          %p334 = pneg %p136
        $region53: #{multi_head_mlp_ttt_forward.3} parent=19 // pred_check_branch
          %336 = sbr.rel (%p334) target = $region55
        $region54: #{multi_head_mlp_ttt_forward.3} parent=19 // pred_region
          %p337 = scmp.lt.s32.totalorder %s28, 1
          %s338 = scalar_select %p337, %s28, 1
          %s339 = smul.addr %s338, 2
          %s340 = smul.addr %s339, 8
          %s341 = scalar_lea.vmem %s3, %s340
        $region55: #{multi_head_mlp_ttt_forward.3} parent=19 // pred_fallthru
          _
      $region20: #{multi_head_mlp_ttt_forward.3} parent=5 // pred_fallthru
        _
      %p342 = scmp.le.s32.totalorder 1, %s20
      %p343 = scmp.lt.s32.totalorder %s20, 5
      %p344 = pnand %p342, %p343
      %p345 = pneg %p344
      // Predicated region
      $region56: #{multi_head_mlp_ttt_forward.3} parent=5 // pred_check
        _
      $region57: #{multi_head_mlp_ttt_forward.3} parent=5 // pred_check_branch
        %347 = sbr.rel (%p344) target = $region59
      $region58: #{multi_head_mlp_ttt_forward.3} parent=5 // pred_region
        %s348 = ssub.s32 %s20, 1
        %s349 = sand.u32 %s47, 1
        %s350 = sand.u32 %s47, 1
        %s351 = smul.addr %s350, 64
        %s352 = scalar_lea.vmem [#allocation2], %s351
        // Predicated region
        $region60: #{multi_head_mlp_ttt_forward.3} parent=58 // pred_check
          %p353 = pneg %p60
        $region61: #{multi_head_mlp_ttt_forward.3} parent=58 // pred_check_branch
          %355 = sbr.rel (%p353) target = $region63
        $region62: #{multi_head_mlp_ttt_forward.3} parent=58 // pred_region
          _
        $region63: #{multi_head_mlp_ttt_forward.3} parent=58 // pred_fallthru
          _
        %s356 = sand.u32 %s47, 1
        %s357 = sand.u32 %s47, 1
        %s358 = smul.addr %s357, 64
        %s359 = scalar_lea.vmem [#allocation2], %s358
        %p360 = pneg %p60
        %p361 = pneg %p57
        %p362 = scmp.lt.s32.totalorder %s29, 1
        %s363 = scalar_select %p362, %s29, 1
        %p364 = scmp.lt.s32.totalorder %s30, 1
        %s365 = scalar_select %p364, %s30, 1
        %s366 = smul.addr %s365, 4
        %s367 = smul.addr %s363, 8
        %s368 = sadd.s32 %s366, %s367
        %s369 = smul.addr %s368, 8
        %s370 = scalar_lea.vmem %s1, %s369
        %p371 = pneg %p88
        %p372 = pneg %p85
        %p373 = scmp.lt.s32.totalorder %s29, 1
        %s374 = scalar_select %p373, %s29, 1
        %p375 = scmp.lt.s32.totalorder %s30, 1
        %s376 = scalar_select %p375, %s30, 1
        %s377 = smul.addr %s376, 2
        %s378 = smul.addr %s374, 4
        %s379 = sadd.s32 %s377, %s378
        %s380 = smul.addr %s379, 8
        %s381 = scalar_lea.vmem %s2, %s380
        %p382 = pneg %p116
        %p383 = pneg %p113
        %p384 = scmp.lt.s32.totalorder %s30, 1
        %s385 = scalar_select %p384, %s30, 1
        %s386 = smul.addr %s385, 2
        %s387 = smul.addr %s386, 8
        %s388 = scalar_lea.vmem %s3, %s387
        %p389 = pneg %p142
        %p390 = pneg %p139
        %p391 = pneg %p163
        %p392 = pneg %p160
        %p393 = pneg %p189
        %p394 = pneg %p186
        %s395 = sand.u32 %s176, 1
        %s396 = scalar_lea.sflag [#allocation4], %s395
        %s397 = sand.u32 %s176, 1
        %s398 = smul.addr %s397, 16
        %s399 = scalar_lea.vmem [#allocation3], %s398
        %p400 = pneg %p217
        %p401 = pneg %p214
        %p402 = scmp.lt.s32.totalorder %s29, 1
        %s403 = scalar_select %p402, %s29, 1
        %p404 = scmp.lt.s32.totalorder %s30, 1
        %s405 = scalar_select %p404, %s30, 1
        %s406 = smul.addr %s405, 4
        %s407 = smul.addr %s403, 8
        %s408 = sadd.s32 %s406, %s407
        %s409 = smul.addr %s408, 8
        %s410 = scalar_lea.vmem %s6, %s409
        %p411 = pneg %p245
        %p412 = pneg %p242
        %s413 = sand.u32 %s232, 1
        %s414 = scalar_lea.sflag [#allocation6], %s413
        %s415 = sand.u32 %s232, 1
        %s416 = smul.addr %s415, 16
        %s417 = scalar_lea.vmem [#allocation5], %s416
        %s418 = smul.u32 4, %s30
        %p419 = scmp.lt.s32.totalorder %s29, 1
        %s420 = scalar_select %p419, %s29, 1
        %p421 = scmp.lt.s32.totalorder %s30, 1
        %s422 = scalar_select %p421, %s30, 1
        %s423 = smul.addr %s422, 4
        %s424 = smul.addr %s420, 8
        %s425 = sadd.s32 %s423, %s424
        %s426 = smul.addr %s425, 8
        %s427 = scalar_lea.vmem %s1, %s426
        %p428 = scmp.lt.s32.totalorder %s29, 1
        %s429 = scalar_select %p428, %s29, 1
        %p430 = scmp.lt.s32.totalorder %s30, 1
        %s431 = scalar_select %p430, %s30, 1
        %s432 = smul.addr %s431, 2
        %s433 = smul.addr %s429, 4
        %s434 = sadd.s32 %s432, %s433
        %s435 = smul.addr %s434, 8
        %s436 = scalar_lea.vmem %s2, %s435
        %p437 = scmp.lt.s32.totalorder %s30, 1
        %s438 = scalar_select %p437, %s30, 1
        %s439 = smul.addr %s438, 2
        %s440 = smul.addr %s439, 8
        %s441 = scalar_lea.vmem %s3, %s440
        %p442 = scmp.lt.s32.totalorder %s29, 1
        %s443 = scalar_select %p442, %s29, 1
        %p444 = scmp.lt.s32.totalorder %s30, 1
        %s445 = scalar_select %p444, %s30, 1
        %s446 = smul.addr %s445, 4
        %s447 = smul.addr %s443, 8
        %s448 = sadd.s32 %s446, %s447
        %s449 = smul.addr %s448, 8
        %s450 = scalar_lea.vmem %s6, %s449
        %v452 = vld [vmem:[%s352] sm:$0xff]
        %v453 = vld [vmem:[%s352 + $0x20] sm:$0xff]
        %v454 = vld [vmem:[%s352 + $0x8] sm:$0xff]
        %v455 = vld [vmem:[%s352 + $0x28] sm:$0xff]
        %v456 = vld [vmem:[%s352 + $0x10] sm:$0xff]
        %v457 = vld [vmem:[%s352 + $0x30] sm:$0xff]
        %v458 = vld [vmem:[%s352 + $0x18] sm:$0xff]
        %v459 = vld [vmem:[%s352 + $0x38] sm:$0xff]
        %v460 = vmul.f32 %v458, 1.442695
        %v461 = vpow.pop %v460
        %v462 = vmul.f32 %v459, 1.442695
        %v463 = vpow.pop %v462
        %v464 = vsub.f32 0.0, %v458
        %v465 = vsub.f32 0.0, %v459
        %v466 = vmul.f32 %v464, 1.442695
        %v467 = vpow.pop %v466
        %v468 = vmul.f32 %v465, 1.442695
        %v469 = vpow.pop %v468
        %v470 = vadd.f32 %v467, 1.0
        %v471 = vadd.f32 %v469, 1.0
        %v472 = vrcp.pop %v470
        %v473 = vmul.f32 1.0, %v472
        %v474 = vrcp.pop %v471
        %v475 = vmul.f32 1.0, %v474
        %478 = vrot.lane.b32.xlu0 %v473, 2
        %v479 = vpop.permute.xlu0 %478
        %480 = vrot.lane.b32.xlu0 %v475, 2
        %v481 = vpop.permute.xlu0 %480
        %v484 = vmul.f32 %v461, %v479
        %v485 = vmul.f32 %v463, %v481
        %v486 = vmin.f32 %v484, 0.999999
        %v487 = vmin.f32 %v485, 0.999999
        %v488 = vsub.f32 1.0, %v486
        %v489 = vsub.f32 1.0, %v487
        %v490 = vlog2.pop %v488
        %v491 = vmul.f32 %v490, 0.6931472
        %v492 = vlog2.pop %v489
        %v493 = vmul.f32 %v492, 0.6931472
        %vm496 = vcmask 1040384
        %v497 = vrot.slane %v491, 7
        %v498 = vrot.slane %v493, 7
        %v499 = vsel %vm496, %v497, %v498
        %500 = vrot.lane.b32.xlu0 %v497, 125
        %v501 = vpop.permute.xlu0 %500
        %502 = vrot.lane.b32.xlu0 %v499, 125
        %v503 = vpop.permute.xlu0 %502
        %v505 = vsel %vm496, 0.0, %v501
        %507 = vrot.lane.b32.xlu0 %v505, 3
        %v508 = vpop.permute.xlu0 %507
        %509 = vrot.lane.b32.xlu0 %v503, 3
        %v510 = vpop.permute.xlu0 %509
        %v513 = vadd.f32 %v491, %v508
        %v514 = vadd.f32 %v493, %v510
        %vm517 = vcmask 1041408
        %v518 = vrot.slane %v513, 6
        %v519 = vrot.slane %v514, 6
        %v520 = vsel %vm517, %v518, %v519
        %521 = vrot.lane.b32.xlu0 %v518, 125
        %v522 = vpop.permute.xlu0 %521
        %523 = vrot.lane.b32.xlu0 %v520, 125
        %v524 = vpop.permute.xlu0 %523
        %v526 = vsel %vm517, 0.0, %v522
        %528 = vrot.lane.b32.xlu0 %v526, 3
        %v529 = vpop.permute.xlu0 %528
        %530 = vrot.lane.b32.xlu0 %v524, 3
        %v531 = vpop.permute.xlu0 %530
        %v534 = vadd.f32 %v513, %v529
        %v535 = vadd.f32 %v514, %v531
        %vm538 = vcmask 1043456
        %v539 = vrot.slane %v534, 4
        %v540 = vrot.slane %v535, 4
        %v541 = vsel %vm538, %v539, %v540
        %542 = vrot.lane.b32.xlu0 %v539, 125
        %v543 = vpop.permute.xlu0 %542
        %544 = vrot.lane.b32.xlu0 %v541, 125
        %v545 = vpop.permute.xlu0 %544
        %v547 = vsel %vm538, 0.0, %v543
        %549 = vrot.lane.b32.xlu0 %v547, 3
        %v550 = vpop.permute.xlu0 %549
        %551 = vrot.lane.b32.xlu0 %v545, 3
        %v552 = vpop.permute.xlu0 %551
        %v555 = vadd.f32 %v534, %v550
        %v556 = vadd.f32 %v535, %v552
        %558 = vrot.lane.b32.xlu0 %v555, 125
        %v559 = vpop.permute.xlu0 %558
        %561 = vrot.lane.b32.xlu0 0.0, 3
        %v562 = vpop.permute.xlu0 %561
        %563 = vrot.lane.b32.xlu0 %v559, 3
        %v564 = vpop.permute.xlu0 %563
        %v567 = vadd.f32 %v555, %v562
        %v568 = vadd.f32 %v556, %v564
        %v569 = vmul.f32 %v567, 1.442695
        %v570 = vpow.pop %v569
        %v571 = vmul.f32 %v568, 1.442695
        %v572 = vpow.pop %v571
        %v573 = vlaneseq
        %v574 = vshrl.u32 %v573, 7
        %v575 = vsub.s32 7, %v574
        %v576 = vrot.slane %v568, %v575
        %v577 = vsub.f32 %v576, %v567
        %v578 = vsub.f32 %v576, %v568
        %v579 = vmul.f32 %v577, 1.442695
        %v580 = vpow.pop %v579
        %v581 = vmul.f32 %v578, 1.442695
        %v582 = vpow.pop %v581
        %v583 = vlaneseq
        %v584 = vshrl.u32 %v583, 7
        %v585 = vadd.s32 %v584, 8
        %v586 = vlaneseq
        %v587 = vand.u32 %v586, 127
        %vm588 = vcmp.le.s32.totalorder %v584, %v587
        %vm589 = vcmp.le.s32.totalorder %v585, %v587
        %590 = vset.pattern.permute.xlu0 3
        %591 = vperm.xlu0 %590, %v491
        %v592 = vpop.permute.xlu0 %591
        %594 = vset.pattern.permute.xlu0 3
        %595 = vperm.xlu0 %594, %v493
        %v596 = vpop.permute.xlu0 %595
        %v598 = vsel %vm588, %v592, 0.0
        %v599 = vsel %vm589, %v596, 0.0
        %vm600 = vcmask 130048
        %v602 = vsel %vm600, 1.0, 0
        %604 = vmatprep.subr.mxu0 0.0
        %605 = vmatpush1.msra.mxu0 0.0
        %606 = vmatprep.subr.mxu0 0.0
        %607 = vmatpush1.msra.mxu0 0.0
        %608 = vmatprep.subr.mxu0 0.0
        %609 = vmatpush1.msra.mxu0 0.0
        %610 = vmatprep.subr.mxu0 0.0
        %611 = vmatpush1.msra.mxu0 0.0
        %612 = vmatprep.subr.mxu0 0.0
        %613 = vmatpush1.msra.mxu0 0.0
        %614 = vmatprep.subr.mxu0 0.0
        %615 = vmatpush1.msra.mxu0 0.0
        %616 = vmatprep.subr.mxu0 0.0
        %617 = vmatpush1.msra.mxu0 0.0
        %618 = vmatprep.subr.mxu0 0.0
        %619 = vmatpush1.msra.mxu0 0.0
        %620 = vmatprep.subr.mxu0 0.0
        %621 = vmatpush1.msra.mxu0 0.0
        %622 = vmatprep.subr.mxu0 0.0
        %623 = vmatpush1.msra.mxu0 0.0
        %624 = vmatprep.subr.mxu0 0.0
        %625 = vmatpush1.msra.mxu0 0.0
        %626 = vmatprep.subr.mxu0 0.0
        %627 = vmatpush1.msra.mxu0 0.0
        %628 = vmatprep.subr.mxu0 0.0
        %629 = vmatpush1.msra.mxu0 0.0
        %630 = vmatprep.subr.mxu0 0.0
        %631 = vmatpush1.msra.mxu0 0.0
        %632 = vmatprep.subr.mxu0 0.0
        %633 = vmatpush1.msra.mxu0 %v599
        %634 = vmatprep.subr.mxu0 0.0
        %635 = vmatpush1.msra.mxu0 %v598
        %636 = vmatprep.subr.mxu0 0.0
        %637 = vmatpush2.msra.mxu0 0.0
        %638 = vmatprep.subr.mxu0 0.0
        %639 = vmatpush2.msra.mxu0 0.0
        %640 = vmatprep.subr.mxu0 0.0
        %641 = vmatpush2.msra.mxu0 0.0
        %642 = vmatprep.subr.mxu0 0.0
        %643 = vmatpush2.msra.mxu0 0.0
        %644 = vmatprep.subr.mxu0 0.0
        %645 = vmatpush2.msra.mxu0 0.0
        %646 = vmatprep.subr.mxu0 0.0
        %647 = vmatpush2.msra.mxu0 0.0
        %648 = vmatprep.subr.mxu0 0.0
        %649 = vmatpush2.msra.mxu0 0.0
        %650 = vmatprep.subr.mxu0 0.0
        %651 = vmatpush2.msra.mxu0 0.0
        %652 = vmatprep.subr.mxu0 0.0
        %653 = vmatpush2.msra.mxu0 0.0
        %654 = vmatprep.subr.mxu0 0.0
        %655 = vmatpush2.msra.mxu0 0.0
        %656 = vmatprep.subr.mxu0 0.0
        %657 = vmatpush2.msra.mxu0 0.0
        %658 = vmatprep.subr.mxu0 0.0
        %659 = vmatpush2.msra.mxu0 0.0
        %660 = vmatprep.subr.mxu0 0.0
        %661 = vmatpush2.msra.mxu0 0.0
        %662 = vmatprep.subr.mxu0 0.0
        %663 = vmatpush2.msra.mxu0 0.0
        %664 = vmatprep.subr.mxu0 0.0
        %665 = vmatpush2.msra.mxu0 0.0
        %666 = vmatprep.subr.mxu0 0.0
        %667 = vmatpush2.msra.mxu0 0.0
        %668 = vmatprep.mubr.f32.mxu0 0.0
        %669 = vmatmul.mubr.f32.gmra.mxu0 %v602
        %v670 = vpop.f32.mrf.mxu0
        %v671 = vadd.f32 0.0, %v670
        %v672 = vpop.f32.mrf.mxu0
        %673 = vdwg.mxu0
        %vm674 = vcmp.le.s32.totalorder %v587, %v584
        %vm675 = vcmp.le.s32.totalorder %v587, %v585
        %677 = vset.pattern.permute.xlu0 3
        %678 = vperm.xlu0 %677, %v567
        %v679 = vpop.permute.xlu0 %678
        %682 = vset.pattern.permute.xlu0 3
        %683 = vperm.xlu0 %682, %v568
        %v684 = vpop.permute.xlu0 %683
        %v686 = vlaneseq
        %v687 = vshrl.u32 %v686, 7
        %v688 = vsub.s32 0, %v687
        %v689 = vrot.slane %v671, %v688
        %v690 = vsub.f32 %v679, %v689
        %v691 = vsub.f32 %v684, %v689
        %v692 = vsel %vm674, %v690, -1e+30
        %v693 = vsel %vm675, %v691, -1e+30
        %v694 = vmul.f32 %v692, 1.442695
        %v695 = vpow.pop %v694
        %v696 = vmul.f32 %v693, 1.442695
        %v697 = vpow.pop %v696
        %v698 = vld [vmem:[%s427] sm:$0xff]
        %v699 = vld [vmem:[%s427 + $0x8] sm:$0xff]
        %v700 = vld [vmem:[%s427 + $0x10] sm:$0xff]
        %v701 = vld [vmem:[%s427 + $0x18] sm:$0xff]
        %v702 = vld [vmem:[%s436] sm:$0xff]
        %v703 = vld [vmem:[%s436 + $0x8] sm:$0xff]
        %v705 = vsel %vm600, %v454, 0
        %v708 = vsel %vm600, %v455, 0
        %v711 = vsel %vm600, %v698, 0
        %v714 = vsel %vm600, %v699, 0
        %v717 = vsel %vm600, %v700, 0
        %v720 = vsel %vm600, %v701, 0
        %722 = vmatprep.subr.mxu0 0.0
        %723 = vmatpush1.xpose.msra.mxu0 0.0
        %724 = vmatprep.subr.mxu0 0.0
        %725 = vmatpush1.xpose.msra.mxu0 0.0
        %726 = vmatprep.subr.mxu0 0.0
        %727 = vmatpush1.xpose.msra.mxu0 0.0
        %728 = vmatprep.subr.mxu0 0.0
        %729 = vmatpush1.xpose.msra.mxu0 0.0
        %730 = vmatprep.subr.mxu0 0.0
        %731 = vmatpush1.xpose.msra.mxu0 0.0
        %732 = vmatprep.subr.mxu0 0.0
        %733 = vmatpush1.xpose.msra.mxu0 0.0
        %734 = vmatprep.subr.mxu0 0.0
        %735 = vmatpush1.xpose.msra.mxu0 0.0
        %736 = vmatprep.subr.mxu0 0.0
        %737 = vmatpush1.xpose.msra.mxu0 0.0
        %738 = vmatprep.subr.mxu0 0.0
        %739 = vmatpush1.xpose.msra.mxu0 0.0
        %740 = vmatprep.subr.mxu0 0.0
        %741 = vmatpush1.xpose.msra.mxu0 0.0
        %742 = vmatprep.subr.mxu0 0.0
        %743 = vmatpush1.xpose.msra.mxu0 0.0
        %744 = vmatprep.subr.mxu0 0.0
        %745 = vmatpush1.xpose.msra.mxu0 0.0
        %746 = vmatprep.subr.mxu0 0.0
        %747 = vmatpush1.xpose.msra.mxu0 %v720
        %748 = vmatprep.subr.mxu0 0.0
        %749 = vmatpush1.xpose.msra.mxu0 %v717
        %750 = vmatprep.subr.mxu0 0.0
        %751 = vmatpush1.xpose.msra.mxu0 %v714
        %752 = vmatprep.subr.mxu0 0.0
        %753 = vmatpush1.xpose.msra.mxu0 %v711
        %754 = vmatprep.subr.mxu0 0.0
        %755 = vmatpush2.xpose.msra.mxu0 0.0
        %756 = vmatprep.subr.mxu0 0.0
        %757 = vmatpush2.xpose.msra.mxu0 0.0
        %758 = vmatprep.subr.mxu0 0.0
        %759 = vmatpush2.xpose.msra.mxu0 0.0
        %760 = vmatprep.subr.mxu0 0.0
        %761 = vmatpush2.xpose.msra.mxu0 0.0
        %762 = vmatprep.subr.mxu0 0.0
        %763 = vmatpush2.xpose.msra.mxu0 0.0
        %764 = vmatprep.subr.mxu0 0.0
        %765 = vmatpush2.xpose.msra.mxu0 0.0
        %766 = vmatprep.subr.mxu0 0.0
        %767 = vmatpush2.xpose.msra.mxu0 0.0
        %768 = vmatprep.subr.mxu0 0.0
        %769 = vmatpush2.xpose.msra.mxu0 0.0
        %770 = vmatprep.subr.mxu0 0.0
        %771 = vmatpush2.xpose.msra.mxu0 0.0
        %772 = vmatprep.subr.mxu0 0.0
        %773 = vmatpush2.xpose.msra.mxu0 0.0
        %774 = vmatprep.subr.mxu0 0.0
        %775 = vmatpush2.xpose.msra.mxu0 0.0
        %776 = vmatprep.subr.mxu0 0.0
        %777 = vmatpush2.xpose.msra.mxu0 0.0
        %778 = vmatprep.subr.mxu0 0.0
        %779 = vmatpush2.xpose.msra.mxu0 0.0
        %780 = vmatprep.subr.mxu0 0.0
        %781 = vmatpush2.xpose.msra.mxu0 0.0
        %782 = vmatprep.subr.mxu0 0.0
        %783 = vmatpush2.xpose.msra.mxu0 0.0
        %784 = vmatprep.subr.mxu0 0.0
        %785 = vmatpush2.xpose.msra.mxu0 0.0
        %786 = vmatprep.mubr.f32.mxu0 0.0
        %787 = vmatmul.mubr.f32.gmra.mxu0 %v705
        %v788 = vpop.f32.mrf.mxu0
        %v789 = vadd.f32 0.0, %v788
        %v790 = vpop.f32.mrf.mxu0
        %791 = vmatprep.mubr.f32.mxu0 0.0
        %792 = vmatmul.mubr.f32.gmra.mxu0 %v708
        %v793 = vpop.f32.mrf.mxu0
        %v794 = vadd.f32 0.0, %v793
        %v795 = vpop.f32.mrf.mxu0
        %796 = vdwg.mxu0
        %v797 = vsub.f32 0.0, %v789
        %v798 = vsub.f32 0.0, %v794
        %v799 = vmul.f32 %v797, 1.442695
        %v800 = vpow.pop %v799
        %v801 = vmul.f32 %v798, 1.442695
        %v802 = vpow.pop %v801
        %v803 = vadd.f32 %v800, 1.0
        %v804 = vadd.f32 %v802, 1.0
        %v805 = vrcp.pop %v803
        %v806 = vmul.f32 1.0, %v805
        %v807 = vrcp.pop %v804
        %v808 = vmul.f32 1.0, %v807
        %v809 = vmul.f32 %v789, %v806
        %v810 = vmul.f32 %v794, %v808
        %vm811 = vcmask 261120
        %v813 = vsel %vm811, %v809, 0
        %v816 = vsel %vm811, %v810, 0
        %v819 = vsel %vm811, %v702, 0
        %v822 = vsel %vm811, %v703, 0
        %824 = vmatprep.subr.mxu0 0.0
        %825 = vmatpush1.xpose.msra.mxu0 0.0
        %826 = vmatprep.subr.mxu0 0.0
        %827 = vmatpush1.xpose.msra.mxu0 0.0
        %828 = vmatprep.subr.mxu0 0.0
        %829 = vmatpush1.xpose.msra.mxu0 0.0
        %830 = vmatprep.subr.mxu0 0.0
        %831 = vmatpush1.xpose.msra.mxu0 0.0
        %832 = vmatprep.subr.mxu0 0.0
        %833 = vmatpush1.xpose.msra.mxu0 0.0
        %834 = vmatprep.subr.mxu0 0.0
        %835 = vmatpush1.xpose.msra.mxu0 0.0
        %836 = vmatprep.subr.mxu0 0.0
        %837 = vmatpush1.xpose.msra.mxu0 0.0
        %838 = vmatprep.subr.mxu0 0.0
        %839 = vmatpush1.xpose.msra.mxu0 0.0
        %840 = vmatprep.subr.mxu0 0.0
        %841 = vmatpush1.xpose.msra.mxu0 0.0
        %842 = vmatprep.subr.mxu0 0.0
        %843 = vmatpush1.xpose.msra.mxu0 0.0
        %844 = vmatprep.subr.mxu0 0.0
        %845 = vmatpush1.xpose.msra.mxu0 0.0
        %846 = vmatprep.subr.mxu0 0.0
        %847 = vmatpush1.xpose.msra.mxu0 0.0
        %848 = vmatprep.subr.mxu0 0.0
        %849 = vmatpush1.xpose.msra.mxu0 0.0
        %850 = vmatprep.subr.mxu0 0.0
        %851 = vmatpush1.xpose.msra.mxu0 0.0
        %852 = vmatprep.subr.mxu0 0.0
        %853 = vmatpush1.xpose.msra.mxu0 %v822
        %854 = vmatprep.subr.mxu0 0.0
        %855 = vmatpush1.xpose.msra.mxu0 %v819
        %856 = vmatprep.subr.mxu0 0.0
        %857 = vmatpush2.xpose.msra.mxu0 0.0
        %858 = vmatprep.subr.mxu0 0.0
        %859 = vmatpush2.xpose.msra.mxu0 0.0
        %860 = vmatprep.subr.mxu0 0.0
        %861 = vmatpush2.xpose.msra.mxu0 0.0
        %862 = vmatprep.subr.mxu0 0.0
        %863 = vmatpush2.xpose.msra.mxu0 0.0
        %864 = vmatprep.subr.mxu0 0.0
        %865 = vmatpush2.xpose.msra.mxu0 0.0
        %866 = vmatprep.subr.mxu0 0.0
        %867 = vmatpush2.xpose.msra.mxu0 0.0
        %868 = vmatprep.subr.mxu0 0.0
        %869 = vmatpush2.xpose.msra.mxu0 0.0
        %870 = vmatprep.subr.mxu0 0.0
        %871 = vmatpush2.xpose.msra.mxu0 0.0
        %872 = vmatprep.subr.mxu0 0.0
        %873 = vmatpush2.xpose.msra.mxu0 0.0
        %874 = vmatprep.subr.mxu0 0.0
        %875 = vmatpush2.xpose.msra.mxu0 0.0
        %876 = vmatprep.subr.mxu0 0.0
        %877 = vmatpush2.xpose.msra.mxu0 0.0
        %878 = vmatprep.subr.mxu0 0.0
        %879 = vmatpush2.xpose.msra.mxu0 0.0
        %880 = vmatprep.subr.mxu0 0.0
        %881 = vmatpush2.xpose.msra.mxu0 0.0
        %882 = vmatprep.subr.mxu0 0.0
        %883 = vmatpush2.xpose.msra.mxu0 0.0
        %884 = vmatprep.subr.mxu0 0.0
        %885 = vmatpush2.xpose.msra.mxu0 0.0
        %886 = vmatprep.subr.mxu0 0.0
        %887 = vmatpush2.xpose.msra.mxu0 0.0
        %888 = vmatprep.mubr.f32.mxu0 0.0
        %889 = vmatmul.mubr.f32.gmra.mxu0 %v813
        %v890 = vpop.f32.mrf.mxu0
        %v891 = vadd.f32 0.0, %v890
        %v892 = vpop.f32.mrf.mxu0
        %893 = vmatprep.mubr.f32.mxu0 0.0
        %894 = vmatmul.mubr.f32.gmra.mxu0 %v816
        %v895 = vpop.f32.mrf.mxu0
        %v896 = vadd.f32 0.0, %v895
        %v897 = vpop.f32.mrf.mxu0
        %898 = vdwg.mxu0
        %v899 = vsub.f32 %v891, %v456
        %v900 = vsub.f32 %v896, %v457
        %v902 = vsel %vm600, %v899, 0
        %v905 = vsel %vm600, %v900, 0
        %907 = vmatprep.subr.mxu0 0.0
        %908 = vmatpush1.msra.mxu0 0.0
        %909 = vmatprep.subr.mxu0 0.0
        %910 = vmatpush1.msra.mxu0 0.0
        %911 = vmatprep.subr.mxu0 0.0
        %912 = vmatpush1.msra.mxu0 0.0
        %913 = vmatprep.subr.mxu0 0.0
        %914 = vmatpush1.msra.mxu0 0.0
        %915 = vmatprep.subr.mxu0 0.0
        %916 = vmatpush1.msra.mxu0 0.0
        %917 = vmatprep.subr.mxu0 0.0
        %918 = vmatpush1.msra.mxu0 0.0
        %919 = vmatprep.subr.mxu0 0.0
        %920 = vmatpush1.msra.mxu0 0.0
        %921 = vmatprep.subr.mxu0 0.0
        %922 = vmatpush1.msra.mxu0 0.0
        %923 = vmatprep.subr.mxu0 0.0
        %924 = vmatpush1.msra.mxu0 0.0
        %925 = vmatprep.subr.mxu0 0.0
        %926 = vmatpush1.msra.mxu0 0.0
        %927 = vmatprep.subr.mxu0 0.0
        %928 = vmatpush1.msra.mxu0 0.0
        %929 = vmatprep.subr.mxu0 0.0
        %930 = vmatpush1.msra.mxu0 0.0
        %931 = vmatprep.subr.mxu0 0.0
        %932 = vmatpush1.msra.mxu0 0.0
        %933 = vmatprep.subr.mxu0 0.0
        %934 = vmatpush1.msra.mxu0 0.0
        %935 = vmatprep.subr.mxu0 0.0
        %936 = vmatpush1.msra.mxu0 %v703
        %937 = vmatprep.subr.mxu0 0.0
        %938 = vmatpush1.msra.mxu0 %v702
        %939 = vmatprep.subr.mxu0 0.0
        %940 = vmatpush2.msra.mxu0 0.0
        %941 = vmatprep.subr.mxu0 0.0
        %942 = vmatpush2.msra.mxu0 0.0
        %943 = vmatprep.subr.mxu0 0.0
        %944 = vmatpush2.msra.mxu0 0.0
        %945 = vmatprep.subr.mxu0 0.0
        %946 = vmatpush2.msra.mxu0 0.0
        %947 = vmatprep.subr.mxu0 0.0
        %948 = vmatpush2.msra.mxu0 0.0
        %949 = vmatprep.subr.mxu0 0.0
        %950 = vmatpush2.msra.mxu0 0.0
        %951 = vmatprep.subr.mxu0 0.0
        %952 = vmatpush2.msra.mxu0 0.0
        %953 = vmatprep.subr.mxu0 0.0
        %954 = vmatpush2.msra.mxu0 0.0
        %955 = vmatprep.subr.mxu0 0.0
        %956 = vmatpush2.msra.mxu0 0.0
        %957 = vmatprep.subr.mxu0 0.0
        %958 = vmatpush2.msra.mxu0 0.0
        %959 = vmatprep.subr.mxu0 0.0
        %960 = vmatpush2.msra.mxu0 0.0
        %961 = vmatprep.subr.mxu0 0.0
        %962 = vmatpush2.msra.mxu0 0.0
        %963 = vmatprep.subr.mxu0 0.0
        %964 = vmatpush2.msra.mxu0 0.0
        %965 = vmatprep.subr.mxu0 0.0
        %966 = vmatpush2.msra.mxu0 0.0
        %967 = vmatprep.subr.mxu0 0.0
        %968 = vmatpush2.msra.mxu0 0.0
        %969 = vmatprep.subr.mxu0 0.0
        %970 = vmatpush2.msra.mxu0 0.0
        %971 = vmatprep.mubr.f32.mxu0 0.0
        %972 = vmatmul.mubr.f32.gmra.mxu0 %v902
        %v973 = vpop.f32.mrf.mxu0
        %v974 = vadd.f32 0.0, %v973
        %v975 = vpop.f32.mrf.mxu0
        %976 = vmatprep.mubr.f32.mxu0 0.0
        %977 = vmatmul.mubr.f32.gmra.mxu0 %v905
        %v978 = vpop.f32.mrf.mxu0
        %v979 = vadd.f32 0.0, %v978
        %v980 = vpop.f32.mrf.mxu0
        %981 = vdwg.mxu0
        %v982 = vsub.f32 1.0, %v809
        %v983 = vsub.f32 1.0, %v810
        %v984 = vmul.f32 %v806, %v982
        %v985 = vmul.f32 %v808, %v983
        %v986 = vadd.f32 %v809, %v984
        %v987 = vadd.f32 %v810, %v985
        %v988 = vmul.f32 %v986, %v974
        %v989 = vmul.f32 %v987, %v979
        %991 = vset.pattern.permute.xlu0 2
        %992 = vperm.xlu0 %991, %v484
        %v993 = vpop.permute.xlu0 %992
        %996 = vset.pattern.permute.xlu0 2
        %997 = vperm.xlu0 %996, %v485
        %v998 = vpop.permute.xlu0 %997
        %v1000 = vmul.f32 %v988, %v993
        %v1001 = vmul.f32 %v989, %v998
        %v1002 = vmul.f32 %v899, %v993
        %v1003 = vmul.f32 %v900, %v998
        %1006 = vrot.lane.b32.xlu0 %v580, 127
        %v1007 = vpop.permute.xlu0 %1006
        %1008 = vrot.lane.b32.xlu0 %v582, 127
        %v1009 = vpop.permute.xlu0 %1008
        %v1012 = vmul.f32 %v484, %v1007
        %v1013 = vmul.f32 %v485, %v1009
        %1015 = vset.pattern.permute.xlu0 2
        %1016 = vperm.xlu0 %1015, %v1012
        %v1017 = vpop.permute.xlu0 %1016
        %1020 = vset.pattern.permute.xlu0 2
        %1021 = vperm.xlu0 %1020, %v1013
        %v1022 = vpop.permute.xlu0 %1021
        %v1024 = vmul.f32 %v988, %v1017
        %v1025 = vmul.f32 %v989, %v1022
        %v1026 = vmul.f32 %v899, %v1017
        %v1027 = vmul.f32 %v900, %v1022
        %v1029 = vrot.slane %v572, 7
        %1030 = vrot.lane.b32.xlu0 %v1029, 125
        %v1031 = vpop.permute.xlu0 %1030
        %s1032 = vtos %v1031
        %v1033 = vstv %s1032
        %v1035 = vmul.f32 %v698, %v1033
        %v1036 = vmul.f32 %v699, %v1033
        %v1037 = vmul.f32 %v700, %v1033
        %v1038 = vmul.f32 %v701, %v1033
        %1039 = vxpose.xlu0.b32.start [1/16] %v1024, 128
        %1040 = vxpose.xlu0.b32.cont [2/16] %v1025, 128
        %1041 = vxpose.xlu0.b32.cont [3/16] 0.0, 128
        %1042 = vxpose.xlu0.b32.cont [4/16] 0.0, 128
        %1043 = vxpose.xlu0.b32.cont [5/16] 0.0, 128
        %1044 = vxpose.xlu0.b32.cont [6/16] 0.0, 128
        %1045 = vxpose.xlu0.b32.cont [7/16] 0.0, 128
        %1046 = vxpose.xlu0.b32.cont [8/16] 0.0, 128
        %1047 = vxpose.xlu0.b32.cont [9/16] 0.0, 128
        %1048 = vxpose.xlu0.b32.cont [10/16] 0.0, 128
        %1049 = vxpose.xlu0.b32.cont [11/16] 0.0, 128
        %1050 = vxpose.xlu0.b32.cont [12/16] 0.0, 128
        %1051 = vxpose.xlu0.b32.cont [13/16] 0.0, 128
        %1052 = vxpose.xlu0.b32.cont [14/16] 0.0, 128
        %1053 = vxpose.xlu0.b32.cont [15/16] 0.0, 128
        %1054 = vxpose.xlu0.b32.end [16/16] 0.0, 128
        %v1055 = vpop.trf.xlu0
        %v1056 = vpop.trf.xlu0
        %v1057 = vpop.trf.xlu0
        %v1058 = vpop.trf.xlu0
        %v1059 = vpop.trf.xlu0
        %v1060 = vpop.trf.xlu0
        %v1061 = vpop.trf.xlu0
        %v1062 = vpop.trf.xlu0
        %v1063 = vpop.trf.xlu0
        %v1064 = vpop.trf.xlu0
        %v1065 = vpop.trf.xlu0
        %v1066 = vpop.trf.xlu0
        %v1067 = vpop.trf.xlu0
        %v1068 = vpop.trf.xlu0
        %v1069 = vpop.trf.xlu0
        %v1070 = vpop.trf.xlu0
        %v1072 = vsel %vm600, %v1055, 0
        %v1075 = vsel %vm600, %v1056, 0
        %v1078 = vsel %vm600, %v1057, 0
        %v1081 = vsel %vm600, %v1058, 0
        %1083 = vmatprep.subr.mxu0 0.0
        %1084 = vmatpush1.msra.mxu0 0.0
        %1085 = vmatprep.subr.mxu0 0.0
        %1086 = vmatpush1.msra.mxu0 0.0
        %1087 = vmatprep.subr.mxu0 0.0
        %1088 = vmatpush1.msra.mxu0 0.0
        %1089 = vmatprep.subr.mxu0 0.0
        %1090 = vmatpush1.msra.mxu0 0.0
        %1091 = vmatprep.subr.mxu0 0.0
        %1092 = vmatpush1.msra.mxu0 0.0
        %1093 = vmatprep.subr.mxu0 0.0
        %1094 = vmatpush1.msra.mxu0 0.0
        %1095 = vmatprep.subr.mxu0 0.0
        %1096 = vmatpush1.msra.mxu0 0.0
        %1097 = vmatprep.subr.mxu0 0.0
        %1098 = vmatpush1.msra.mxu0 0.0
        %1099 = vmatprep.subr.mxu0 0.0
        %1100 = vmatpush1.msra.mxu0 0.0
        %1101 = vmatprep.subr.mxu0 0.0
        %1102 = vmatpush1.msra.mxu0 0.0
        %1103 = vmatprep.subr.mxu0 0.0
        %1104 = vmatpush1.msra.mxu0 0.0
        %1105 = vmatprep.subr.mxu0 0.0
        %1106 = vmatpush1.msra.mxu0 0.0
        %1107 = vmatprep.subr.mxu0 0.0
        %1108 = vmatpush1.msra.mxu0 0.0
        %1109 = vmatprep.subr.mxu0 0.0
        %1110 = vmatpush1.msra.mxu0 0.0
        %1111 = vmatprep.subr.mxu0 0.0
        %1112 = vmatpush1.msra.mxu0 %v455
        %1113 = vmatprep.subr.mxu0 0.0
        %1114 = vmatpush1.msra.mxu0 %v454
        %1115 = vmatprep.subr.mxu0 0.0
        %1116 = vmatpush2.msra.mxu0 0.0
        %1117 = vmatprep.subr.mxu0 0.0
        %1118 = vmatpush2.msra.mxu0 0.0
        %1119 = vmatprep.subr.mxu0 0.0
        %1120 = vmatpush2.msra.mxu0 0.0
        %1121 = vmatprep.subr.mxu0 0.0
        %1122 = vmatpush2.msra.mxu0 0.0
        %1123 = vmatprep.subr.mxu0 0.0
        %1124 = vmatpush2.msra.mxu0 0.0
        %1125 = vmatprep.subr.mxu0 0.0
        %1126 = vmatpush2.msra.mxu0 0.0
        %1127 = vmatprep.subr.mxu0 0.0
        %1128 = vmatpush2.msra.mxu0 0.0
        %1129 = vmatprep.subr.mxu0 0.0
        %1130 = vmatpush2.msra.mxu0 0.0
        %1131 = vmatprep.subr.mxu0 0.0
        %1132 = vmatpush2.msra.mxu0 0.0
        %1133 = vmatprep.subr.mxu0 0.0
        %1134 = vmatpush2.msra.mxu0 0.0
        %1135 = vmatprep.subr.mxu0 0.0
        %1136 = vmatpush2.msra.mxu0 0.0
        %1137 = vmatprep.subr.mxu0 0.0
        %1138 = vmatpush2.msra.mxu0 0.0
        %1139 = vmatprep.subr.mxu0 0.0
        %1140 = vmatpush2.msra.mxu0 0.0
        %1141 = vmatprep.subr.mxu0 0.0
        %1142 = vmatpush2.msra.mxu0 0.0
        %1143 = vmatprep.subr.mxu0 0.0
        %1144 = vmatpush2.msra.mxu0 0.0
        %1145 = vmatprep.subr.mxu0 0.0
        %1146 = vmatpush2.msra.mxu0 0.0
        %1147 = vmatprep.mubr.f32.mxu0 0.0
        %1148 = vmatmul.mubr.f32.gmra.mxu0 %v1072
        %v1149 = vpop.f32.mrf.mxu0
        %v1150 = vadd.f32 0.0, %v1149
        %v1151 = vpop.f32.mrf.mxu0
        %1152 = vmatprep.mubr.f32.mxu0 0.0
        %1153 = vmatmul.mubr.f32.gmra.mxu0 %v1075
        %v1154 = vpop.f32.mrf.mxu0
        %v1155 = vadd.f32 0.0, %v1154
        %v1156 = vpop.f32.mrf.mxu0
        %1157 = vmatprep.mubr.f32.mxu0 0.0
        %1158 = vmatmul.mubr.f32.gmra.mxu0 %v1078
        %v1159 = vpop.f32.mrf.mxu0
        %v1160 = vadd.f32 0.0, %v1159
        %v1161 = vpop.f32.mrf.mxu0
        %1162 = vmatprep.mubr.f32.mxu0 0.0
        %1163 = vmatmul.mubr.f32.gmra.mxu0 %v1081
        %v1164 = vpop.f32.mrf.mxu0
        %v1165 = vadd.f32 0.0, %v1164
        %v1166 = vpop.f32.mrf.mxu0
        %1167 = vdwg.mxu0
        %v1168 = vsub.f32 %v1035, %v1150
        %v1169 = vsub.f32 %v1036, %v1155
        %v1170 = vsub.f32 %v1037, %v1160
        %v1171 = vsub.f32 %v1038, %v1165
        %1172 = vst.msk [vmem:[%s450] sm:$0xff] %vm600, %v1168
        %1173 = vst.msk [vmem:[%s450 + $0x8] sm:$0xff] %vm600, %v1169
        %1174 = vst.msk [vmem:[%s450 + $0x10] sm:$0xff] %vm600, %v1170
        %1175 = vst.msk [vmem:[%s450 + $0x18] sm:$0xff] %vm600, %v1171
        %v1176 = vmul.f32 %v702, %v1033
        %v1177 = vmul.f32 %v703, %v1033
        %1178 = vxpose.xlu0.b32.start [1/16] %v1026, 128
        %1179 = vxpose.xlu0.b32.cont [2/16] %v1027, 128
        %1180 = vxpose.xlu0.b32.cont [3/16] 0.0, 128
        %1181 = vxpose.xlu0.b32.cont [4/16] 0.0, 128
        %1182 = vxpose.xlu0.b32.cont [5/16] 0.0, 128
        %1183 = vxpose.xlu0.b32.cont [6/16] 0.0, 128
        %1184 = vxpose.xlu0.b32.cont [7/16] 0.0, 128
        %1185 = vxpose.xlu0.b32.cont [8/16] 0.0, 128
        %1186 = vxpose.xlu0.b32.cont [9/16] 0.0, 128
        %1187 = vxpose.xlu0.b32.cont [10/16] 0.0, 128
        %1188 = vxpose.xlu0.b32.cont [11/16] 0.0, 128
        %1189 = vxpose.xlu0.b32.cont [12/16] 0.0, 128
        %1190 = vxpose.xlu0.b32.cont [13/16] 0.0, 128
        %1191 = vxpose.xlu0.b32.cont [14/16] 0.0, 128
        %1192 = vxpose.xlu0.b32.cont [15/16] 0.0, 128
        %1193 = vxpose.xlu0.b32.end [16/16] 0.0, 128
        %v1194 = vpop.trf.xlu0
        %v1195 = vpop.trf.xlu0
        %v1196 = vpop.trf.xlu0
        %v1197 = vpop.trf.xlu0
        %v1198 = vpop.trf.xlu0
        %v1199 = vpop.trf.xlu0
        %v1200 = vpop.trf.xlu0
        %v1201 = vpop.trf.xlu0
        %v1202 = vpop.trf.xlu0
        %v1203 = vpop.trf.xlu0
        %v1204 = vpop.trf.xlu0
        %v1205 = vpop.trf.xlu0
        %v1206 = vpop.trf.xlu0
        %v1207 = vpop.trf.xlu0
        %v1208 = vpop.trf.xlu0
        %v1209 = vpop.trf.xlu0
        %v1211 = vsel %vm600, %v1194, 0
        %v1214 = vsel %vm600, %v1195, 0
        %1216 = vmatprep.subr.mxu0 0.0
        %1217 = vmatpush1.msra.mxu0 0.0
        %1218 = vmatprep.subr.mxu0 0.0
        %1219 = vmatpush1.msra.mxu0 0.0
        %1220 = vmatprep.subr.mxu0 0.0
        %1221 = vmatpush1.msra.mxu0 0.0
        %1222 = vmatprep.subr.mxu0 0.0
        %1223 = vmatpush1.msra.mxu0 0.0
        %1224 = vmatprep.subr.mxu0 0.0
        %1225 = vmatpush1.msra.mxu0 0.0
        %1226 = vmatprep.subr.mxu0 0.0
        %1227 = vmatpush1.msra.mxu0 0.0
        %1228 = vmatprep.subr.mxu0 0.0
        %1229 = vmatpush1.msra.mxu0 0.0
        %1230 = vmatprep.subr.mxu0 0.0
        %1231 = vmatpush1.msra.mxu0 0.0
        %1232 = vmatprep.subr.mxu0 0.0
        %1233 = vmatpush1.msra.mxu0 0.0
        %1234 = vmatprep.subr.mxu0 0.0
        %1235 = vmatpush1.msra.mxu0 0.0
        %1236 = vmatprep.subr.mxu0 0.0
        %1237 = vmatpush1.msra.mxu0 0.0
        %1238 = vmatprep.subr.mxu0 0.0
        %1239 = vmatpush1.msra.mxu0 0.0
        %1240 = vmatprep.subr.mxu0 0.0
        %1241 = vmatpush1.msra.mxu0 0.0
        %1242 = vmatprep.subr.mxu0 0.0
        %1243 = vmatpush1.msra.mxu0 0.0
        %1244 = vmatprep.subr.mxu0 0.0
        %1245 = vmatpush1.msra.mxu0 %v810
        %1246 = vmatprep.subr.mxu0 0.0
        %1247 = vmatpush1.msra.mxu0 %v809
        %1248 = vmatprep.subr.mxu0 0.0
        %1249 = vmatpush2.msra.mxu0 0.0
        %1250 = vmatprep.subr.mxu0 0.0
        %1251 = vmatpush2.msra.mxu0 0.0
        %1252 = vmatprep.subr.mxu0 0.0
        %1253 = vmatpush2.msra.mxu0 0.0
        %1254 = vmatprep.subr.mxu0 0.0
        %1255 = vmatpush2.msra.mxu0 0.0
        %1256 = vmatprep.subr.mxu0 0.0
        %1257 = vmatpush2.msra.mxu0 0.0
        %1258 = vmatprep.subr.mxu0 0.0
        %1259 = vmatpush2.msra.mxu0 0.0
        %1260 = vmatprep.subr.mxu0 0.0
        %1261 = vmatpush2.msra.mxu0 0.0
        %1262 = vmatprep.subr.mxu0 0.0
        %1263 = vmatpush2.msra.mxu0 0.0
        %1264 = vmatprep.subr.mxu0 0.0
        %1265 = vmatpush2.msra.mxu0 0.0
        %1266 = vmatprep.subr.mxu0 0.0
        %1267 = vmatpush2.msra.mxu0 0.0
        %1268 = vmatprep.subr.mxu0 0.0
        %1269 = vmatpush2.msra.mxu0 0.0
        %1270 = vmatprep.subr.mxu0 0.0
        %1271 = vmatpush2.msra.mxu0 0.0
        %1272 = vmatprep.subr.mxu0 0.0
        %1273 = vmatpush2.msra.mxu0 0.0
        %1274 = vmatprep.subr.mxu0 0.0
        %1275 = vmatpush2.msra.mxu0 0.0
        %1276 = vmatprep.subr.mxu0 0.0
        %1277 = vmatpush2.msra.mxu0 0.0
        %1278 = vmatprep.subr.mxu0 0.0
        %1279 = vmatpush2.msra.mxu0 0.0
        %1280 = vmatprep.mubr.f32.mxu0 0.0
        %1281 = vmatmul.mubr.f32.gmra.mxu0 %v1211
        %v1282 = vpop.f32.mrf.mxu0
        %v1283 = vadd.f32 0.0, %v1282
        %v1284 = vpop.f32.mrf.mxu0
        %1285 = vmatprep.mubr.f32.mxu0 0.0
        %1286 = vmatmul.mubr.f32.gmra.mxu0 %v1214
        %v1287 = vpop.f32.mrf.mxu0
        %v1288 = vadd.f32 0.0, %v1287
        %v1289 = vpop.f32.mrf.mxu0
        %1290 = vdwg.mxu0
        %v1291 = vsub.f32 %v1176, %v1283
        %v1292 = vsub.f32 %v1177, %v1288
        %1293 = vst.msk [vmem:[%s417] sm:$0xff] %vm811, %v1291
        %1294 = vst.msk [vmem:[%s417 + $0x8] sm:$0xff] %vm811, %v1292
        %v1295 = vpack.c.bf16 %v453, %v452
        %v1296 = vpack.c.bf16 %v455, %v454
        %v1297 = vpack.c.bf16 %v699, %v698
        %v1298 = vpack.c.bf16 %v701, %v700
        %v1299 = vpack.c.bf16 %v703, %v702
        %v1301 = vsel %vm600, %v1295, 0
        %v1304 = vsel %vm600, %v1296, 0
        %1306 = vmatprep.subr.bf16.mxu0 0
        %1307 = vmatpush1.bf16.xpose.msra.mxu0 0
        %1308 = vmatprep.subr.bf16.mxu0 0
        %1309 = vmatpush1.bf16.xpose.msra.mxu0 0
        %1310 = vmatprep.subr.bf16.mxu0 0
        %1311 = vmatpush1.bf16.xpose.msra.mxu0 0
        %1312 = vmatprep.subr.bf16.mxu0 0
        %1313 = vmatpush1.bf16.xpose.msra.mxu0 0
        %1314 = vmatprep.subr.bf16.mxu0 0
        %1315 = vmatpush1.bf16.xpose.msra.mxu0 0
        %1316 = vmatprep.subr.bf16.mxu0 0
        %1317 = vmatpush1.bf16.xpose.msra.mxu0 0
        %1318 = vmatprep.subr.bf16.mxu0 0
        %1319 = vmatpush1.bf16.xpose.msra.mxu0 0
        %1320 = vmatprep.subr.bf16.mxu0 0
        %1321 = vmatpush1.bf16.xpose.msra.mxu0 %v1304
        %1322 = vmatprep.subr.bf16.mxu0 0
        %1323 = vmatpush2.bf16.xpose.msra.mxu0 0
        %1324 = vmatprep.subr.bf16.mxu0 0
        %1325 = vmatpush2.bf16.xpose.msra.mxu0 0
        %1326 = vmatprep.subr.bf16.mxu0 0
        %1327 = vmatpush2.bf16.xpose.msra.mxu0 0
        %1328 = vmatprep.subr.bf16.mxu0 0
        %1329 = vmatpush2.bf16.xpose.msra.mxu0 0
        %1330 = vmatprep.subr.bf16.mxu0 0
        %1331 = vmatpush2.bf16.xpose.msra.mxu0 0
        %1332 = vmatprep.subr.bf16.mxu0 0
        %1333 = vmatpush2.bf16.xpose.msra.mxu0 0
        %1334 = vmatprep.subr.bf16.mxu0 0
        %1335 = vmatpush2.bf16.xpose.msra.mxu0 0
        %1336 = vmatprep.subr.bf16.mxu0 0
        %1337 = vmatpush2.bf16.xpose.msra.mxu0 0
        %1338 = vmatprep.mubr.bf16.mxu0 0
        %1339 = vmatmul.mubr.bf16.gmra.mxu0 %v1301
        %v1340 = vpop.f32.mrf.mxu0
        %v1341 = vadd.f32 0.0, %v1340
        %v1342 = vpop.f32.mrf.mxu0
        %v1343 = vpop.f32.mrf.mxu0
        %v1344 = vadd.f32 0.0, %v1343
        %v1345 = vpop.f32.mrf.mxu0
        %1346 = vdwg.mxu0
        %v1348 = vsel %vm600, %v1297, 0
        %v1351 = vsel %vm600, %v1298, 0
        %1353 = vmatprep.subr.bf16.mxu0 0
        %1354 = vmatpush1.bf16.xpose.msra.mxu0 0
        %1355 = vmatprep.subr.bf16.mxu0 0
        %1356 = vmatpush1.bf16.xpose.msra.mxu0 0
        %1357 = vmatprep.subr.bf16.mxu0 0
        %1358 = vmatpush1.bf16.xpose.msra.mxu0 0
        %1359 = vmatprep.subr.bf16.mxu0 0
        %1360 = vmatpush1.bf16.xpose.msra.mxu0 0
        %1361 = vmatprep.subr.bf16.mxu0 0
        %1362 = vmatpush1.bf16.xpose.msra.mxu0 0
        %1363 = vmatprep.subr.bf16.mxu0 0
        %1364 = vmatpush1.bf16.xpose.msra.mxu0 0
        %1365 = vmatprep.subr.bf16.mxu0 0
        %1366 = vmatpush1.bf16.xpose.msra.mxu0 %v1351
        %1367 = vmatprep.subr.bf16.mxu0 0
        %1368 = vmatpush1.bf16.xpose.msra.mxu0 %v1348
        %1369 = vmatprep.subr.bf16.mxu0 0
        %1370 = vmatpush2.bf16.xpose.msra.mxu0 0
        %1371 = vmatprep.subr.bf16.mxu0 0
        %1372 = vmatpush2.bf16.xpose.msra.mxu0 0
        %1373 = vmatprep.subr.bf16.mxu0 0
        %1374 = vmatpush2.bf16.xpose.msra.mxu0 0
        %1375 = vmatprep.subr.bf16.mxu0 0
        %1376 = vmatpush2.bf16.xpose.msra.mxu0 0
        %1377 = vmatprep.subr.bf16.mxu0 0
        %1378 = vmatpush2.bf16.xpose.msra.mxu0 0
        %1379 = vmatprep.subr.bf16.mxu0 0
        %1380 = vmatpush2.bf16.xpose.msra.mxu0 0
        %1381 = vmatprep.subr.bf16.mxu0 0
        %1382 = vmatpush2.bf16.xpose.msra.mxu0 0
        %1383 = vmatprep.subr.bf16.mxu0 0
        %1384 = vmatpush2.bf16.xpose.msra.mxu0 0
        %1385 = vmatprep.mubr.bf16.mxu0 0
        %1386 = vmatmul.mubr.bf16.gmra.mxu0 %v1301
        %v1387 = vpop.f32.mrf.mxu0
        %v1388 = vadd.f32 0.0, %v1387
        %v1389 = vpop.f32.mrf.mxu0
        %v1390 = vpop.f32.mrf.mxu0
        %v1391 = vadd.f32 0.0, %v1390
        %v1392 = vpop.f32.mrf.mxu0
        %1393 = vdwg.mxu0
        %1395 = vset.pattern.permute.xlu0 3
        %1396 = vperm.xlu0 %1395, %v570
        %v1397 = vpop.permute.xlu0 %1396
        %1399 = vset.pattern.permute.xlu0 3
        %1400 = vperm.xlu0 %1399, %v572
        %v1401 = vpop.permute.xlu0 %1400
        %v1403 = vmul.f32 %v1388, %v1397
        %v1404 = vmul.f32 %v1391, %v1401
        %v1405 = vmul.f32 %v1341, %v695
        %v1406 = vmul.f32 %v1344, %v697
        %v1407 = vpack.c.bf16 %v1406, %v1405
        %v1408 = vpack.c.bf16 %v1001, %v1000
        %v1410 = vsel %vm600, %v1407, 0
        %1412 = vmatprep.subr.bf16.mxu0 0
        %1413 = vmatpush1.bf16.msra.mxu0 0
        %1414 = vmatprep.subr.bf16.mxu0 0
        %1415 = vmatpush1.bf16.msra.mxu0 0
        %1416 = vmatprep.subr.bf16.mxu0 0
        %1417 = vmatpush1.bf16.msra.mxu0 0
        %1418 = vmatprep.subr.bf16.mxu0 0
        %1419 = vmatpush1.bf16.msra.mxu0 0
        %1420 = vmatprep.subr.bf16.mxu0 0
        %1421 = vmatpush1.bf16.msra.mxu0 0
        %1422 = vmatprep.subr.bf16.mxu0 0
        %1423 = vmatpush1.bf16.msra.mxu0 0
        %1424 = vmatprep.subr.bf16.mxu0 0
        %1425 = vmatpush1.bf16.msra.mxu0 0
        %1426 = vmatprep.subr.bf16.mxu0 0
        %1427 = vmatpush1.bf16.msra.mxu0 %v1408
        %1428 = vmatprep.subr.bf16.mxu0 0
        %1429 = vmatpush2.bf16.msra.mxu0 0
        %1430 = vmatprep.subr.bf16.mxu0 0
        %1431 = vmatpush2.bf16.msra.mxu0 0
        %1432 = vmatprep.subr.bf16.mxu0 0
        %1433 = vmatpush2.bf16.msra.mxu0 0
        %1434 = vmatprep.subr.bf16.mxu0 0
        %1435 = vmatpush2.bf16.msra.mxu0 0
        %1436 = vmatprep.subr.bf16.mxu0 0
        %1437 = vmatpush2.bf16.msra.mxu0 0
        %1438 = vmatprep.subr.bf16.mxu0 0
        %1439 = vmatpush2.bf16.msra.mxu0 0
        %1440 = vmatprep.subr.bf16.mxu0 0
        %1441 = vmatpush2.bf16.msra.mxu0 0
        %1442 = vmatprep.subr.bf16.mxu0 0
        %1443 = vmatpush2.bf16.msra.mxu0 0
        %1444 = vmatprep.mubr.bf16.mxu0 0
        %1445 = vmatmul.mubr.bf16.gmra.mxu0 %v1410
        %v1446 = vpop.f32.mrf.mxu0
        %v1447 = vadd.f32 0.0, %v1446
        %v1448 = vpop.f32.mrf.mxu0
        %v1449 = vpop.f32.mrf.mxu0
        %v1450 = vadd.f32 0.0, %v1449
        %v1451 = vpop.f32.mrf.mxu0
        %1452 = vdwg.mxu0
        %v1453 = vsub.f32 %v1403, %v1447
        %v1454 = vsub.f32 %v1404, %v1450
        %v1455 = vsub.f32 0.0, %v1453
        %v1456 = vsub.f32 0.0, %v1454
        %v1457 = vmul.f32 %v1455, 1.442695
        %v1458 = vpow.pop %v1457
        %v1459 = vmul.f32 %v1456, 1.442695
        %v1460 = vpow.pop %v1459
        %v1461 = vadd.f32 %v1458, 1.0
        %v1462 = vadd.f32 %v1460, 1.0
        %v1463 = vrcp.pop %v1461
        %v1464 = vmul.f32 1.0, %v1463
        %v1465 = vrcp.pop %v1462
        %v1466 = vmul.f32 1.0, %v1465
        %v1467 = vmul.f32 %v1453, %v1464
        %v1468 = vmul.f32 %v1454, %v1466
        %v1469 = vpack.c.bf16 %v1468, %v1467
        %v1470 = vpack.c.bf16 %v810, %v809
        %v1472 = vsel %vm811, %v1469, 0
        %v1475 = vsel %vm811, %v1470, 0
        %1477 = vmatprep.subr.bf16.mxu0 0
        %1478 = vmatpush1.bf16.xpose.msra.mxu0 0
        %1479 = vmatprep.subr.bf16.mxu0 0
        %1480 = vmatpush1.bf16.xpose.msra.mxu0 0
        %1481 = vmatprep.subr.bf16.mxu0 0
        %1482 = vmatpush1.bf16.xpose.msra.mxu0 0
        %1483 = vmatprep.subr.bf16.mxu0 0
        %1484 = vmatpush1.bf16.xpose.msra.mxu0 0
        %1485 = vmatprep.subr.bf16.mxu0 0
        %1486 = vmatpush1.bf16.xpose.msra.mxu0 0
        %1487 = vmatprep.subr.bf16.mxu0 0
        %1488 = vmatpush1.bf16.xpose.msra.mxu0 0
        %1489 = vmatprep.subr.bf16.mxu0 0
        %1490 = vmatpush1.bf16.xpose.msra.mxu0 0
        %1491 = vmatprep.subr.bf16.mxu0 0
        %1492 = vmatpush1.bf16.xpose.msra.mxu0 %v1475
        %1493 = vmatprep.subr.bf16.mxu0 0
        %1494 = vmatpush2.bf16.xpose.msra.mxu0 0
        %1495 = vmatprep.subr.bf16.mxu0 0
        %1496 = vmatpush2.bf16.xpose.msra.mxu0 0
        %1497 = vmatprep.subr.bf16.mxu0 0
        %1498 = vmatpush2.bf16.xpose.msra.mxu0 0
        %1499 = vmatprep.subr.bf16.mxu0 0
        %1500 = vmatpush2.bf16.xpose.msra.mxu0 0
        %1501 = vmatprep.subr.bf16.mxu0 0
        %1502 = vmatpush2.bf16.xpose.msra.mxu0 0
        %1503 = vmatprep.subr.bf16.mxu0 0
        %1504 = vmatpush2.bf16.xpose.msra.mxu0 0
        %1505 = vmatprep.subr.bf16.mxu0 0
        %1506 = vmatpush2.bf16.xpose.msra.mxu0 0
        %1507 = vmatprep.subr.bf16.mxu0 0
        %1508 = vmatpush2.bf16.xpose.msra.mxu0 0
        %1509 = vmatprep.mubr.bf16.mxu0 0
        %1510 = vmatmul.mubr.bf16.gmra.mxu0 %v1472
        %v1511 = vpop.f32.mrf.mxu0
        %v1512 = vadd.f32 0.0, %v1511
        %v1513 = vpop.f32.mrf.mxu0
        %v1514 = vpop.f32.mrf.mxu0
        %v1515 = vadd.f32 0.0, %v1514
        %v1516 = vpop.f32.mrf.mxu0
        %1517 = vdwg.mxu0
        %v1519 = vsel %vm811, %v1299, 0
        %1521 = vmatprep.subr.bf16.mxu0 0
        %1522 = vmatpush1.bf16.xpose.msra.mxu0 0
        %1523 = vmatprep.subr.bf16.mxu0 0
        %1524 = vmatpush1.bf16.xpose.msra.mxu0 0
        %1525 = vmatprep.subr.bf16.mxu0 0
        %1526 = vmatpush1.bf16.xpose.msra.mxu0 0
        %1527 = vmatprep.subr.bf16.mxu0 0
        %1528 = vmatpush1.bf16.xpose.msra.mxu0 0
        %1529 = vmatprep.subr.bf16.mxu0 0
        %1530 = vmatpush1.bf16.xpose.msra.mxu0 0
        %1531 = vmatprep.subr.bf16.mxu0 0
        %1532 = vmatpush1.bf16.xpose.msra.mxu0 0
        %1533 = vmatprep.subr.bf16.mxu0 0
        %1534 = vmatpush1.bf16.xpose.msra.mxu0 0
        %1535 = vmatprep.subr.bf16.mxu0 0
        %1536 = vmatpush1.bf16.xpose.msra.mxu0 %v1519
        %1537 = vmatprep.subr.bf16.mxu0 0
        %1538 = vmatpush2.bf16.xpose.msra.mxu0 0
        %1539 = vmatprep.subr.bf16.mxu0 0
        %1540 = vmatpush2.bf16.xpose.msra.mxu0 0
        %1541 = vmatprep.subr.bf16.mxu0 0
        %1542 = vmatpush2.bf16.xpose.msra.mxu0 0
        %1543 = vmatprep.subr.bf16.mxu0 0
        %1544 = vmatpush2.bf16.xpose.msra.mxu0 0
        %1545 = vmatprep.subr.bf16.mxu0 0
        %1546 = vmatpush2.bf16.xpose.msra.mxu0 0
        %1547 = vmatprep.subr.bf16.mxu0 0
        %1548 = vmatpush2.bf16.xpose.msra.mxu0 0
        %1549 = vmatprep.subr.bf16.mxu0 0
        %1550 = vmatpush2.bf16.xpose.msra.mxu0 0
        %1551 = vmatprep.subr.bf16.mxu0 0
        %1552 = vmatpush2.bf16.xpose.msra.mxu0 0
        %1553 = vmatprep.mubr.bf16.mxu0 0
        %1554 = vmatmul.mubr.bf16.gmra.mxu0 %v1472
        %v1555 = vpop.f32.mrf.mxu0
        %v1556 = vadd.f32 0.0, %v1555
        %v1557 = vpop.f32.mrf.mxu0
        %v1558 = vpop.f32.mrf.mxu0
        %v1559 = vadd.f32 0.0, %v1558
        %v1560 = vpop.f32.mrf.mxu0
        %1561 = vdwg.mxu0
        %v1562 = vmul.f32 %v1556, %v1397
        %v1563 = vmul.f32 %v1559, %v1401
        %v1564 = vmul.f32 %v1512, %v695
        %v1565 = vmul.f32 %v1515, %v697
        %v1566 = vpack.c.bf16 %v1565, %v1564
        %v1567 = vpack.c.bf16 %v1003, %v1002
        %v1569 = vsel %vm600, %v1566, 0
        %1571 = vmatprep.subr.bf16.mxu0 0
        %1572 = vmatpush1.bf16.msra.mxu0 0
        %1573 = vmatprep.subr.bf16.mxu0 0
        %1574 = vmatpush1.bf16.msra.mxu0 0
        %1575 = vmatprep.subr.bf16.mxu0 0
        %1576 = vmatpush1.bf16.msra.mxu0 0
        %1577 = vmatprep.subr.bf16.mxu0 0
        %1578 = vmatpush1.bf16.msra.mxu0 0
        %1579 = vmatprep.subr.bf16.mxu0 0
        %1580 = vmatpush1.bf16.msra.mxu0 0
        %1581 = vmatprep.subr.bf16.mxu0 0
        %1582 = vmatpush1.bf16.msra.mxu0 0
        %1583 = vmatprep.subr.bf16.mxu0 0
        %1584 = vmatpush1.bf16.msra.mxu0 0
        %1585 = vmatprep.subr.bf16.mxu0 0
        %1586 = vmatpush1.bf16.msra.mxu0 %v1567
        %1587 = vmatprep.subr.bf16.mxu0 0
        %1588 = vmatpush2.bf16.msra.mxu0 0
        %1589 = vmatprep.subr.bf16.mxu0 0
        %1590 = vmatpush2.bf16.msra.mxu0 0
        %1591 = vmatprep.subr.bf16.mxu0 0
        %1592 = vmatpush2.bf16.msra.mxu0 0
        %1593 = vmatprep.subr.bf16.mxu0 0
        %1594 = vmatpush2.bf16.msra.mxu0 0
        %1595 = vmatprep.subr.bf16.mxu0 0
        %1596 = vmatpush2.bf16.msra.mxu0 0
        %1597 = vmatprep.subr.bf16.mxu0 0
        %1598 = vmatpush2.bf16.msra.mxu0 0
        %1599 = vmatprep.subr.bf16.mxu0 0
        %1600 = vmatpush2.bf16.msra.mxu0 0
        %1601 = vmatprep.subr.bf16.mxu0 0
        %1602 = vmatpush2.bf16.msra.mxu0 0
        %1603 = vmatprep.mubr.bf16.mxu0 0
        %1604 = vmatmul.mubr.bf16.gmra.mxu0 %v1569
        %v1605 = vpop.f32.mrf.mxu0
        %v1606 = vadd.f32 0.0, %v1605
        %v1607 = vpop.f32.mrf.mxu0
        %v1608 = vpop.f32.mrf.mxu0
        %v1609 = vadd.f32 0.0, %v1608
        %v1610 = vpop.f32.mrf.mxu0
        %1611 = vdwg.mxu0
        %v1612 = vsub.f32 %v1562, %v1606
        %v1613 = vsub.f32 %v1563, %v1609
        %v1614 = vpack.c.bf16 %v1613, %v1612
        %v1615 = vld [vmem:[%s441] sm:$0xff]
        %v1616 = vld [vmem:[%s441 + $0x8] sm:$0xff]
        %v1617 = vpack.c.bf16 %v1616, %v1615
        %v1619 = vsel %vm600, %v1614, 0
        %1621 = vmatprep.subr.bf16.mxu0 0
        %1622 = vmatpush1.bf16.msra.mxu0 0
        %1623 = vmatprep.subr.bf16.mxu0 0
        %1624 = vmatpush1.bf16.msra.mxu0 0
        %1625 = vmatprep.subr.bf16.mxu0 0
        %1626 = vmatpush1.bf16.msra.mxu0 0
        %1627 = vmatprep.subr.bf16.mxu0 0
        %1628 = vmatpush1.bf16.msra.mxu0 0
        %1629 = vmatprep.subr.bf16.mxu0 0
        %1630 = vmatpush1.bf16.msra.mxu0 0
        %1631 = vmatprep.subr.bf16.mxu0 0
        %1632 = vmatpush1.bf16.msra.mxu0 0
        %1633 = vmatprep.subr.bf16.mxu0 0
        %1634 = vmatpush1.bf16.msra.mxu0 0
        %1635 = vmatprep.subr.bf16.mxu0 0
        %1636 = vmatpush1.bf16.msra.mxu0 %v1617
        %1637 = vmatprep.subr.bf16.mxu0 0
        %1638 = vmatpush2.bf16.msra.mxu0 0
        %1639 = vmatprep.subr.bf16.mxu0 0
        %1640 = vmatpush2.bf16.msra.mxu0 0
        %1641 = vmatprep.subr.bf16.mxu0 0
        %1642 = vmatpush2.bf16.msra.mxu0 0
        %1643 = vmatprep.subr.bf16.mxu0 0
        %1644 = vmatpush2.bf16.msra.mxu0 0
        %1645 = vmatprep.subr.bf16.mxu0 0
        %1646 = vmatpush2.bf16.msra.mxu0 0
        %1647 = vmatprep.subr.bf16.mxu0 0
        %1648 = vmatpush2.bf16.msra.mxu0 0
        %1649 = vmatprep.subr.bf16.mxu0 0
        %1650 = vmatpush2.bf16.msra.mxu0 0
        %1651 = vmatprep.subr.bf16.mxu0 0
        %1652 = vmatpush2.bf16.msra.mxu0 0
        %1653 = vmatprep.mubr.bf16.mxu0 0
        %1654 = vmatmul.mubr.bf16.gmra.mxu0 %v1619
        %v1655 = vpop.f32.mrf.mxu0
        %v1656 = vadd.f32 0.0, %v1655
        %v1657 = vpop.f32.mrf.mxu0
        %v1658 = vpop.f32.mrf.mxu0
        %v1659 = vadd.f32 0.0, %v1658
        %v1660 = vpop.f32.mrf.mxu0
        %1661 = vdwg.mxu0
        %p1662 = scmp.eq.s32.totalorder %s30, 0
        // Predicated region
        $region64: #{multi_head_mlp_ttt_forward.3} parent=58 // pred_check
          %p1663 = pneg %p1662
        $region65: #{multi_head_mlp_ttt_forward.3} parent=58 // pred_check_branch
          %1665 = sbr.rel (%p1663) target = $region67
        $region66: #{multi_head_mlp_ttt_forward.3} parent=58 // pred_region
          %v1666 = vld [vmem:[%s4] sm:$0x1]
          %v1668 = vlaneseq
          %v1669 = vshrl.u32 %v1668, 7
          %v1670 = vsub.s32 0, %v1669
          %v1671 = vrot.slane %v1666, %v1670
          %v1673 = vadd.f32 %v1656, %v1671
          %v1674 = vadd.f32 %v1659, %v1671
          %1675 = vst.msk [vmem:[%s399] sm:$0xff] %vm811, %v1673
          %1676 = vst.msk [vmem:[%s399 + $0x8] sm:$0xff] %vm811, %v1674
        $region67: #{multi_head_mlp_ttt_forward.3} parent=58 // pred_fallthru
          _
        %p1677 = scmp.ne.s32.totalorder %s30, 0
        // Predicated region
        $region68: #{multi_head_mlp_ttt_forward.3} parent=58 // pred_check
          %p1678 = pneg %p1677
        $region69: #{multi_head_mlp_ttt_forward.3} parent=58 // pred_check_branch
          %1680 = sbr.rel (%p1678) target = $region71
        $region70: #{multi_head_mlp_ttt_forward.3} parent=58 // pred_region
          %v1681 = vld [vmem:[%s399] sm:$0xff]
          %v1682 = vld [vmem:[%s399 + $0x8] sm:$0xff]
          %v1683 = vadd.f32 %v1681, %v1656
          %v1684 = vadd.f32 %v1682, %v1659
          %1685 = vst.msk [vmem:[%s399] sm:$0xff] %vm811, %v1683
          %1686 = vst.msk [vmem:[%s399 + $0x8] sm:$0xff] %vm811, %v1684
        $region71: #{multi_head_mlp_ttt_forward.3} parent=58 // pred_fallthru
          _
        %s1687 = sand.u32 %s176, 1
        %s1688 = scalar_lea.sflag [#allocation4], %s1687
        %s1689 = sand.u32 %s176, 1
        %s1690 = smul.addr %s1689, 16
        %s1691 = scalar_lea.vmem [#allocation3], %s1690
        %p1692 = scmp.lt.s32.totalorder %s29, 1
        %s1693 = scalar_select %p1692, %s29, 1
        %p1694 = scmp.lt.s32.totalorder %s30, 1
        %s1695 = scalar_select %p1694, %s30, 1
        %s1696 = smul.addr %s1695, 4
        %s1697 = smul.addr %s1693, 8
        %s1698 = sadd.s32 %s1696, %s1697
        %s1699 = smul.addr %s1698, 8
        %s1700 = scalar_lea.vmem %s6, %s1699
        %s1701 = sand.u32 %s232, 1
        %s1702 = scalar_lea.sflag [#allocation6], %s1701
        %s1703 = sand.u32 %s232, 1
        %s1704 = smul.addr %s1703, 16
        %s1705 = scalar_lea.vmem [#allocation5], %s1704
        // Predicated region
        $region72: #{multi_head_mlp_ttt_forward.3} parent=58 // pred_check
          %p1706 = pneg %p186
        $region73: #{multi_head_mlp_ttt_forward.3} parent=58 // pred_check_branch
          %1708 = sbr.rel (%p1706) target = $region75
        $region74: #{multi_head_mlp_ttt_forward.3} parent=58 // pred_region
          %s1710 = ssub.s32 256, 256
          %1711 = vsyncadd %s1688, %s1710
          %s1712 = smul.addr %s29, 2
          %s1713 = smul.addr %s1712, 128
          %s1714 = scalar_lea.hbm %s5, %s1713
          %s1715 = sshll.u32 %s1691, 4
          %s1716 = int_to_ptr.vmem [resolvable:$true] %s1715
          %1721 = dma.vmem_to_hbm [thread:$0]  %s1716, 256, %s1714, %s1688, 128, 128, 8
        $region75: #{multi_head_mlp_ttt_forward.3} parent=58 // pred_fallthru
          _
        // Predicated region
        $region76: #{multi_head_mlp_ttt_forward.3} parent=58 // pred_check
          %p1722 = pneg %p214
        $region77: #{multi_head_mlp_ttt_forward.3} parent=58 // pred_check_branch
          %1724 = sbr.rel (%p1722) target = $region79
        $region78: #{multi_head_mlp_ttt_forward.3} parent=58 // pred_region
          _
        $region79: #{multi_head_mlp_ttt_forward.3} parent=58 // pred_fallthru
          _
        // Predicated region
        $region80: #{multi_head_mlp_ttt_forward.3} parent=58 // pred_check
          %p1725 = pneg %p242
        $region81: #{multi_head_mlp_ttt_forward.3} parent=58 // pred_check_branch
          %1727 = sbr.rel (%p1725) target = $region83
        $region82: #{multi_head_mlp_ttt_forward.3} parent=58 // pred_region
          %s1729 = ssub.s32 256, 256
          %1730 = vsyncadd %s1702, %s1729
          %s1731 = smul.addr %s30, 2
          %s1732 = smul.addr %s29, 4
          %s1733 = sadd.s32 %s1731, %s1732
          %s1734 = smul.addr %s1733, 128
          %s1735 = scalar_lea.hbm %s7, %s1734
          %s1736 = sshll.u32 %s1705, 4
          %s1737 = int_to_ptr.vmem [resolvable:$true] %s1736
          %1742 = dma.vmem_to_hbm [thread:$0]  %s1737, 256, %s1735, %s1702, 128, 128, 8
        $region83: #{multi_head_mlp_ttt_forward.3} parent=58 // pred_fallthru
          _
      $region59: #{multi_head_mlp_ttt_forward.3} parent=5 // pred_fallthru
        _
      %p1743 = scmp.le.s32.totalorder 2, %s20
      // Predicated region
      $region84: #{multi_head_mlp_ttt_forward.3} parent=5 // pred_check
        %p1744 = pneg %p1743
      $region85: #{multi_head_mlp_ttt_forward.3} parent=5 // pred_check_branch
        %1746 = sbr.rel (%p1744) target = $region87
      $region86: #{multi_head_mlp_ttt_forward.3} parent=5 // pred_region
        %s1747 = ssub.s32 %s20, 2
        // Predicated region
        $region88: #{multi_head_mlp_ttt_forward.3} parent=86 // pred_check
          %p1748 = pneg %p192
        $region89: #{multi_head_mlp_ttt_forward.3} parent=86 // pred_check_branch
          %1750 = sbr.rel (%p1748) target = $region91
        $region90: #{multi_head_mlp_ttt_forward.3} parent=86 // pred_region
          %s1751 = sand.u32 %s177, 1
          %s1752 = scalar_lea.sflag [#allocation4], %s1751
          %s1753 = sand.u32 %s177, 1
          %s1754 = smul.addr %s1753, 16
          %s1755 = scalar_lea.vmem [#allocation3], %s1754
          %1756 = dma.done %s1752, 256
        $region91: #{multi_head_mlp_ttt_forward.3} parent=86 // pred_fallthru
          _
        // Predicated region
        $region92: #{multi_head_mlp_ttt_forward.3} parent=86 // pred_check
          %p1757 = pneg %p220
        $region93: #{multi_head_mlp_ttt_forward.3} parent=86 // pred_check_branch
          %1759 = sbr.rel (%p1757) target = $region95
        $region94: #{multi_head_mlp_ttt_forward.3} parent=86 // pred_region
          %p1760 = scmp.lt.s32.totalorder %s31, 1
          %s1761 = scalar_select %p1760, %s31, 1
          %p1762 = scmp.lt.s32.totalorder %s32, 1
          %s1763 = scalar_select %p1762, %s32, 1
          %s1764 = smul.addr %s1763, 4
          %s1765 = smul.addr %s1761, 8
          %s1766 = sadd.s32 %s1764, %s1765
          %s1767 = smul.addr %s1766, 8
          %s1768 = scalar_lea.vmem %s6, %s1767
        $region95: #{multi_head_mlp_ttt_forward.3} parent=86 // pred_fallthru
          _
        // Predicated region
        $region96: #{multi_head_mlp_ttt_forward.3} parent=86 // pred_check
          %p1769 = pneg %p248
        $region97: #{multi_head_mlp_ttt_forward.3} parent=86 // pred_check_branch
          %1771 = sbr.rel (%p1769) target = $region99
        $region98: #{multi_head_mlp_ttt_forward.3} parent=86 // pred_region
          %s1772 = sand.u32 %s233, 1
          %s1773 = scalar_lea.sflag [#allocation6], %s1772
          %s1774 = sand.u32 %s233, 1
          %s1775 = smul.addr %s1774, 16
          %s1776 = scalar_lea.vmem [#allocation5], %s1775
          %1777 = dma.done %s1773, 256
        $region99: #{multi_head_mlp_ttt_forward.3} parent=86 // pred_fallthru
          _
      $region87: #{multi_head_mlp_ttt_forward.3} parent=5 // pred_fallthru
        _
    $region6: #{multi_head_mlp_ttt_forward.3} parent=1 // loop_footer
      %s24 = sadd.s32 1, %s20
    $region7: #{multi_head_mlp_ttt_forward.3} parent=1 // loop_footer_branch
      %19 = sbr.rel target = $region3
    $region8: #{multi_head_mlp_ttt_forward.3} parent=1 // loop_exit
      _
    %1778 = vsyncpa [#allocation4], 1
    %s1779 = scalar_lea.sflag [#allocation4], 1
    %1780 = vsyncpa %s1779, 1
    %1781 = vsyncpa [#allocation6], 1
    %s1782 = scalar_lea.sflag [#allocation6], 1
    %1783 = vsyncpa %s1782, 1

</llo_original>
